<compile_context>
chip_gen: v6e
topology: v6e:2x2x1
jax: 0.10.0
libtpu: 0.0.40
codegen_flags: <defaults>
</compile_context>

<pallas_src>
import functools
import math

import jax
import jax.numpy as jnp
from jax.experimental import pallas as pl
from jax.experimental.pallas import tpu as pltpu


# ----------------------------------------------------------------------------
# Hardware-aware knobs
# ----------------------------------------------------------------------------
@functools.lru_cache(maxsize=1)
def _vmem_budget_bytes():
    """~75% of per-core VMEM: ≈96 MiB on v5e/v6e, ≈48 MiB on v7x.
    Leaves headroom for double buffering, internal scratch and semaphores."""
    try:
        cap = int(pltpu.get_tpu_info().vmem_capacity_bytes)
    except Exception:
        cap = 64 * 1024 * 1024  # conservative fallback (v7x-sized VMEM)
    return (cap * 3) // 4


def _preferred_row_dtype():
    """bf16 activation storage on bf16-capable VPUs (v6e / v7x) halves HBM
    traffic of the mem-bound kernels; v5e has no bf16 vector datapath so it
    stays f32.  Accumulation / bias / activation math is f32 in all cases."""
    try:
        kind = jax.devices()[0].device_kind.lower()
    except Exception:
        return jnp.float32
    if ("v6" in kind) or ("v7" in kind) or ("tpu7" in kind):
        return jnp.bfloat16
    return jnp.float32


def _pick_lane_tile(n, max_tile, min_grid=1):
    """Largest multiple-of-128 divisor of n that is <= max_tile, preferring at
    least `min_grid` grid steps (keeps both v7x TensorCores busy).  Returns
    None when n has no 128-multiple divisor (caller then uses one full block)."""
    max_tile = max(128, (int(max_tile) // 128) * 128)
    t = min(max_tile, (n // 128) * 128)
    best = None
    while t >= 128:
        if n % t == 0:
            if n // t >= min_grid:
                return t
            if best is None:
                best = t
        t -= 128
    return best


# ----------------------------------------------------------------------------
# Activations
# ----------------------------------------------------------------------------
def _apply_act(y, act):
    if act == "relu":
        return jnp.maximum(y, 0.0)
    if act == "tanh":
        return jnp.tanh(y)
    if act == "gelu":
        # PyTorch nn.GELU default is the exact (erf) formulation.
        return jax.nn.gelu(y, approximate=False)
    raise ValueError(f"unsupported act: {act}")


# ----------------------------------------------------------------------------
# Pallas kernels (all lane-dense: big spatial/mode axis on lanes)
# ----------------------------------------------------------------------------
def _spectral_mix_kernel(xr_ref, xi_ref, wr_ref, wi_ref, or_ref, oi_ref):
    """One (mode-tile, batch) block of the fused-corner complex channel mix.

    xr/xi: (1, Cin, TM)   real/imag kept Fourier modes (TM <= 512 lanes)
    wr/wi: (Cin, Cout, TM) fused-corner spectral weights
    out  : (1, Cout, TM)  with out[o,m] = sum_i x[i,m] * w[i,o,m]  (complex)

    Weight slices are loaded per input channel inside the loop and the
    accumulators are bounded to (Cout, TM<=512), keeping the live set in vregs
    (no spill) — the loop is pure VPU broadcast-FMA work.
    """
    xr = xr_ref[0]                                    # (Cin, TM) — small, resident
    xi = xi_ref[0]
    cin = xr.shape[0]
    cout, tm = or_ref.shape[1], or_ref.shape[2]
    acc_r = jnp.zeros((cout, tm), jnp.float32)
    acc_i = jnp.zeros((cout, tm), jnp.float32)

    def step(i, xri, xii, ar, ai):
        wri = wr_ref[i]                               # (Cout, TM) per-iter load
        wii = wi_ref[i]
        ar = ar + xri * wri - xii * wii
        ai = ai + xri * wii + xii * wri
        return ar, ai

    if cin <= 32:                                     # static unroll (small Cin)
        for i in range(cin):
            acc_r, acc_i = step(i, xr[i:i + 1, :], xi[i:i + 1, :], acc_r, acc_i)
    else:                                             # bounded live ranges (big Cin)
        def body(i, carry):
            ar, ai = carry
            xri = jax.lax.dynamic_slice_in_dim(xr, i, 1, axis=0)
            xii = jax.lax.dynamic_slice_in_dim(xi, i, 1, axis=0)
            return step(i, xri, xii, ar, ai)
        acc_r, acc_i = jax.lax.fori_loop(0, cin, body, (acc_r, acc_i), unroll=8)

    or_ref[0] = acc_r
    oi_ref[0] = acc_i


def _residual_affine_kernel(x1_ref, x_ref, w_ref, b_ref, o_ref, *, act):
    """One (batch, lane-tile) block of  y = x1 + W @ x + b  (+ act).

    Lane-dense layout: x1 (1, Cout, T), x (1, Cin, T), W (Cout, Cin),
    b (Cout, 1), out (1, Cout, T) — the big spatial axis T sits on lanes, so
    every store is a full-lane unmasked vst and blocks have no lane padding.
    """
    y = x1_ref[0].astype(jnp.float32)
    y = y + jnp.dot(w_ref[...], x_ref[0].astype(jnp.float32),
                    preferred_element_type=jnp.float32)
    y = y + b_ref[...]
    if act is not None:
        y = _apply_act(y, act)
    o_ref[0] = y.astype(o_ref.dtype)


def _mlp_kernel(x_ref, w1_ref, b1_ref, w2_ref, b2_ref, o_ref, *, act):
    """y = W2 @ act(W1 @ x + b1) + b2, lane-dense over the flattened rows.
    fc1 + act + fc2 fused: the (fc_dim, T) intermediate never hits HBM."""
    h = jnp.dot(w1_ref[...], x_ref[...].astype(jnp.float32),
                preferred_element_type=jnp.float32) + b1_ref[...]
    h = _apply_act(h, act)
    y = jnp.dot(w2_ref[...], h, preferred_element_type=jnp.float32) + b2_ref[...]
    o_ref[...] = y.astype(o_ref.dtype)


# ----------------------------------------------------------------------------
# Pallas wrappers
# ----------------------------------------------------------------------------
def pointwise_conv_add(x1, x, w, b, act, out_dtype=jnp.float32):
    """x1 + Conv1d(kernel=1)(x) (+ act), channels-first lane-dense.

    x1: (B, Cout, S), x: (B, Cin, S), w: (Cout, Cin), b: (Cout, 1).
    Returns (B, Cout, S) in out_dtype.  Grid = (B, S-tiles), both parallel.
    """
    bsz, cout, s = x1.shape
    cin = x.shape[1]
    budget = _vmem_budget_bytes()
    bytes_per_lane = (cin * x.dtype.itemsize + cout * x1.dtype.itemsize
                      + cout * jnp.dtype(out_dtype).itemsize)
    max_tile = budget // (4 * bytes_per_lane)          # 2x-buffered ins+outs
    tile_s = _pick_lane_tile(s, max_tile, min_grid=1 if bsz >= 2 else 2)
    if tile_s is None:
        tile_s = s                                     # single full-extent block
    grid = (bsz, s // tile_s)

    kern = functools.partial(_residual_affine_kernel, act=act)
    return pl.pallas_call(
        kern,
        out_shape=jax.ShapeDtypeStruct((bsz, cout, s), out_dtype),
        grid=grid,
        in_specs=[
            pl.BlockSpec((1, cout, tile_s), lambda bb, t: (bb, 0, t)),
            pl.BlockSpec((1, cin, tile_s), lambda bb, t: (bb, 0, t)),
            pl.BlockSpec((cout, cin), lambda bb, t: (0, 0)),
            pl.BlockSpec((cout, 1), lambda bb, t: (0, 0)),
        ],
        out_specs=pl.BlockSpec((1, cout, tile_s), lambda bb, t: (bb, 0, t)),
        compiler_params=pltpu.CompilerParams(
            dimension_semantics=("parallel", "parallel"),
            vmem_limit_bytes=budget),
    )(x1, x, w, b)


def fused_mlp(h, w1, b1, w2, b2, act):
    """fc1 + act + fc2 on a lane-dense (C, rows) slab.  Returns (out_dim, rows)."""
    cin, r = h.shape
    fc = w1.shape[0]
    od = w2.shape[0]
    budget = _vmem_budget_bytes()
    bytes_per_lane = cin * h.dtype.itemsize + (fc + od) * 4
    max_tile = budget // (4 * bytes_per_lane)
    tile_r = _pick_lane_tile(r, max_tile, min_grid=2)
    if tile_r is None:
        tile_r = r
    grid = (r // tile_r,)

    kern = functools.partial(_mlp_kernel, act=act)
    return pl.pallas_call(
        kern,
        out_shape=jax.ShapeDtypeStruct((od, r), jnp.float32),
        grid=grid,
        in_specs=[
            pl.BlockSpec((cin, tile_r), lambda t: (0, t)),
            pl.BlockSpec((fc, cin), lambda t: (0, 0)),
            pl.BlockSpec((fc, 1), lambda t: (0, 0)),
            pl.BlockSpec((od, fc), lambda t: (0, 0)),
            pl.BlockSpec((od, 1), lambda t: (0, 0)),
        ],
        out_specs=pl.BlockSpec((od, tile_r), lambda t: (0, t)),
        compiler_params=pltpu.CompilerParams(
            dimension_semantics=("parallel",),
            vmem_limit_bytes=budget),
    )(h, w1, b1, w2, b2)


_SPEC_MODE_TILE = 512  # lane-tile cap for the spectral mix (bounds accumulators)


def _spectral_mix(xr, xi, wr, wi):
    """Fused 4-corner complex channel mixing.  Grid = (mode-tiles, batch)."""
    b, cin, m4 = xr.shape
    cout = wr.shape[1]

    m4p = m4
    if m4 > _SPEC_MODE_TILE:
        # Rare path (large mode counts): pad the fused mode axis to a multiple
        # of 128 so a <=512-lane tile always divides it (zero-padded modes
        # produce zero outputs and are sliced off below).
        pad = (-m4) % 128
        if pad:
            zpad = ((0, 0), (0, 0), (0, pad))
            xr, xi = jnp.pad(xr, zpad), jnp.pad(xi, zpad)
            wr, wi = jnp.pad(wr, zpad), jnp.pad(wi, zpad)
        m4p = m4 + pad
        tile_m = 128
        for t in range(_SPEC_MODE_TILE, 127, -128):
            if m4p % t == 0:
                tile_m = t
                break
    else:
        tile_m = m4p
    grid = (m4p // tile_m, b)   # batch fastest: weight blocks reused across b

    budget = _vmem_budget_bytes()
    blk_bytes = 4 * tile_m * (2 * cin + 2 * cin * cout + 2 * cout)
    vmem_limit = int(min(budget, max(16 * 1024 * 1024, 4 * blk_bytes)))

    out_r, out_i = pl.pallas_call(
        _spectral_mix_kernel,
        out_shape=(jax.ShapeDtypeStruct((b, cout, m4p), jnp.float32),
                   jax.ShapeDtypeStruct((b, cout, m4p), jnp.float32)),
        grid=grid,
        in_specs=[
            pl.BlockSpec((1, cin, tile_m), lambda t, bb: (bb, 0, t)),
            pl.BlockSpec((1, cin, tile_m), lambda t, bb: (bb, 0, t)),
            pl.BlockSpec((cin, cout, tile_m), lambda t, bb: (0, 0, t)),
            pl.BlockSpec((cin, cout, tile_m), lambda t, bb: (0, 0, t)),
        ],
        out_specs=(
            pl.BlockSpec((1, cout, tile_m), lambda t, bb: (bb, 0, t)),
            pl.BlockSpec((1, cout, tile_m), lambda t, bb: (bb, 0, t)),
        ),
        compiler_params=pltpu.CompilerParams(
            dimension_semantics=("parallel", "parallel"),
            vmem_limit_bytes=vmem_limit),
    )(xr, xi, wr, wi)

    if m4p != m4:
        out_r, out_i = out_r[..., :m4], out_i[..., :m4]
    return out_r, out_i


def spectral_conv3d(x, wr_all, wi_all, m1, m2, m3):
    """FNO SpectralConv3d on channels-first (B, Cin, X, Y, Z) input.

    wr_all/wi_all: (Cin, Cout, 4*m1*m2*m3) fused-corner spectral weights
    (pre-fused at init).  Returns (B, Cout, X, Y, Z) float32.
    """
    b, cin, sx, sy, sz = x.shape
    cout = wr_all.shape[1]
    mm = m1 * m2 * m3
    zf = sz // 2 + 1

    # TODO(synk): FFT has no Pallas primitive; rfftn/irfftn stay in plain JAX.
    x_ft = jnp.fft.rfftn(x.astype(jnp.float32), axes=(2, 3, 4))  # (B,Cin,X,Y,zf) c64

    # Channels already lead, so a single stack+reshape gives the (B,Cin,4*mm)
    # lane-fused kept-mode layout — no moveaxis round trips.
    corners = jnp.stack([
        x_ft[:, :, :m1, :m2, :m3],             # (x-low,  y-low)
        x_ft[:, :, sx - m1:, :m2, :m3],        # (x-high, y-low)
        x_ft[:, :, :m1, sy - m2:, :m3],        # (x-low,  y-high)
        x_ft[:, :, sx - m1:, sy - m2:, :m3],   # (x-high, y-high)
    ], axis=2).reshape(b, cin, 4 * mm)
    xr = jnp.real(corners)
    xi = jnp.imag(corners)

    out_r, out_i = _spectral_mix(xr, xi, wr_all, wi_all)          # (B,Cout,4*mm)

    oc = (out_r + 1j * out_i).astype(jnp.complex64).reshape(b, cout, 4, m1, m2, m3)
    o1, o2, o3, o4 = oc[:, :, 0], oc[:, :, 1], oc[:, :, 2], oc[:, :, 3]

    # Assemble the (mostly zero) spectrum once with concat/pad.
    if 2 * m1 <= sx and 2 * m2 <= sy and m3 <= zf:
        zy = jnp.zeros((b, cout, m1, sy - 2 * m2, m3), jnp.complex64)
        row_lo = jnp.concatenate([o1, zy, o3], axis=3)            # (B,Cout,m1,sy,m3)
        row_hi = jnp.concatenate([o2, zy, o4], axis=3)
        zx = jnp.zeros((b, cout, sx - 2 * m1, sy, m3), jnp.complex64)
        blk = jnp.concatenate([row_lo, zx, row_hi], axis=2)       # (B,Cout,sx,sy,m3)
        out_ft = jnp.pad(blk, ((0, 0), (0, 0), (0, 0), (0, 0), (0, zf - m3)))
    else:  # overlapping-mode fallback (non-standard config): scatter path
        out_ft = jnp.zeros((b, cout, sx, sy, zf), jnp.complex64)
        out_ft = out_ft.at[:, :, :m1, :m2, :m3].set(o1)
        out_ft = out_ft.at[:, :, sx - m1:, :m2, :m3].set(o2)
        out_ft = out_ft.at[:, :, :m1, sy - m2:, :m3].set(o3)
        out_ft = out_ft.at[:, :, sx - m1:, sy - m2:, :m3].set(o4)

    x1 = jnp.fft.irfftn(out_ft, s=(sx, sy, sz), axes=(2, 3, 4))
    return x1.astype(jnp.float32)


# ----------------------------------------------------------------------------
# PlanePredHead: parameters + forward
# ----------------------------------------------------------------------------
def init_plane_pred_head(key, layers, modes1, modes2, modes3, fc_dim, out_dim):
    params = {"sp": [], "w": []}
    for ci, co, m1, m2, m3 in zip(layers, layers[1:], modes1, modes2, modes3):
        scale = 1.0 / (ci * co)
        wrs, wis = [], []
        for _ in range(4):
            key, k1, k2 = jax.random.split(key, 3)
            wrs.append(scale * jax.random.uniform(k1, (ci, co, m1, m2, m3), jnp.float32))
            wis.append(scale * jax.random.uniform(k2, (ci, co, m1, m2, m3), jnp.float32))
        mm = m1 * m2 * m3
        # Fuse the 4 spectral corners on the lane (mode) axis ONCE at init —
        # no per-call stack/reshape of the weights in HBM.
        wr_all = jnp.stack(wrs, axis=2).reshape(ci, co, 4 * mm)
        wi_all = jnp.stack(wis, axis=2).reshape(ci, co, 4 * mm)
        params["sp"].append((wr_all, wi_all))

        # Conv1d(k=1): weight (Cout, Cin), bias (Cout, 1) — lane-dense orientation.
        key, k1, k2 = jax.random.split(key, 3)
        bound = 1.0 / math.sqrt(ci)
        w = jax.random.uniform(k1, (co, ci), jnp.float32, -bound, bound)
        bb = jax.random.uniform(k2, (co, 1), jnp.float32, -bound, bound)
        params["w"].append((w, bb))

    # Linear layers stored in PyTorch (out_features, in_features) orientation.
    key, k1, k2 = jax.random.split(key, 3)
    bound = 1.0 / math.sqrt(layers[-1])
    params["fc1"] = (
        jax.random.uniform(k1, (fc_dim, layers[-1]), jnp.float32, -bound, bound),
        jax.random.uniform(k2, (fc_dim, 1), jnp.float32, -bound, bound),
    )
    key, k1, k2 = jax.random.split(key, 3)
    bound = 1.0 / math.sqrt(fc_dim)
    params["fc2"] = (
        jax.random.uniform(k1, (out_dim, fc_dim), jnp.float32, -bound, bound),
        jax.random.uniform(k2, (out_dim, 1), jnp.float32, -bound, bound),
    )
    return params


def plane_pred_head_forward(params, x, num_pad, re, multiplicative_net2, layers,
                            modes1, modes2, modes3, act="relu",
                            row_dtype=jnp.float32):
    """x: (B, layers[0], X, Y, Z) float32 (PyTorch NCXYZ).  Mirrors
    PlanePredHead.forward.

    row_dtype: storage dtype of the per-layer activations (and of the
    spectral-branch output x1 fed to the residual kernel).  bf16 on v6e/v7x
    halves HBM traffic of the mem-bound kernels; accumulation, bias and
    activation math stay float32.  Keep float32 on v5e / for exactness.
    """
    b, _, sx, sy, sz = x.shape
    n_layers = len(layers) - 1
    s = sx * sy * sz

    x = x.astype(row_dtype)                             # NCXYZ end-to-end

    for i in range(n_layers):
        ci, co = layers[i], layers[i + 1]
        wr_all, wi_all = params["sp"][i]
        # x1 = SpectralConv3d(x)   (FFT in plain JAX, mode mixing in Pallas)
        x1 = spectral_conv3d(x, wr_all, wi_all, modes1[i], modes2[i], modes3[i])
        # x2 = Conv1d(k=1)(x), fused with x1 + x2 (+ act) in one Pallas kernel.
        w, bias = params["w"][i]
        layer_act = act if i != n_layers - 1 else None
        y = pointwise_conv_add(x1.astype(row_dtype).reshape(b, co, s),
                               x.reshape(b, ci, s),
                               w, bias, layer_act, out_dtype=row_dtype)
        x = y.reshape(b, co, sx, sy, sz)

    # remove_padding: crop the trailing num_pad entries of the last spatial dim.
    if num_pad > 0:
        x = x[..., :-num_pad]

    # permute(0, 2, 3, 4, 1): channels-last for the external multiplicative net.
    x = jnp.transpose(x, (0, 2, 3, 4, 1))
    # TODO(synk): multiplicative_net2 is an externally supplied module (not
    # defined in pinobserver.py); here it is passed in as a callable.
    x = multiplicative_net2(x, re)

    bo, xo, yo, zo, c = x.shape
    out_dim = params["fc2"][0].shape[0]
    # Lane-dense MLP: features on sublanes, flattened rows on lanes.
    h = jnp.moveaxis(x, -1, 0).reshape(c, bo * xo * yo * zo)
    w1, b1 = params["fc1"]
    w2, b2 = params["fc2"]
    out = fused_mlp(h, w1, b1, w2, b2, act)             # (out_dim, rows) f32
    out = jnp.transpose(out, (1, 0)).reshape(bo, xo, yo, zo, out_dim)
    return out


# ----------------------------------------------------------------------------
# Demo
# ----------------------------------------------------------------------------
if __name__ == "__main__":
    layers = [4, 8, 8]
    modes1 = [4, 4]
    modes2 = [4, 4]
    modes3 = [3, 3]
    fc_dim = 32
    out_dim = 3
    act = "relu"

    B, X, Y, Z = 2, 8, 8, 8
    num_pad = 2

    key = jax.random.PRNGKey(0)
    key, kx, kr = jax.random.split(key, 3)
    x = jax.random.normal(kx, (B, layers[0], X, Y, Z), jnp.float32)
    re = jax.random.normal(kr, (B, 1), jnp.float32)

    params = init_plane_pred_head(key, layers, modes1, modes2, modes3, fc_dim, out_dim)

    # Placeholder for the externally provided multiplicative network.
    def multiplicative_net2(feat, re_in):
        # TODO(synk): external MultiplicativeNet not defined in source file; identity.
        return feat

    fwd = jax.jit(functools.partial(
        plane_pred_head_forward,
        num_pad=num_pad,
        multiplicative_net2=multiplicative_net2,
        layers=tuple(layers),
        modes1=tuple(modes1),
        modes2=tuple(modes2),
        modes3=tuple(modes3),
        act=act,
        row_dtype=_preferred_row_dtype()))   # bf16 on v6e/v7x, f32 on v5e

    out = fwd(params, x, re=re)
    out = jax.block_until_ready(out)
    assert out.shape == (B, X, Y, Z - num_pad, out_dim), out.shape
    assert bool(jnp.all(jnp.isfinite(out.astype(jnp.float32))))
    print("KERNEL_OK")
</pallas_src>

<mosaic_0001>
module attributes {stable_mosaic.version = 11 : i64} {
  func.func @_spectral_mix_kernel(%arg0: i32, %arg1: i32, %arg2: memref<1x4x192xf32, #tpu.memory_space<vmem>>, %arg3: memref<1x4x192xf32, #tpu.memory_space<vmem>>, %arg4: memref<4x8x192xf32, #tpu.memory_space<vmem>>, %arg5: memref<4x8x192xf32, #tpu.memory_space<vmem>>, %arg6: memref<1x8x192xf32, #tpu.memory_space<vmem>>, %arg7: memref<1x8x192xf32, #tpu.memory_space<vmem>>) attributes {dimension_semantics = [#tpu.dimension_semantics<parallel>, #tpu.dimension_semantics<parallel>], iteration_bounds = array<i64: 1, 2>, scalar_prefetch = 0 : i64, scratch_operands = 0 : i64, tpu.core_type = #tpu.core_type<tc>, window_params = [{transform_indices = @transform_0, window_bounds = array<i64: 1, 4, 192>}, {transform_indices = @transform_1, window_bounds = array<i64: 1, 4, 192>}, {transform_indices = @transform_2, window_bounds = array<i64: 4, 8, 192>}, {transform_indices = @transform_3, window_bounds = array<i64: 4, 8, 192>}, {transform_indices = @transform_4, window_bounds = array<i64: 1, 8, 192>}, {transform_indices = @transform_5, window_bounds = array<i64: 1, 8, 192>}]} {
    %c0 = arith.constant 0 : index
    %c0_0 = arith.constant 0 : index
    %c0_1 = arith.constant 0 : index
    %0 = vector.load %arg2[%c0, %c0_0, %c0_1] : memref<1x4x192xf32, #tpu.memory_space<vmem>>, vector<1x4x192xf32>
    %1 = vector.shape_cast %0 : vector<1x4x192xf32> to vector<4x192xf32>
    %c0_2 = arith.constant 0 : index
    %c0_3 = arith.constant 0 : index
    %c0_4 = arith.constant 0 : index
    %2 = vector.load %arg3[%c0_2, %c0_3, %c0_4] : memref<1x4x192xf32, #tpu.memory_space<vmem>>, vector<1x4x192xf32>
    %3 = vector.shape_cast %2 : vector<1x4x192xf32> to vector<4x192xf32>
    %cst = arith.constant 0.000000e+00 : f32
    %4 = vector.broadcast %cst : f32 to vector<8x192xf32>
    %cst_5 = arith.constant 0.000000e+00 : f32
    %5 = vector.broadcast %cst_5 : f32 to vector<8x192xf32>
    %6 = vector.extract_strided_slice %1 {offsets = [0, 0], sizes = [1, 192], strides = [1, 1]} : vector<4x192xf32> to vector<1x192xf32>
    %7 = vector.extract_strided_slice %3 {offsets = [0, 0], sizes = [1, 192], strides = [1, 1]} : vector<4x192xf32> to vector<1x192xf32>
    %c0_6 = arith.constant 0 : index
    %c0_7 = arith.constant 0 : index
    %c0_8 = arith.constant 0 : index
    %8 = vector.load %arg4[%c0_6, %c0_7, %c0_8] : memref<4x8x192xf32, #tpu.memory_space<vmem>>, vector<1x8x192xf32>
    %9 = vector.shape_cast %8 : vector<1x8x192xf32> to vector<8x192xf32>
    %c0_9 = arith.constant 0 : index
    %c0_10 = arith.constant 0 : index
    %c0_11 = arith.constant 0 : index
    %10 = vector.load %arg5[%c0_9, %c0_10, %c0_11] : memref<4x8x192xf32, #tpu.memory_space<vmem>>, vector<1x8x192xf32>
    %11 = vector.shape_cast %10 : vector<1x8x192xf32> to vector<8x192xf32>
    %12 = vector.broadcast %6 : vector<1x192xf32> to vector<8x192xf32>
    %13 = arith.mulf %12, %9 : vector<8x192xf32>
    %14 = arith.addf %4, %13 : vector<8x192xf32>
    %15 = vector.broadcast %7 : vector<1x192xf32> to vector<8x192xf32>
    %16 = arith.mulf %15, %11 : vector<8x192xf32>
    %17 = arith.subf %14, %16 : vector<8x192xf32>
    %18 = vector.broadcast %6 : vector<1x192xf32> to vector<8x192xf32>
    %19 = arith.mulf %18, %11 : vector<8x192xf32>
    %20 = arith.addf %5, %19 : vector<8x192xf32>
    %21 = vector.broadcast %7 : vector<1x192xf32> to vector<8x192xf32>
    %22 = arith.mulf %21, %9 : vector<8x192xf32>
    %23 = arith.addf %20, %22 : vector<8x192xf32>
    %24 = vector.extract_strided_slice %1 {offsets = [1, 0], sizes = [1, 192], strides = [1, 1]} : vector<4x192xf32> to vector<1x192xf32>
    %25 = vector.extract_strided_slice %3 {offsets = [1, 0], sizes = [1, 192], strides = [1, 1]} : vector<4x192xf32> to vector<1x192xf32>
    %c1 = arith.constant 1 : index
    %c0_12 = arith.constant 0 : index
    %c0_13 = arith.constant 0 : index
    %26 = vector.load %arg4[%c1, %c0_12, %c0_13] : memref<4x8x192xf32, #tpu.memory_space<vmem>>, vector<1x8x192xf32>
    %27 = vector.shape_cast %26 : vector<1x8x192xf32> to vector<8x192xf32>
    %c1_14 = arith.constant 1 : index
    %c0_15 = arith.constant 0 : index
    %c0_16 = arith.constant 0 : index
    %28 = vector.load %arg5[%c1_14, %c0_15, %c0_16] : memref<4x8x192xf32, #tpu.memory_space<vmem>>, vector<1x8x192xf32>
    %29 = vector.shape_cast %28 : vector<1x8x192xf32> to vector<8x192xf32>
    %30 = vector.broadcast %24 : vector<1x192xf32> to vector<8x192xf32>
    %31 = arith.mulf %30, %27 : vector<8x192xf32>
    %32 = arith.addf %17, %31 : vector<8x192xf32>
    %33 = vector.broadcast %25 : vector<1x192xf32> to vector<8x192xf32>
    %34 = arith.mulf %33, %29 : vector<8x192xf32>
    %35 = arith.subf %32, %34 : vector<8x192xf32>
    %36 = vector.broadcast %24 : vector<1x192xf32> to vector<8x192xf32>
    %37 = arith.mulf %36, %29 : vector<8x192xf32>
    %38 = arith.addf %23, %37 : vector<8x192xf32>
    %39 = vector.broadcast %25 : vector<1x192xf32> to vector<8x192xf32>
    %40 = arith.mulf %39, %27 : vector<8x192xf32>
    %41 = arith.addf %38, %40 : vector<8x192xf32>
    %42 = vector.extract_strided_slice %1 {offsets = [2, 0], sizes = [1, 192], strides = [1, 1]} : vector<4x192xf32> to vector<1x192xf32>
    %43 = vector.extract_strided_slice %3 {offsets = [2, 0], sizes = [1, 192], strides = [1, 1]} : vector<4x192xf32> to vector<1x192xf32>
    %c2 = arith.constant 2 : index
    %c0_17 = arith.constant 0 : index
    %c0_18 = arith.constant 0 : index
    %44 = vector.load %arg4[%c2, %c0_17, %c0_18] : memref<4x8x192xf32, #tpu.memory_space<vmem>>, vector<1x8x192xf32>
    %45 = vector.shape_cast %44 : vector<1x8x192xf32> to vector<8x192xf32>
    %c2_19 = arith.constant 2 : index
    %c0_20 = arith.constant 0 : index
    %c0_21 = arith.constant 0 : index
    %46 = vector.load %arg5[%c2_19, %c0_20, %c0_21] : memref<4x8x192xf32, #tpu.memory_space<vmem>>, vector<1x8x192xf32>
    %47 = vector.shape_cast %46 : vector<1x8x192xf32> to vector<8x192xf32>
    %48 = vector.broadcast %42 : vector<1x192xf32> to vector<8x192xf32>
    %49 = arith.mulf %48, %45 : vector<8x192xf32>
    %50 = arith.addf %35, %49 : vector<8x192xf32>
    %51 = vector.broadcast %43 : vector<1x192xf32> to vector<8x192xf32>
    %52 = arith.mulf %51, %47 : vector<8x192xf32>
    %53 = arith.subf %50, %52 : vector<8x192xf32>
    %54 = vector.broadcast %42 : vector<1x192xf32> to vector<8x192xf32>
    %55 = arith.mulf %54, %47 : vector<8x192xf32>
    %56 = arith.addf %41, %55 : vector<8x192xf32>
    %57 = vector.broadcast %43 : vector<1x192xf32> to vector<8x192xf32>
    %58 = arith.mulf %57, %45 : vector<8x192xf32>
    %59 = arith.addf %56, %58 : vector<8x192xf32>
    %60 = vector.extract_strided_slice %1 {offsets = [3, 0], sizes = [1, 192], strides = [1, 1]} : vector<4x192xf32> to vector<1x192xf32>
    %61 = vector.extract_strided_slice %3 {offsets = [3, 0], sizes = [1, 192], strides = [1, 1]} : vector<4x192xf32> to vector<1x192xf32>
    %c3 = arith.constant 3 : index
    %c0_22 = arith.constant 0 : index
    %c0_23 = arith.constant 0 : index
    %62 = vector.load %arg4[%c3, %c0_22, %c0_23] : memref<4x8x192xf32, #tpu.memory_space<vmem>>, vector<1x8x192xf32>
    %63 = vector.shape_cast %62 : vector<1x8x192xf32> to vector<8x192xf32>
    %c3_24 = arith.constant 3 : index
    %c0_25 = arith.constant 0 : index
    %c0_26 = arith.constant 0 : index
    %64 = vector.load %arg5[%c3_24, %c0_25, %c0_26] : memref<4x8x192xf32, #tpu.memory_space<vmem>>, vector<1x8x192xf32>
    %65 = vector.shape_cast %64 : vector<1x8x192xf32> to vector<8x192xf32>
    %66 = vector.broadcast %60 : vector<1x192xf32> to vector<8x192xf32>
    %67 = arith.mulf %66, %63 : vector<8x192xf32>
    %68 = arith.addf %53, %67 : vector<8x192xf32>
    %69 = vector.broadcast %61 : vector<1x192xf32> to vector<8x192xf32>
    %70 = arith.mulf %69, %65 : vector<8x192xf32>
    %71 = arith.subf %68, %70 : vector<8x192xf32>
    %72 = vector.broadcast %60 : vector<1x192xf32> to vector<8x192xf32>
    %73 = arith.mulf %72, %65 : vector<8x192xf32>
    %74 = arith.addf %59, %73 : vector<8x192xf32>
    %75 = vector.broadcast %61 : vector<1x192xf32> to vector<8x192xf32>
    %76 = arith.mulf %75, %63 : vector<8x192xf32>
    %77 = arith.addf %74, %76 : vector<8x192xf32>
    %c0_27 = arith.constant 0 : index
    %c0_28 = arith.constant 0 : index
    %c0_29 = arith.constant 0 : index
    %78 = vector.load %arg6[%c0_27, %c0_28, %c0_29] : memref<1x8x192xf32, #tpu.memory_space<vmem>>, vector<1x8x192xf32>
    %79 = vector.shape_cast %78 : vector<1x8x192xf32> to vector<8x192xf32>
    %80 = vector.shape_cast %71 : vector<8x192xf32> to vector<1x8x192xf32>
    tpu.vector_store %arg6[%c0_27, %c0_28, %c0_29], %80 {strides = array<i32>} : memref<1x8x192xf32, #tpu.memory_space<vmem>>, vector<1x8x192xf32>,
    %c0_30 = arith.constant 0 : index
    %c0_31 = arith.constant 0 : index
    %c0_32 = arith.constant 0 : index
    %81 = vector.load %arg7[%c0_30, %c0_31, %c0_32] : memref<1x8x192xf32, #tpu.memory_space<vmem>>, vector<1x8x192xf32>
    %82 = vector.shape_cast %81 : vector<1x8x192xf32> to vector<8x192xf32>
    %83 = vector.shape_cast %77 : vector<8x192xf32> to vector<1x8x192xf32>
    tpu.vector_store %arg7[%c0_30, %c0_31, %c0_32], %83 {strides = array<i32>} : memref<1x8x192xf32, #tpu.memory_space<vmem>>, vector<1x8x192xf32>,
    return
  }
  func.func @transform_0(%arg0: i32, %arg1: i32) -> (i32, i32, i32) {
    %c0_i32 = arith.constant 0 : i32
    %c0_i32_0 = arith.constant 0 : i32
    return %arg1, %c0_i32, %arg0 : i32, i32, i32
  }
  func.func @transform_1(%arg0: i32, %arg1: i32) -> (i32, i32, i32) {
    %c0_i32 = arith.constant 0 : i32
    %c0_i32_0 = arith.constant 0 : i32
    return %arg1, %c0_i32, %arg0 : i32, i32, i32
  }
  func.func @transform_2(%arg0: i32, %arg1: i32) -> (i32, i32, i32) {
    %c0_i32 = arith.constant 0 : i32
    %c0_i32_0 = arith.constant 0 : i32
    %c0_i32_1 = arith.constant 0 : i32
    return %c0_i32, %c0_i32_0, %arg0 : i32, i32, i32
  }
  func.func @transform_3(%arg0: i32, %arg1: i32) -> (i32, i32, i32) {
    %c0_i32 = arith.constant 0 : i32
    %c0_i32_0 = arith.constant 0 : i32
    %c0_i32_1 = arith.constant 0 : i32
    return %c0_i32, %c0_i32_0, %arg0 : i32, i32, i32
  }
  func.func @transform_4(%arg0: i32, %arg1: i32) -> (i32, i32, i32) {
    %c0_i32 = arith.constant 0 : i32
    %c0_i32_0 = arith.constant 0 : i32
    return %arg1, %c0_i32, %arg0 : i32, i32, i32
  }
  func.func @transform_5(%arg0: i32, %arg1: i32) -> (i32, i32, i32) {
    %c0_i32 = arith.constant 0 : i32
    %c0_i32_0 = arith.constant 0 : i32
    return %arg1, %c0_i32, %arg0 : i32, i32, i32
  }
}

module attributes {stable_mosaic.version = 11 : i64} {
  func.func @_residual_affine_kernel(%arg0: i32, %arg1: i32, %arg2: memref<1x8x512xf32, #tpu.memory_space<vmem>>, %arg3: memref<1x4x512xf32, #tpu.memory_space<vmem>>, %arg4: memref<8x4xf32, #tpu.memory_space<vmem>>, %arg5: memref<8x1xf32, #tpu.memory_space<vmem>>, %arg6: memref<1x8x512xf32, #tpu.memory_space<vmem>>) attributes {dimension_semantics = [#tpu.dimension_semantics<parallel>, #tpu.dimension_semantics<parallel>], iteration_bounds = array<i64: 2, 1>, scalar_prefetch = 0 : i64, scratch_operands = 0 : i64, tpu.core_type = #tpu.core_type<tc>, window_params = [{transform_indices = @transform_0, window_bounds = array<i64: 1, 8, 512>}, {transform_indices = @transform_1, window_bounds = array<i64: 1, 4, 512>}, {pipeline_mode = #tpu.pipeline_mode<synchronous>, transform_indices = @transform_2, window_bounds = array<i64: 8, 4>}, {pipeline_mode = #tpu.pipeline_mode<synchronous>, transform_indices = @transform_3, window_bounds = array<i64: 8, 1>}, {transform_indices = @transform_4, window_bounds = array<i64: 1, 8, 512>}]} {
    %c0 = arith.constant 0 : index
    %c0_0 = arith.constant 0 : index
    %c0_1 = arith.constant 0 : index
    %0 = vector.load %arg2[%c0, %c0_0, %c0_1] : memref<1x8x512xf32, #tpu.memory_space<vmem>>, vector<1x8x512xf32>
    %1 = vector.shape_cast %0 : vector<1x8x512xf32> to vector<8x512xf32>
    %c0_2 = arith.constant 0 : index
    %c0_3 = arith.constant 0 : index
    %2 = vector.load %arg4[%c0_2, %c0_3] : memref<8x4xf32, #tpu.memory_space<vmem>>, vector<8x4xf32>
    %c0_4 = arith.constant 0 : index
    %c0_5 = arith.constant 0 : index
    %c0_6 = arith.constant 0 : index
    %3 = vector.load %arg3[%c0_4, %c0_5, %c0_6] : memref<1x4x512xf32, #tpu.memory_space<vmem>>, vector<1x4x512xf32>
    %4 = vector.shape_cast %3 : vector<1x4x512xf32> to vector<4x512xf32>
    %cst = arith.constant dense<0.000000e+00> : vector<8x512xf32>
    %5 = tpu.matmul %2, %4, %cst {dimension_numbers = #tpu.dot_dimension_numbers<[1], [0], [0], [1], [0, 0, 1, 1], [], []>} : vector<8x4xf32>, vector<4x512xf32>, vector<8x512xf32> -> vector<8x512xf32>
    %6 = arith.addf %1, %5 : vector<8x512xf32>
    %c0_7 = arith.constant 0 : index
    %c0_8 = arith.constant 0 : index
    %7 = vector.load %arg5[%c0_7, %c0_8] : memref<8x1xf32, #tpu.memory_space<vmem>>, vector<8x1xf32>
    %8 = vector.broadcast %7 : vector<8x1xf32> to vector<8x512xf32>
    %9 = arith.addf %6, %8 : vector<8x512xf32>
    %cst_9 = arith.constant 0.000000e+00 : f32
    %10 = vector.broadcast %cst_9 : f32 to vector<8x512xf32>
    %11 = arith.maximumf %9, %10 : vector<8x512xf32>
    %c0_10 = arith.constant 0 : index
    %c0_11 = arith.constant 0 : index
    %c0_12 = arith.constant 0 : index
    %12 = vector.load %arg6[%c0_10, %c0_11, %c0_12] : memref<1x8x512xf32, #tpu.memory_space<vmem>>, vector<1x8x512xf32>
    %13 = vector.shape_cast %12 : vector<1x8x512xf32> to vector<8x512xf32>
    %14 = vector.shape_cast %11 : vector<8x512xf32> to vector<1x8x512xf32>
    tpu.vector_store %arg6[%c0_10, %c0_11, %c0_12], %14 {strides = array<i32>} : memref<1x8x512xf32, #tpu.memory_space<vmem>>, vector<1x8x512xf32>,
    return
  }
  func.func @transform_0(%arg0: i32, %arg1: i32) -> (i32, i32, i32) {
    %c0_i32 = arith.constant 0 : i32
    %c0_i32_0 = arith.constant 0 : i32
    return %arg0, %c0_i32, %arg1 : i32, i32, i32
  }
  func.func @transform_1(%arg0: i32, %arg1: i32) -> (i32, i32, i32) {
    %c0_i32 = arith.constant 0 : i32
    %c0_i32_0 = arith.constant 0 : i32
    return %arg0, %c0_i32, %arg1 : i32, i32, i32
  }
  func.func @transform_2(%arg0: i32, %arg1: i32) -> (i32, i32) {
    %c0_i32 = arith.constant 0 : i32
    %c0_i32_0 = arith.constant 0 : i32
    %c0_i32_1 = arith.constant 0 : i32
    return %c0_i32, %c0_i32_0 : i32, i32
  }
  func.func @transform_3(%arg0: i32, %arg1: i32) -> (i32, i32) {
    %c0_i32 = arith.constant 0 : i32
    %c0_i32_0 = arith.constant 0 : i32
    %c0_i32_1 = arith.constant 0 : i32
    return %c0_i32, %c0_i32_0 : i32, i32
  }
  func.func @transform_4(%arg0: i32, %arg1: i32) -> (i32, i32, i32) {
    %c0_i32 = arith.constant 0 : i32
    %c0_i32_0 = arith.constant 0 : i32
    return %arg0, %c0_i32, %arg1 : i32, i32, i32
  }
}

module attributes {stable_mosaic.version = 11 : i64} {
  func.func @_spectral_mix_kernel(%arg0: i32, %arg1: i32, %arg2: memref<1x8x192xf32, #tpu.memory_space<vmem>>, %arg3: memref<1x8x192xf32, #tpu.memory_space<vmem>>, %arg4: memref<8x8x192xf32, #tpu.memory_space<vmem>>, %arg5: memref<8x8x192xf32, #tpu.memory_space<vmem>>, %arg6: memref<1x8x192xf32, #tpu.memory_space<vmem>>, %arg7: memref<1x8x192xf32, #tpu.memory_space<vmem>>) attributes {dimension_semantics = [#tpu.dimension_semantics<parallel>, #tpu.dimension_semantics<parallel>], iteration_bounds = array<i64: 1, 2>, scalar_prefetch = 0 : i64, scratch_operands = 0 : i64, tpu.core_type = #tpu.core_type<tc>, window_params = [{transform_indices = @transform_0, window_bounds = array<i64: 1, 8, 192>}, {transform_indices = @transform_1, window_bounds = array<i64: 1, 8, 192>}, {transform_indices = @transform_2, window_bounds = array<i64: 8, 8, 192>}, {transform_indices = @transform_3, window_bounds = array<i64: 8, 8, 192>}, {transform_indices = @transform_4, window_bounds = array<i64: 1, 8, 192>}, {transform_indices = @transform_5, window_bounds = array<i64: 1, 8, 192>}]} {
    %c0 = arith.constant 0 : index
    %c0_0 = arith.constant 0 : index
    %c0_1 = arith.constant 0 : index
    %0 = vector.load %arg2[%c0, %c0_0, %c0_1] : memref<1x8x192xf32, #tpu.memory_space<vmem>>, vector<1x8x192xf32>
    %1 = vector.shape_cast %0 : vector<1x8x192xf32> to vector<8x192xf32>
    %c0_2 = arith.constant 0 : index
    %c0_3 = arith.constant 0 : index
    %c0_4 = arith.constant 0 : index
    %2 = vector.load %arg3[%c0_2, %c0_3, %c0_4] : memref<1x8x192xf32, #tpu.memory_space<vmem>>, vector<1x8x192xf32>
    %3 = vector.shape_cast %2 : vector<1x8x192xf32> to vector<8x192xf32>
    %cst = arith.constant 0.000000e+00 : f32
    %4 = vector.broadcast %cst : f32 to vector<8x192xf32>
    %cst_5 = arith.constant 0.000000e+00 : f32
    %5 = vector.broadcast %cst_5 : f32 to vector<8x192xf32>
    %6 = vector.extract_strided_slice %1 {offsets = [0, 0], sizes = [1, 192], strides = [1, 1]} : vector<8x192xf32> to vector<1x192xf32>
    %7 = vector.extract_strided_slice %3 {offsets = [0, 0], sizes = [1, 192], strides = [1, 1]} : vector<8x192xf32> to vector<1x192xf32>
    %c0_6 = arith.constant 0 : index
    %c0_7 = arith.constant 0 : index
    %c0_8 = arith.constant 0 : index
    %8 = vector.load %arg4[%c0_6, %c0_7, %c0_8] : memref<8x8x192xf32, #tpu.memory_space<vmem>>, vector<1x8x192xf32>
    %9 = vector.shape_cast %8 : vector<1x8x192xf32> to vector<8x192xf32>
    %c0_9 = arith.constant 0 : index
    %c0_10 = arith.constant 0 : index
    %c0_11 = arith.constant 0 : index
    %10 = vector.load %arg5[%c0_9, %c0_10, %c0_11] : memref<8x8x192xf32, #tpu.memory_space<vmem>>, vector<1x8x192xf32>
    %11 = vector.shape_cast %10 : vector<1x8x192xf32> to vector<8x192xf32>
    %12 = vector.broadcast %6 : vector<1x192xf32> to vector<8x192xf32>
    %13 = arith.mulf %12, %9 : vector<8x192xf32>
    %14 = arith.addf %4, %13 : vector<8x192xf32>
    %15 = vector.broadcast %7 : vector<1x192xf32> to vector<8x192xf32>
    %16 = arith.mulf %15, %11 : vector<8x192xf32>
    %17 = arith.subf %14, %16 : vector<8x192xf32>
    %18 = vector.broadcast %6 : vector<1x192xf32> to vector<8x192xf32>
    %19 = arith.mulf %18, %11 : vector<8x192xf32>
    %20 = arith.addf %5, %19 : vector<8x192xf32>
    %21 = vector.broadcast %7 : vector<1x192xf32> to vector<8x192xf32>
    %22 = arith.mulf %21, %9 : vector<8x192xf32>
    %23 = arith.addf %20, %22 : vector<8x192xf32>
    %24 = vector.extract_strided_slice %1 {offsets = [1, 0], sizes = [1, 192], strides = [1, 1]} : vector<8x192xf32> to vector<1x192xf32>
    %25 = vector.extract_strided_slice %3 {offsets = [1, 0], sizes = [1, 192], strides = [1, 1]} : vector<8x192xf32> to vector<1x192xf32>
    %c1 = arith.constant 1 : index
    %c0_12 = arith.constant 0 : index
    %c0_13 = arith.constant 0 : index
    %26 = vector.load %arg4[%c1, %c0_12, %c0_13] : memref<8x8x192xf32, #tpu.memory_space<vmem>>, vector<1x8x192xf32>
    %27 = vector.shape_cast %26 : vector<1x8x192xf32> to vector<8x192xf32>
    %c1_14 = arith.constant 1 : index
    %c0_15 = arith.constant 0 : index
    %c0_16 = arith.constant 0 : index
    %28 = vector.load %arg5[%c1_14, %c0_15, %c0_16] : memref<8x8x192xf32, #tpu.memory_space<vmem>>, vector<1x8x192xf32>
    %29 = vector.shape_cast %28 : vector<1x8x192xf32> to vector<8x192xf32>
    %30 = vector.broadcast %24 : vector<1x192xf32> to vector<8x192xf32>
    %31 = arith.mulf %30, %27 : vector<8x192xf32>
    %32 = arith.addf %17, %31 : vector<8x192xf32>
    %33 = vector.broadcast %25 : vector<1x192xf32> to vector<8x192xf32>
    %34 = arith.mulf %33, %29 : vector<8x192xf32>
    %35 = arith.subf %32, %34 : vector<8x192xf32>
    %36 = vector.broadcast %24 : vector<1x192xf32> to vector<8x192xf32>
    %37 = arith.mulf %36, %29 : vector<8x192xf32>
    %38 = arith.addf %23, %37 : vector<8x192xf32>
    %39 = vector.broadcast %25 : vector<1x192xf32> to vector<8x192xf32>
    %40 = arith.mulf %39, %27 : vector<8x192xf32>
    %41 = arith.addf %38, %40 : vector<8x192xf32>
    %42 = vector.extract_strided_slice %1 {offsets = [2, 0], sizes = [1, 192], strides = [1, 1]} : vector<8x192xf32> to vector<1x192xf32>
    %43 = vector.extract_strided_slice %3 {offsets = [2, 0], sizes = [1, 192], strides = [1, 1]} : vector<8x192xf32> to vector<1x192xf32>
    %c2 = arith.constant 2 : index
    %c0_17 = arith.constant 0 : index
    %c0_18 = arith.constant 0 : index
    %44 = vector.load %arg4[%c2, %c0_17, %c0_18] : memref<8x8x192xf32, #tpu.memory_space<vmem>>, vector<1x8x192xf32>
    %45 = vector.shape_cast %44 : vector<1x8x192xf32> to vector<8x192xf32>
    %c2_19 = arith.constant 2 : index
    %c0_20 = arith.constant 0 : index
    %c0_21 = arith.constant 0 : index
    %46 = vector.load %arg5[%c2_19, %c0_20, %c0_21] : memref<8x8x192xf32, #tpu.memory_space<vmem>>, vector<1x8x192xf32>
    %47 = vector.shape_cast %46 : vector<1x8x192xf32> to vector<8x192xf32>
    %48 = vector.broadcast %42 : vector<1x192xf32> to vector<8x192xf32>
    %49 = arith.mulf %48, %45 : vector<8x192xf32>
    %50 = arith.addf %35, %49 : vector<8x192xf32>
    %51 = vector.broadcast %43 : vector<1x192xf32> to vector<8x192xf32>
    %52 = arith.mulf %51, %47 : vector<8x192xf32>
    %53 = arith.subf %50, %52 : vector<8x192xf32>
    %54 = vector.broadcast %42 : vector<1x192xf32> to vector<8x192xf32>
    %55 = arith.mulf %54, %47 : vector<8x192xf32>
    %56 = arith.addf %41, %55 : vector<8x192xf32>
    %57 = vector.broadcast %43 : vector<1x192xf32> to vector<8x192xf32>
    %58 = arith.mulf %57, %45 : vector<8x192xf32>
    %59 = arith.addf %56, %58 : vector<8x192xf32>
    %60 = vector.extract_strided_slice %1 {offsets = [3, 0], sizes = [1, 192], strides = [1, 1]} : vector<8x192xf32> to vector<1x192xf32>
    %61 = vector.extract_strided_slice %3 {offsets = [3, 0], sizes = [1, 192], strides = [1, 1]} : vector<8x192xf32> to vector<1x192xf32>
    %c3 = arith.constant 3 : index
    %c0_22 = arith.constant 0 : index
    %c0_23 = arith.constant 0 : index
    %62 = vector.load %arg4[%c3, %c0_22, %c0_23] : memref<8x8x192xf32, #tpu.memory_space<vmem>>, vector<1x8x192xf32>
    %63 = vector.shape_cast %62 : vector<1x8x192xf32> to vector<8x192xf32>
    %c3_24 = arith.constant 3 : index
    %c0_25 = arith.constant 0 : index
    %c0_26 = arith.constant 0 : index
    %64 = vector.load %arg5[%c3_24, %c0_25, %c0_26] : memref<8x8x192xf32, #tpu.memory_space<vmem>>, vector<1x8x192xf32>
    %65 = vector.shape_cast %64 : vector<1x8x192xf32> to vector<8x192xf32>
    %66 = vector.broadcast %60 : vector<1x192xf32> to vector<8x192xf32>
    %67 = arith.mulf %66, %63 : vector<8x192xf32>
    %68 = arith.addf %53, %67 : vector<8x192xf32>
    %69 = vector.broadcast %61 : vector<1x192xf32> to vector<8x192xf32>
    %70 = arith.mulf %69, %65 : vector<8x192xf32>
    %71 = arith.subf %68, %70 : vector<8x192xf32>
    %72 = vector.broadcast %60 : vector<1x192xf32> to vector<8x192xf32>
    %73 = arith.mulf %72, %65 : vector<8x192xf32>
    %74 = arith.addf %59, %73 : vector<8x192xf32>
    %75 = vector.broadcast %61 : vector<1x192xf32> to vector<8x192xf32>
    %76 = arith.mulf %75, %63 : vector<8x192xf32>
    %77 = arith.addf %74, %76 : vector<8x192xf32>
    %78 = vector.extract_strided_slice %1 {offsets = [4, 0], sizes = [1, 192], strides = [1, 1]} : vector<8x192xf32> to vector<1x192xf32>
    %79 = vector.extract_strided_slice %3 {offsets = [4, 0], sizes = [1, 192], strides = [1, 1]} : vector<8x192xf32> to vector<1x192xf32>
    %c4 = arith.constant 4 : index
    %c0_27 = arith.constant 0 : index
    %c0_28 = arith.constant 0 : index
    %80 = vector.load %arg4[%c4, %c0_27, %c0_28] : memref<8x8x192xf32, #tpu.memory_space<vmem>>, vector<1x8x192xf32>
    %81 = vector.shape_cast %80 : vector<1x8x192xf32> to vector<8x192xf32>
    %c4_29 = arith.constant 4 : index
    %c0_30 = arith.constant 0 : index
    %c0_31 = arith.constant 0 : index
    %82 = vector.load %arg5[%c4_29, %c0_30, %c0_31] : memref<8x8x192xf32, #tpu.memory_space<vmem>>, vector<1x8x192xf32>
    %83 = vector.shape_cast %82 : vector<1x8x192xf32> to vector<8x192xf32>
    %84 = vector.broadcast %78 : vector<1x192xf32> to vector<8x192xf32>
    %85 = arith.mulf %84, %81 : vector<8x192xf32>
    %86 = arith.addf %71, %85 : vector<8x192xf32>
    %87 = vector.broadcast %79 : vector<1x192xf32> to vector<8x192xf32>
    %88 = arith.mulf %87, %83 : vector<8x192xf32>
    %89 = arith.subf %86, %88 : vector<8x192xf32>
    %90 = vector.broadcast %78 : vector<1x192xf32> to vector<8x192xf32>
    %91 = arith.mulf %90, %83 : vector<8x192xf32>
    %92 = arith.addf %77, %91 : vector<8x192xf32>
    %93 = vector.broadcast %79 : vector<1x192xf32> to vector<8x192xf32>
    %94 = arith.mulf %93, %81 : vector<8x192xf32>
    %95 = arith.addf %92, %94 : vector<8x192xf32>
    %96 = vector.extract_strided_slice %1 {offsets = [5, 0], sizes = [1, 192], strides = [1, 1]} : vector<8x192xf32> to vector<1x192xf32>
    %97 = vector.extract_strided_slice %3 {offsets = [5, 0], sizes = [1, 192], strides = [1, 1]} : vector<8x192xf32> to vector<1x192xf32>
    %c5 = arith.constant 5 : index
    %c0_32 = arith.constant 0 : index
    %c0_33 = arith.constant 0 : index
    %98 = vector.load %arg4[%c5, %c0_32, %c0_33] : memref<8x8x192xf32, #tpu.memory_space<vmem>>, vector<1x8x192xf32>
    %99 = vector.shape_cast %98 : vector<1x8x192xf32> to vector<8x192xf32>
    %c5_34 = arith.constant 5 : index
    %c0_35 = arith.constant 0 : index
    %c0_36 = arith.constant 0 : index
    %100 = vector.load %arg5[%c5_34, %c0_35, %c0_36] : memref<8x8x192xf32, #tpu.memory_space<vmem>>, vector<1x8x192xf32>
    %101 = vector.shape_cast %100 : vector<1x8x192xf32> to vector<8x192xf32>
    %102 = vector.broadcast %96 : vector<1x192xf32> to vector<8x192xf32>
    %103 = arith.mulf %102, %99 : vector<8x192xf32>
    %104 = arith.addf %89, %103 : vector<8x192xf32>
    %105 = vector.broadcast %97 : vector<1x192xf32> to vector<8x192xf32>
    %106 = arith.mulf %105, %101 : vector<8x192xf32>
    %107 = arith.subf %104, %106 : vector<8x192xf32>
    %108 = vector.broadcast %96 : vector<1x192xf32> to vector<8x192xf32>
    %109 = arith.mulf %108, %101 : vector<8x192xf32>
    %110 = arith.addf %95, %109 : vector<8x192xf32>
    %111 = vector.broadcast %97 : vector<1x192xf32> to vector<8x192xf32>
    %112 = arith.mulf %111, %99 : vector<8x192xf32>
    %113 = arith.addf %110, %112 : vector<8x192xf32>
    %114 = vector.extract_strided_slice %1 {offsets = [6, 0], sizes = [1, 192], strides = [1, 1]} : vector<8x192xf32> to vector<1x192xf32>
    %115 = vector.extract_strided_slice %3 {offsets = [6, 0], sizes = [1, 192], strides = [1, 1]} : vector<8x192xf32> to vector<1x192xf32>
    %c6 = arith.constant 6 : index
    %c0_37 = arith.constant 0 : index
    %c0_38 = arith.constant 0 : index
    %116 = vector.load %arg4[%c6, %c0_37, %c0_38] : memref<8x8x192xf32, #tpu.memory_space<vmem>>, vector<1x8x192xf32>
    %117 = vector.shape_cast %116 : vector<1x8x192xf32> to vector<8x192xf32>
    %c6_39 = arith.constant 6 : index
    %c0_40 = arith.constant 0 : index
    %c0_41 = arith.constant 0 : index
    %118 = vector.load %arg5[%c6_39, %c0_40, %c0_41] : memref<8x8x192xf32, #tpu.memory_space<vmem>>, vector<1x8x192xf32>
    %119 = vector.shape_cast %118 : vector<1x8x192xf32> to vector<8x192xf32>
    %120 = vector.broadcast %114 : vector<1x192xf32> to vector<8x192xf32>
    %121 = arith.mulf %120, %117 : vector<8x192xf32>
    %122 = arith.addf %107, %121 : vector<8x192xf32>
    %123 = vector.broadcast %115 : vector<1x192xf32> to vector<8x192xf32>
    %124 = arith.mulf %123, %119 : vector<8x192xf32>
    %125 = arith.subf %122, %124 : vector<8x192xf32>
    %126 = vector.broadcast %114 : vector<1x192xf32> to vector<8x192xf32>
    %127 = arith.mulf %126, %119 : vector<8x192xf32>
    %128 = arith.addf %113, %127 : vector<8x192xf32>
    %129 = vector.broadcast %115 : vector<1x192xf32> to vector<8x192xf32>
    %130 = arith.mulf %129, %117 : vector<8x192xf32>
    %131 = arith.addf %128, %130 : vector<8x192xf32>
    %132 = vector.extract_strided_slice %1 {offsets = [7, 0], sizes = [1, 192], strides = [1, 1]} : vector<8x192xf32> to vector<1x192xf32>
    %133 = vector.extract_strided_slice %3 {offsets = [7, 0], sizes = [1, 192], strides = [1, 1]} : vector<8x192xf32> to vector<1x192xf32>
    %c7 = arith.constant 7 : index
    %c0_42 = arith.constant 0 : index
    %c0_43 = arith.constant 0 : index
    %134 = vector.load %arg4[%c7, %c0_42, %c0_43] : memref<8x8x192xf32, #tpu.memory_space<vmem>>, vector<1x8x192xf32>
    %135 = vector.shape_cast %134 : vector<1x8x192xf32> to vector<8x192xf32>
    %c7_44 = arith.constant 7 : index
    %c0_45 = arith.constant 0 : index
    %c0_46 = arith.constant 0 : index
    %136 = vector.load %arg5[%c7_44, %c0_45, %c0_46] : memref<8x8x192xf32, #tpu.memory_space<vmem>>, vector<1x8x192xf32>
    %137 = vector.shape_cast %136 : vector<1x8x192xf32> to vector<8x192xf32>
    %138 = vector.broadcast %132 : vector<1x192xf32> to vector<8x192xf32>
    %139 = arith.mulf %138, %135 : vector<8x192xf32>
    %140 = arith.addf %125, %139 : vector<8x192xf32>
    %141 = vector.broadcast %133 : vector<1x192xf32> to vector<8x192xf32>
    %142 = arith.mulf %141, %137 : vector<8x192xf32>
    %143 = arith.subf %140, %142 : vector<8x192xf32>
    %144 = vector.broadcast %132 : vector<1x192xf32> to vector<8x192xf32>
    %145 = arith.mulf %144, %137 : vector<8x192xf32>
    %146 = arith.addf %131, %145 : vector<8x192xf32>
    %147 = vector.broadcast %133 : vector<1x192xf32> to vector<8x192xf32>
    %148 = arith.mulf %147, %135 : vector<8x192xf32>
    %149 = arith.addf %146, %148 : vector<8x192xf32>
    %c0_47 = arith.constant 0 : index
    %c0_48 = arith.constant 0 : index
    %c0_49 = arith.constant 0 : index
    %150 = vector.load %arg6[%c0_47, %c0_48, %c0_49] : memref<1x8x192xf32, #tpu.memory_space<vmem>>, vector<1x8x192xf32>
    %151 = vector.shape_cast %150 : vector<1x8x192xf32> to vector<8x192xf32>
    %152 = vector.shape_cast %143 : vector<8x192xf32> to vector<1x8x192xf32>
    tpu.vector_store %arg6[%c0_47, %c0_48, %c0_49], %152 {strides = array<i32>} : memref<1x8x192xf32, #tpu.memory_space<vmem>>, vector<1x8x192xf32>,
    %c0_50 = arith.constant 0 : index
    %c0_51 = arith.constant 0 : index
    %c0_52 = arith.constant 0 : index
    %153 = vector.load %arg7[%c0_50, %c0_51, %c0_52] : memref<1x8x192xf32, #tpu.memory_space<vmem>>, vector<1x8x192xf32>
    %154 = vector.shape_cast %153 : vector<1x8x192xf32> to vector<8x192xf32>
    %155 = vector.shape_cast %149 : vector<8x192xf32> to vector<1x8x192xf32>
    tpu.vector_store %arg7[%c0_50, %c0_51, %c0_52], %155 {strides = array<i32>} : memref<1x8x192xf32, #tpu.memory_space<vmem>>, vector<1x8x192xf32>,
    return
  }
  func.func @transform_0(%arg0: i32, %arg1: i32) -> (i32, i32, i32) {
    %c0_i32 = arith.constant 0 : i32
    %c0_i32_0 = arith.constant 0 : i32
    return %arg1, %c0_i32, %arg0 : i32, i32, i32
  }
  func.func @transform_1(%arg0: i32, %arg1: i32) -> (i32, i32, i32) {
    %c0_i32 = arith.constant 0 : i32
    %c0_i32_0 = arith.constant 0 : i32
    return %arg1, %c0_i32, %arg0 : i32, i32, i32
  }
  func.func @transform_2(%arg0: i32, %arg1: i32) -> (i32, i32, i32) {
    %c0_i32 = arith.constant 0 : i32
    %c0_i32_0 = arith.constant 0 : i32
    %c0_i32_1 = arith.constant 0 : i32
    return %c0_i32, %c0_i32_0, %arg0 : i32, i32, i32
  }
  func.func @transform_3(%arg0: i32, %arg1: i32) -> (i32, i32, i32) {
    %c0_i32 = arith.constant 0 : i32
    %c0_i32_0 = arith.constant 0 : i32
    %c0_i32_1 = arith.constant 0 : i32
    return %c0_i32, %c0_i32_0, %arg0 : i32, i32, i32
  }
  func.func @transform_4(%arg0: i32, %arg1: i32) -> (i32, i32, i32) {
    %c0_i32 = arith.constant 0 : i32
    %c0_i32_0 = arith.constant 0 : i32
    return %arg1, %c0_i32, %arg0 : i32, i32, i32
  }
  func.func @transform_5(%arg0: i32, %arg1: i32) -> (i32, i32, i32) {
    %c0_i32 = arith.constant 0 : i32
    %c0_i32_0 = arith.constant 0 : i32
    return %arg1, %c0_i32, %arg0 : i32, i32, i32
  }
}

module attributes {stable_mosaic.version = 11 : i64} {
  func.func @_residual_affine_kernel(%arg0: i32, %arg1: i32, %arg2: memref<1x8x512xf32, #tpu.memory_space<vmem>>, %arg3: memref<1x8x512xf32, #tpu.memory_space<vmem>>, %arg4: memref<8x8xf32, #tpu.memory_space<vmem>>, %arg5: memref<8x1xf32, #tpu.memory_space<vmem>>, %arg6: memref<1x8x512xf32, #tpu.memory_space<vmem>>) attributes {dimension_semantics = [#tpu.dimension_semantics<parallel>, #tpu.dimension_semantics<parallel>], iteration_bounds = array<i64: 2, 1>, scalar_prefetch = 0 : i64, scratch_operands = 0 : i64, tpu.core_type = #tpu.core_type<tc>, window_params = [{transform_indices = @transform_0, window_bounds = array<i64: 1, 8, 512>}, {transform_indices = @transform_1, window_bounds = array<i64: 1, 8, 512>}, {pipeline_mode = #tpu.pipeline_mode<synchronous>, transform_indices = @transform_2, window_bounds = array<i64: 8, 8>}, {pipeline_mode = #tpu.pipeline_mode<synchronous>, transform_indices = @transform_3, window_bounds = array<i64: 8, 1>}, {transform_indices = @transform_4, window_bounds = array<i64: 1, 8, 512>}]} {
    %c0 = arith.constant 0 : index
    %c0_0 = arith.constant 0 : index
    %c0_1 = arith.constant 0 : index
    %0 = vector.load %arg2[%c0, %c0_0, %c0_1] : memref<1x8x512xf32, #tpu.memory_space<vmem>>, vector<1x8x512xf32>
    %1 = vector.shape_cast %0 : vector<1x8x512xf32> to vector<8x512xf32>
    %c0_2 = arith.constant 0 : index
    %c0_3 = arith.constant 0 : index
    %2 = vector.load %arg4[%c0_2, %c0_3] : memref<8x8xf32, #tpu.memory_space<vmem>>, vector<8x8xf32>
    %c0_4 = arith.constant 0 : index
    %c0_5 = arith.constant 0 : index
    %c0_6 = arith.constant 0 : index
    %3 = vector.load %arg3[%c0_4, %c0_5, %c0_6] : memref<1x8x512xf32, #tpu.memory_space<vmem>>, vector<1x8x512xf32>
    %4 = vector.shape_cast %3 : vector<1x8x512xf32> to vector<8x512xf32>
    %cst = arith.constant dense<0.000000e+00> : vector<8x512xf32>
    %5 = tpu.matmul %2, %4, %cst {dimension_numbers = #tpu.dot_dimension_numbers<[1], [0], [0], [1], [0, 0, 1, 1], [], []>} : vector<8x8xf32>, vector<8x512xf32>, vector<8x512xf32> -> vector<8x512xf32>
    %6 = arith.addf %1, %5 : vector<8x512xf32>
    %c0_7 = arith.constant 0 : index
    %c0_8 = arith.constant 0 : index
    %7 = vector.load %arg5[%c0_7, %c0_8] : memref<8x1xf32, #tpu.memory_space<vmem>>, vector<8x1xf32>
    %8 = vector.broadcast %7 : vector<8x1xf32> to vector<8x512xf32>
    %9 = arith.addf %6, %8 : vector<8x512xf32>
    %c0_9 = arith.constant 0 : index
    %c0_10 = arith.constant 0 : index
    %c0_11 = arith.constant 0 : index
    %10 = vector.load %arg6[%c0_9, %c0_10, %c0_11] : memref<1x8x512xf32, #tpu.memory_space<vmem>>, vector<1x8x512xf32>
    %11 = vector.shape_cast %10 : vector<1x8x512xf32> to vector<8x512xf32>
    %12 = vector.shape_cast %9 : vector<8x512xf32> to vector<1x8x512xf32>
    tpu.vector_store %arg6[%c0_9, %c0_10, %c0_11], %12 {strides = array<i32>} : memref<1x8x512xf32, #tpu.memory_space<vmem>>, vector<1x8x512xf32>,
    return
  }
  func.func @transform_0(%arg0: i32, %arg1: i32) -> (i32, i32, i32) {
    %c0_i32 = arith.constant 0 : i32
    %c0_i32_0 = arith.constant 0 : i32
    return %arg0, %c0_i32, %arg1 : i32, i32, i32
  }
  func.func @transform_1(%arg0: i32, %arg1: i32) -> (i32, i32, i32) {
    %c0_i32 = arith.constant 0 : i32
    %c0_i32_0 = arith.constant 0 : i32
    return %arg0, %c0_i32, %arg1 : i32, i32, i32
  }
  func.func @transform_2(%arg0: i32, %arg1: i32) -> (i32, i32) {
    %c0_i32 = arith.constant 0 : i32
    %c0_i32_0 = arith.constant 0 : i32
    %c0_i32_1 = arith.constant 0 : i32
    return %c0_i32, %c0_i32_0 : i32, i32
  }
  func.func @transform_3(%arg0: i32, %arg1: i32) -> (i32, i32) {
    %c0_i32 = arith.constant 0 : i32
    %c0_i32_0 = arith.constant 0 : i32
    %c0_i32_1 = arith.constant 0 : i32
    return %c0_i32, %c0_i32_0 : i32, i32
  }
  func.func @transform_4(%arg0: i32, %arg1: i32) -> (i32, i32, i32) {
    %c0_i32 = arith.constant 0 : i32
    %c0_i32_0 = arith.constant 0 : i32
    return %arg0, %c0_i32, %arg1 : i32, i32, i32
  }
}

module attributes {stable_mosaic.version = 11 : i64} {
  func.func @_mlp_kernel(%arg0: i32, %arg1: memref<8x384xf32, #tpu.memory_space<vmem>>, %arg2: memref<32x8xf32, #tpu.memory_space<vmem>>, %arg3: memref<32x1xf32, #tpu.memory_space<vmem>>, %arg4: memref<3x32xf32, #tpu.memory_space<vmem>>, %arg5: memref<3x1xf32, #tpu.memory_space<vmem>>, %arg6: memref<3x384xf32, #tpu.memory_space<vmem>>) attributes {dimension_semantics = [#tpu.dimension_semantics<parallel>], iteration_bounds = array<i64: 2>, scalar_prefetch = 0 : i64, scratch_operands = 0 : i64, tpu.core_type = #tpu.core_type<tc>, window_params = [{transform_indices = @transform_0, window_bounds = array<i64: 8, 384>}, {pipeline_mode = #tpu.pipeline_mode<synchronous>, transform_indices = @transform_1, window_bounds = array<i64: 32, 8>}, {pipeline_mode = #tpu.pipeline_mode<synchronous>, transform_indices = @transform_2, window_bounds = array<i64: 32, 1>}, {pipeline_mode = #tpu.pipeline_mode<synchronous>, transform_indices = @transform_3, window_bounds = array<i64: 3, 32>}, {pipeline_mode = #tpu.pipeline_mode<synchronous>, transform_indices = @transform_4, window_bounds = array<i64: 3, 1>}, {transform_indices = @transform_5, window_bounds = array<i64: 3, 384>}]} {
    %c0 = arith.constant 0 : index
    %c0_0 = arith.constant 0 : index
    %0 = vector.load %arg2[%c0, %c0_0] : memref<32x8xf32, #tpu.memory_space<vmem>>, vector<32x8xf32>
    %c0_1 = arith.constant 0 : index
    %c0_2 = arith.constant 0 : index
    %1 = vector.load %arg1[%c0_1, %c0_2] : memref<8x384xf32, #tpu.memory_space<vmem>>, vector<8x384xf32>
    %cst = arith.constant dense<0.000000e+00> : vector<32x384xf32>
    %2 = tpu.matmul %0, %1, %cst {dimension_numbers = #tpu.dot_dimension_numbers<[1], [0], [0], [1], [0, 0, 1, 1], [], []>} : vector<32x8xf32>, vector<8x384xf32>, vector<32x384xf32> -> vector<32x384xf32>
    %c0_3 = arith.constant 0 : index
    %c0_4 = arith.constant 0 : index
    %3 = vector.load %arg3[%c0_3, %c0_4] : memref<32x1xf32, #tpu.memory_space<vmem>>, vector<32x1xf32>
    %4 = vector.broadcast %3 : vector<32x1xf32> to vector<32x384xf32>
    %5 = arith.addf %2, %4 : vector<32x384xf32>
    %cst_5 = arith.constant 0.000000e+00 : f32
    %6 = vector.broadcast %cst_5 : f32 to vector<32x384xf32>
    %7 = arith.maximumf %5, %6 : vector<32x384xf32>
    %c0_6 = arith.constant 0 : index
    %c0_7 = arith.constant 0 : index
    %8 = vector.load %arg4[%c0_6, %c0_7] : memref<3x32xf32, #tpu.memory_space<vmem>>, vector<3x32xf32>
    %cst_8 = arith.constant dense<0.000000e+00> : vector<3x384xf32>
    %9 = tpu.matmul %8, %7, %cst_8 {dimension_numbers = #tpu.dot_dimension_numbers<[1], [0], [0], [1], [0, 0, 1, 1], [], []>} : vector<3x32xf32>, vector<32x384xf32>, vector<3x384xf32> -> vector<3x384xf32>
    %c0_9 = arith.constant 0 : index
    %c0_10 = arith.constant 0 : index
    %10 = vector.load %arg5[%c0_9, %c0_10] : memref<3x1xf32, #tpu.memory_space<vmem>>, vector<3x1xf32>
    %11 = vector.broadcast %10 : vector<3x1xf32> to vector<3x384xf32>
    %12 = arith.addf %9, %11 : vector<3x384xf32>
    %c0_11 = arith.constant 0 : index
    %c0_12 = arith.constant 0 : index
    %13 = vector.load %arg6[%c0_11, %c0_12] : memref<3x384xf32, #tpu.memory_space<vmem>>, vector<3x384xf32>
    tpu.vector_store %arg6[%c0_11, %c0_12], %12 {strides = array<i32>} : memref<3x384xf32, #tpu.memory_space<vmem>>, vector<3x384xf32>,
    return
  }
  func.func @transform_0(%arg0: i32) -> (i32, i32) {
    %c0_i32 = arith.constant 0 : i32
    %c0_i32_0 = arith.constant 0 : i32
    return %c0_i32, %arg0 : i32, i32
  }
  func.func @transform_1(%arg0: i32) -> (i32, i32) {
    %c0_i32 = arith.constant 0 : i32
    %c0_i32_0 = arith.constant 0 : i32
    %c0_i32_1 = arith.constant 0 : i32
    return %c0_i32, %c0_i32_0 : i32, i32
  }
  func.func @transform_2(%arg0: i32) -> (i32, i32) {
    %c0_i32 = arith.constant 0 : i32
    %c0_i32_0 = arith.constant 0 : i32
    %c0_i32_1 = arith.constant 0 : i32
    return %c0_i32, %c0_i32_0 : i32, i32
  }
  func.func @transform_3(%arg0: i32) -> (i32, i32) {
    %c0_i32 = arith.constant 0 : i32
    %c0_i32_0 = arith.constant 0 : i32
    %c0_i32_1 = arith.constant 0 : i32
    return %c0_i32, %c0_i32_0 : i32, i32
  }
  func.func @transform_4(%arg0: i32) -> (i32, i32) {
    %c0_i32 = arith.constant 0 : i32
    %c0_i32_0 = arith.constant 0 : i32
    %c0_i32_1 = arith.constant 0 : i32
    return %c0_i32, %c0_i32_0 : i32, i32
  }
  func.func @transform_5(%arg0: i32) -> (i32, i32) {
    %c0_i32 = arith.constant 0 : i32
    %c0_i32_0 = arith.constant 0 : i32
    return %c0_i32, %arg0 : i32, i32
  }
}

</mosaic_0001>

<llo_original>
// kernel: plane_pred_head_forward.5
$region0: #{plane_pred_head_forward.5}
  #allocation0 [shape = 'u32[]', space=smem, size = 0x4, offset = 0x4, fixed_abs, tag = 'smem constant byte address 0x4 - core index']
  #allocation1 [shape = 'u32[144,128]{1,0:T(1,128)}', space=vmem, size = 0x12000, scoped, tag = 'internal scratch']
  %s0 = inlined_call_operand.vmem [shape: f32[2,4,192], index: 0, kind: input, shape index: {}]
  %s1 = inlined_call_operand.vmem [shape: f32[2,4,192], index: 1, kind: input, shape index: {}]
  %s2 = inlined_call_operand.vmem [shape: f32[4,8,192], index: 2, kind: input, shape index: {}]
  %s3 = inlined_call_operand.vmem [shape: f32[4,8,192], index: 3, kind: input, shape index: {}]
  %s4 = inlined_call_operand.vmem [shape: f32[2,8,192], index: 4, kind: output, shape index: {0}]
  %s5 = inlined_call_operand.vmem [shape: f32[2,8,192], index: 5, kind: output, shape index: {1}]
  %6 = xla_tuple %s4, %s5
  %s7 = sld [smem:[#allocation0]]
  $region57: #{plane_pred_head_forward.5} parent=0
    _
  %s9 = ssub.s32 1, %s7
  %s10 = scalar_select 0, %s9, %s7
  loop: start=0, step=1, limit=4
  $region2: #{plane_pred_head_forward.5} parent=0 // loop_pre_header
    _
  $region3: #{plane_pred_head_forward.5} parent=0 // loop_header
    %s12 = sphi 0, %s16
    %p13 = scmp.ge.s32.totalorder %s12, 4
    %s19 = sphi 0, %s31
    %s20 = sphi 0, %s27
    %s21 = sphi 0, %s19
    %s22 = sphi 0, %s20
    %s23 = sphi 0, %s21
    %s24 = sphi 0, %s22
    %s36 = sphi 0, %s38
    %s39 = sphi 0, %s36
    %s40 = sphi 0, %s39
    %s56 = sphi 0, %s40
    %s64 = sphi 0, %s66
    %s67 = sphi 0, %s64
    %s68 = sphi 0, %s67
    %s84 = sphi 0, %s68
    %s90 = sphi 0, %s92
    %s93 = sphi 0, %s90
    %s94 = sphi 0, %s93
    %s110 = sphi 0, %s94
    %s116 = sphi 0, %s118
    %s119 = sphi 0, %s116
    %s120 = sphi 0, %s119
    %s136 = sphi 0, %s120
    %s144 = sphi 0, %s146
    %s147 = sphi 0, %s144
    %s148 = sphi 0, %s147
    %s164 = sphi 0, %s148
    %s172 = sphi 0, %s174
    %s175 = sphi 0, %s172
    %s176 = sphi 0, %s175
    %s192 = sphi 0, %s176
  $region4: #{plane_pred_head_forward.5} parent=0 // loop_header_branch
    %15 = sbr.rel (%p13) target = $region8
  $region5: #{plane_pred_head_forward.5} parent=0 // loop_body
    %s17 = ssub.s32 %s12, 1
    %s18 = ssub.s32 %s12, 2
    %s25 = sadd.s32 1, %s20
    %p26 = scmp.ge.s32.totalorder %s25, 2
    %s27 = scalar_select %p26, 0, %s25
    %s28 = sadd.s32 1, %s19
    %s29 = scalar_select %p26, %s28, %s19
    %p30 = scmp.ge.s32.totalorder %s29, 1
    %s31 = scalar_select %p30, 0, %s29
    %s32 = ssub.s32 %s20, %s27
    %s33 = ssub.s32 %s19, %s31
    %s34 = sor.u32 %s32, %s33
    %p35 = scmp.eq.s32.totalorder %s34, 0
    %s37 = sadd.s32 %s36, 1
    %s38 = scalar_select %p35, %s36, %s37
    %p41 = pneg %p35
    %p42 = scmp.eq.s32.totalorder %s12, 1
    %p43 = por %p41, %p42
    %p44 = scmp.ne.s32.totalorder %s36, %s39
    %p45 = scmp.eq.s32.totalorder %s12, 0
    %p46 = por %p44, %p45
    %p47 = scmp.ne.s32.totalorder %s36, %s39
    %p48 = scmp.eq.s32.totalorder %s17, 1
    %p49 = por %p47, %p48
    %p50 = scmp.ne.s32.totalorder %s39, %s40
    %p51 = scmp.eq.s32.totalorder %s17, 0
    %p52 = por %p50, %p51
    %p53 = scmp.ne.s32.totalorder %s39, %s40
    %p54 = scmp.eq.s32.totalorder %s18, 1
    %p55 = por %p53, %p54
    %p57 = scmp.ne.s32.totalorder %s40, %s56
    %p58 = scmp.eq.s32.totalorder %s18, 0
    %p59 = por %p57, %p58
    %s60 = ssub.s32 %s20, %s27
    %s61 = ssub.s32 %s19, %s31
    %s62 = sor.u32 %s60, %s61
    %p63 = scmp.eq.s32.totalorder %s62, 0
    %s65 = sadd.s32 %s64, 1
    %s66 = scalar_select %p63, %s64, %s65
    %p69 = pneg %p63
    %p70 = scmp.eq.s32.totalorder %s12, 1
    %p71 = por %p69, %p70
    %p72 = scmp.ne.s32.totalorder %s64, %s67
    %p73 = scmp.eq.s32.totalorder %s12, 0
    %p74 = por %p72, %p73
    %p75 = scmp.ne.s32.totalorder %s64, %s67
    %p76 = scmp.eq.s32.totalorder %s17, 1
    %p77 = por %p75, %p76
    %p78 = scmp.ne.s32.totalorder %s67, %s68
    %p79 = scmp.eq.s32.totalorder %s17, 0
    %p80 = por %p78, %p79
    %p81 = scmp.ne.s32.totalorder %s67, %s68
    %p82 = scmp.eq.s32.totalorder %s18, 1
    %p83 = por %p81, %p82
    %p85 = scmp.ne.s32.totalorder %s68, %s84
    %p86 = scmp.eq.s32.totalorder %s18, 0
    %p87 = por %p85, %p86
    %s88 = ssub.s32 %s19, %s31
    %p89 = scmp.eq.s32.totalorder %s88, 0
    %s91 = sadd.s32 %s90, 1
    %s92 = scalar_select %p89, %s90, %s91
    %p95 = pneg %p89
    %p96 = scmp.eq.s32.totalorder %s12, 1
    %p97 = por %p95, %p96
    %p98 = scmp.ne.s32.totalorder %s90, %s93
    %p99 = scmp.eq.s32.totalorder %s12, 0
    %p100 = por %p98, %p99
    %p101 = scmp.ne.s32.totalorder %s90, %s93
    %p102 = scmp.eq.s32.totalorder %s17, 1
    %p103 = por %p101, %p102
    %p104 = scmp.ne.s32.totalorder %s93, %s94
    %p105 = scmp.eq.s32.totalorder %s17, 0
    %p106 = por %p104, %p105
    %p107 = scmp.ne.s32.totalorder %s93, %s94
    %p108 = scmp.eq.s32.totalorder %s18, 1
    %p109 = por %p107, %p108
    %p111 = scmp.ne.s32.totalorder %s94, %s110
    %p112 = scmp.eq.s32.totalorder %s18, 0
    %p113 = por %p111, %p112
    %s114 = ssub.s32 %s19, %s31
    %p115 = scmp.eq.s32.totalorder %s114, 0
    %s117 = sadd.s32 %s116, 1
    %s118 = scalar_select %p115, %s116, %s117
    %p121 = pneg %p115
    %p122 = scmp.eq.s32.totalorder %s12, 1
    %p123 = por %p121, %p122
    %p124 = scmp.ne.s32.totalorder %s116, %s119
    %p125 = scmp.eq.s32.totalorder %s12, 0
    %p126 = por %p124, %p125
    %p127 = scmp.ne.s32.totalorder %s116, %s119
    %p128 = scmp.eq.s32.totalorder %s17, 1
    %p129 = por %p127, %p128
    %p130 = scmp.ne.s32.totalorder %s119, %s120
    %p131 = scmp.eq.s32.totalorder %s17, 0
    %p132 = por %p130, %p131
    %p133 = scmp.ne.s32.totalorder %s119, %s120
    %p134 = scmp.eq.s32.totalorder %s18, 1
    %p135 = por %p133, %p134
    %p137 = scmp.ne.s32.totalorder %s120, %s136
    %p138 = scmp.eq.s32.totalorder %s18, 0
    %p139 = por %p137, %p138
    %s140 = ssub.s32 %s20, %s27
    %s141 = ssub.s32 %s19, %s31
    %s142 = sor.u32 %s140, %s141
    %p143 = scmp.eq.s32.totalorder %s142, 0
    %s145 = sadd.s32 %s144, 1
    %s146 = scalar_select %p143, %s144, %s145
    %p149 = pneg %p143
    %p150 = scmp.eq.s32.totalorder %s12, 1
    %p151 = por %p149, %p150
    %p152 = scmp.ne.s32.totalorder %s144, %s147
    %p153 = scmp.eq.s32.totalorder %s12, 0
    %p154 = por %p152, %p153
    %p155 = scmp.ne.s32.totalorder %s144, %s147
    %p156 = scmp.eq.s32.totalorder %s17, 1
    %p157 = por %p155, %p156
    %p158 = scmp.ne.s32.totalorder %s147, %s148
    %p159 = scmp.eq.s32.totalorder %s17, 0
    %p160 = por %p158, %p159
    %p161 = scmp.ne.s32.totalorder %s147, %s148
    %p162 = scmp.eq.s32.totalorder %s18, 1
    %p163 = por %p161, %p162
    %p165 = scmp.ne.s32.totalorder %s148, %s164
    %p166 = scmp.eq.s32.totalorder %s18, 0
    %p167 = por %p165, %p166
    %s168 = ssub.s32 %s20, %s27
    %s169 = ssub.s32 %s19, %s31
    %s170 = sor.u32 %s168, %s169
    %p171 = scmp.eq.s32.totalorder %s170, 0
    %s173 = sadd.s32 %s172, 1
    %s174 = scalar_select %p171, %s172, %s173
    %p177 = pneg %p171
    %p178 = scmp.eq.s32.totalorder %s12, 1
    %p179 = por %p177, %p178
    %p180 = scmp.ne.s32.totalorder %s172, %s175
    %p181 = scmp.eq.s32.totalorder %s12, 0
    %p182 = por %p180, %p181
    %p183 = scmp.ne.s32.totalorder %s172, %s175
    %p184 = scmp.eq.s32.totalorder %s17, 1
    %p185 = por %p183, %p184
    %p186 = scmp.ne.s32.totalorder %s175, %s176
    %p187 = scmp.eq.s32.totalorder %s17, 0
    %p188 = por %p186, %p187
    %p189 = scmp.ne.s32.totalorder %s175, %s176
    %p190 = scmp.eq.s32.totalorder %s18, 1
    %p191 = por %p189, %p190
    %p193 = scmp.ne.s32.totalorder %s176, %s192
    %p194 = scmp.eq.s32.totalorder %s18, 0
    %p195 = por %p193, %p194
    %p196 = scmp.le.s32.totalorder 1, %s12
    %p197 = scmp.lt.s32.totalorder %s12, 3
    %p198 = pnand %p196, %p197
    %p199 = pneg %p198
    // Predicated region
    $region9: #{plane_pred_head_forward.5} parent=5 // pred_check
      _
    $region10: #{plane_pred_head_forward.5} parent=5 // pred_check_branch
      %201 = sbr.rel (%p198) target = $region12
    $region11: #{plane_pred_head_forward.5} parent=5 // pred_region
      %s202 = ssub.s32 %s12, 1
      // Predicated region
      $region13: #{plane_pred_head_forward.5} parent=11 // pred_check
        %p203 = pneg %p106
      $region14: #{plane_pred_head_forward.5} parent=11 // pred_check_branch
        %205 = sbr.rel (%p203) target = $region16
      $region15: #{plane_pred_head_forward.5} parent=11 // pred_region
        %s206 = smul.u32 2, %s21
        %p207 = scmp.lt.s32.totalorder %s206, 1
        %s208 = scalar_select %p207, %s206, 1
        %s209 = smul.addr %s208, 8
        %s210 = scalar_lea.vmem %s2, %s209
        %s211 = smul.u32 2, %s21
      $region16: #{plane_pred_head_forward.5} parent=11 // pred_fallthru
        _
      // Predicated region
      $region17: #{plane_pred_head_forward.5} parent=11 // pred_check
        %p212 = pneg %p132
      $region18: #{plane_pred_head_forward.5} parent=11 // pred_check_branch
        %214 = sbr.rel (%p212) target = $region20
      $region19: #{plane_pred_head_forward.5} parent=11 // pred_region
        %s215 = smul.u32 2, %s21
        %p216 = scmp.lt.s32.totalorder %s215, 1
        %s217 = scalar_select %p216, %s215, 1
        %s218 = smul.addr %s217, 8
        %s219 = scalar_lea.vmem %s3, %s218
        %s220 = smul.u32 2, %s21
      $region20: #{plane_pred_head_forward.5} parent=11 // pred_fallthru
        _
    $region12: #{plane_pred_head_forward.5} parent=5 // pred_fallthru
      _
    %p221 = scmp.lt.s32.totalorder %s12, 2
    // Predicated region
    $region21: #{plane_pred_head_forward.5} parent=5 // pred_check
      %p222 = pneg %p221
    $region22: #{plane_pred_head_forward.5} parent=5 // pred_check_branch
      %224 = sbr.rel (%p222) target = $region24
    $region23: #{plane_pred_head_forward.5} parent=5 // pred_region
      // Predicated region
      $region25: #{plane_pred_head_forward.5} parent=23 // pred_check
        %p225 = pneg %p46
      $region26: #{plane_pred_head_forward.5} parent=23 // pred_check_branch
        %227 = sbr.rel (%p225) target = $region28
      $region27: #{plane_pred_head_forward.5} parent=23 // pred_region
        %s228 = smul.u32 2, %s19
        %p229 = scmp.lt.s32.totalorder %s20, 1
        %s230 = scalar_select %p229, %s20, 1
        %p231 = scmp.lt.s32.totalorder %s228, 1
        %s232 = scalar_select %p231, %s228, 1
        %s233 = smul.addr %s230, 2
        %s234 = sadd.s32 %s232, %s233
        %s235 = smul.addr %s234, 4
        %s236 = scalar_lea.vmem %s0, %s235
        %s237 = smul.u32 2, %s19
      $region28: #{plane_pred_head_forward.5} parent=23 // pred_fallthru
        _
      // Predicated region
      $region29: #{plane_pred_head_forward.5} parent=23 // pred_check
        %p238 = pneg %p74
      $region30: #{plane_pred_head_forward.5} parent=23 // pred_check_branch
        %240 = sbr.rel (%p238) target = $region32
      $region31: #{plane_pred_head_forward.5} parent=23 // pred_region
        %s241 = smul.u32 2, %s19
        %p242 = scmp.lt.s32.totalorder %s20, 1
        %s243 = scalar_select %p242, %s20, 1
        %p244 = scmp.lt.s32.totalorder %s241, 1
        %s245 = scalar_select %p244, %s241, 1
        %s246 = smul.addr %s243, 2
        %s247 = sadd.s32 %s245, %s246
        %s248 = smul.addr %s247, 4
        %s249 = scalar_lea.vmem %s1, %s248
        %s250 = smul.u32 2, %s19
      $region32: #{plane_pred_head_forward.5} parent=23 // pred_fallthru
        _
    $region24: #{plane_pred_head_forward.5} parent=5 // pred_fallthru
      _
    %p251 = scmp.le.s32.totalorder 1, %s12
    %p252 = scmp.lt.s32.totalorder %s12, 3
    %p253 = pnand %p251, %p252
    %p254 = pneg %p253
    // Predicated region
    $region33: #{plane_pred_head_forward.5} parent=5 // pred_check
      _
    $region34: #{plane_pred_head_forward.5} parent=5 // pred_check_branch
      %256 = sbr.rel (%p253) target = $region36
    $region35: #{plane_pred_head_forward.5} parent=5 // pred_region
      %s257 = ssub.s32 %s12, 1
      %s258 = smul.u32 2, %s21
      %p259 = scmp.lt.s32.totalorder %s22, 1
      %s260 = scalar_select %p259, %s22, 1
      %p261 = scmp.lt.s32.totalorder %s258, 1
      %s262 = scalar_select %p261, %s258, 1
      %s263 = smul.addr %s260, 2
      %s264 = sadd.s32 %s262, %s263
      %s265 = smul.addr %s264, 4
      %s266 = scalar_lea.vmem %s0, %s265
      %p267 = pneg %p52
      %p268 = pneg %p49
      %s269 = smul.u32 2, %s21
      %p270 = scmp.lt.s32.totalorder %s22, 1
      %s271 = scalar_select %p270, %s22, 1
      %p272 = scmp.lt.s32.totalorder %s269, 1
      %s273 = scalar_select %p272, %s269, 1
      %s274 = smul.addr %s271, 2
      %s275 = sadd.s32 %s273, %s274
      %s276 = smul.addr %s275, 4
      %s277 = scalar_lea.vmem %s1, %s276
      %p278 = pneg %p80
      %p279 = pneg %p77
      %s280 = smul.u32 2, %s21
      %p281 = scmp.lt.s32.totalorder %s280, 1
      %s282 = scalar_select %p281, %s280, 1
      %s283 = smul.addr %s282, 8
      %s284 = scalar_lea.vmem %s2, %s283
      %p285 = pneg %p106
      %p286 = pneg %p103
      %s287 = smul.u32 2, %s21
      %p288 = scmp.lt.s32.totalorder %s287, 1
      %s289 = scalar_select %p288, %s287, 1
      %s290 = smul.addr %s289, 8
      %s291 = scalar_lea.vmem %s3, %s290
      %p292 = pneg %p132
      %p293 = pneg %p129
      %p294 = pneg %p160
      %p295 = pneg %p157
      %s296 = smul.u32 2, %s21
      %p297 = scmp.lt.s32.totalorder %s22, 1
      %s298 = scalar_select %p297, %s22, 1
      %p299 = scmp.lt.s32.totalorder %s296, 1
      %s300 = scalar_select %p299, %s296, 1
      %s301 = smul.addr %s298, 2
      %s302 = sadd.s32 %s300, %s301
      %s303 = smul.addr %s302, 8
      %s304 = scalar_lea.vmem %s4, %s303
      %p305 = pneg %p188
      %p306 = pneg %p185
      %s307 = smul.u32 2, %s21
      %p308 = scmp.lt.s32.totalorder %s22, 1
      %s309 = scalar_select %p308, %s22, 1
      %p310 = scmp.lt.s32.totalorder %s307, 1
      %s311 = scalar_select %p310, %s307, 1
      %s312 = smul.addr %s309, 2
      %s313 = sadd.s32 %s311, %s312
      %s314 = smul.addr %s313, 8
      %s315 = scalar_lea.vmem %s5, %s314
      %s316 = smul.u32 2, %s21
      %p317 = scmp.lt.s32.totalorder %s22, 1
      %s318 = scalar_select %p317, %s22, 1
      %p319 = scmp.lt.s32.totalorder %s316, 1
      %s320 = scalar_select %p319, %s316, 1
      %s321 = smul.addr %s318, 2
      %s322 = sadd.s32 %s320, %s321
      %s323 = smul.addr %s322, 4
      %s324 = scalar_lea.vmem %s0, %s323
      %s325 = smul.u32 2, %s21
      %s326 = smul.u32 2, %s21
      %p327 = scmp.lt.s32.totalorder %s22, 1
      %s328 = scalar_select %p327, %s22, 1
      %p329 = scmp.lt.s32.totalorder %s326, 1
      %s330 = scalar_select %p329, %s326, 1
      %s331 = smul.addr %s328, 2
      %s332 = sadd.s32 %s330, %s331
      %s333 = smul.addr %s332, 4
      %s334 = scalar_lea.vmem %s1, %s333
      %s335 = smul.u32 2, %s21
      %s336 = smul.u32 2, %s21
      %p337 = scmp.lt.s32.totalorder %s336, 1
      %s338 = scalar_select %p337, %s336, 1
      %s339 = smul.addr %s338, 8
      %s340 = scalar_lea.vmem %s2, %s339
      %s341 = smul.u32 2, %s21
      %s342 = smul.u32 2, %s21
      %p343 = scmp.lt.s32.totalorder %s342, 1
      %s344 = scalar_select %p343, %s342, 1
      %s345 = smul.addr %s344, 8
      %s346 = scalar_lea.vmem %s3, %s345
      %s347 = smul.u32 2, %s21
      %s348 = smul.u32 2, %s21
      %p349 = scmp.lt.s32.totalorder %s22, 1
      %s350 = scalar_select %p349, %s22, 1
      %p351 = scmp.lt.s32.totalorder %s348, 1
      %s352 = scalar_select %p351, %s348, 1
      %s353 = smul.addr %s350, 2
      %s354 = sadd.s32 %s352, %s353
      %s355 = smul.addr %s354, 8
      %s356 = scalar_lea.vmem %s4, %s355
      %s357 = smul.u32 2, %s21
      %s358 = smul.u32 2, %s21
      %p359 = scmp.lt.s32.totalorder %s22, 1
      %s360 = scalar_select %p359, %s22, 1
      %p361 = scmp.lt.s32.totalorder %s358, 1
      %s362 = scalar_select %p361, %s358, 1
      %s363 = smul.addr %s360, 2
      %s364 = sadd.s32 %s362, %s363
      %s365 = smul.addr %s364, 8
      %s366 = scalar_lea.vmem %s5, %s365
      %s367 = smul.u32 2, %s21
      %v368 = vld [vmem:[%s324] sm:$0xff]
      %v369 = vld [vmem:[%s334] sm:$0xff]
      %v370 = vld [vmem:[%s340] sm:$0xff]
      %v371 = vld [vmem:[%s340 + $0x8] sm:$0xff]
      %v372 = vld [vmem:[%s346] sm:$0xff]
      %v373 = vld [vmem:[%s346 + $0x8] sm:$0xff]
      %v375 = vlaneseq
      %v376 = vshrl.u32 %v375, 7
      %v377 = vsub.s32 0, %v376
      %v378 = vrot.slane %v368, %v377
      %v379 = vlaneseq
      %v380 = vshrl.u32 %v379, 7
      %v381 = vsub.s32 4, %v380
      %v382 = vrot.slane %v368, %v381
      %v385 = vlaneseq
      %v386 = vshrl.u32 %v385, 7
      %v387 = vsub.s32 0, %v386
      %v388 = vrot.slane %v378, %v387
      %v389 = vlaneseq
      %v390 = vshrl.u32 %v389, 7
      %v391 = vsub.s32 0, %v390
      %v392 = vrot.slane %v382, %v391
      %v393 = vmul.f32 %v388, %v370
      %v394 = vmul.f32 %v392, %v371
      %v395 = vadd.f32 %v393, 0.0
      %v396 = vadd.f32 %v394, 0.0
      %v398 = vlaneseq
      %v399 = vshrl.u32 %v398, 7
      %v400 = vsub.s32 0, %v399
      %v401 = vrot.slane %v369, %v400
      %v402 = vlaneseq
      %v403 = vshrl.u32 %v402, 7
      %v404 = vsub.s32 4, %v403
      %v405 = vrot.slane %v369, %v404
      %v408 = vlaneseq
      %v409 = vshrl.u32 %v408, 7
      %v410 = vsub.s32 0, %v409
      %v411 = vrot.slane %v401, %v410
      %v412 = vlaneseq
      %v413 = vshrl.u32 %v412, 7
      %v414 = vsub.s32 0, %v413
      %v415 = vrot.slane %v405, %v414
      %v416 = vmul.f32 %v411, %v372
      %v417 = vmul.f32 %v415, %v373
      %v418 = vsub.f32 %v395, %v416
      %v419 = vsub.f32 %v396, %v417
      %v420 = vmul.f32 %v388, %v372
      %v421 = vmul.f32 %v392, %v373
      %v422 = vadd.f32 %v420, 0.0
      %v423 = vadd.f32 %v421, 0.0
      %v424 = vmul.f32 %v411, %v370
      %v425 = vmul.f32 %v415, %v371
      %v426 = vadd.f32 %v422, %v424
      %v427 = vadd.f32 %v423, %v425
      %s428 = scalar_lea.vmem %s340, 16
      %v429 = vld [vmem:[%s428] sm:$0xff]
      %v430 = vld [vmem:[%s428 + $0x8] sm:$0xff]
      %s431 = scalar_lea.vmem %s346, 16
      %v432 = vld [vmem:[%s431] sm:$0xff]
      %v433 = vld [vmem:[%s431 + $0x8] sm:$0xff]
      %v434 = vlaneseq
      %v435 = vshrl.u32 %v434, 7
      %v436 = vsub.s32 1, %v435
      %v437 = vrot.slane %v368, %v436
      %v438 = vlaneseq
      %v439 = vshrl.u32 %v438, 7
      %v440 = vsub.s32 5, %v439
      %v441 = vrot.slane %v368, %v440
      %v444 = vlaneseq
      %v445 = vshrl.u32 %v444, 7
      %v446 = vsub.s32 1, %v445
      %v447 = vrot.slane %v437, %v446
      %v448 = vlaneseq
      %v449 = vshrl.u32 %v448, 7
      %v450 = vsub.s32 1, %v449
      %v451 = vrot.slane %v441, %v450
      %v452 = vmul.f32 %v447, %v429
      %v453 = vmul.f32 %v451, %v430
      %v454 = vadd.f32 %v418, %v452
      %v455 = vadd.f32 %v419, %v453
      %v456 = vlaneseq
      %v457 = vshrl.u32 %v456, 7
      %v458 = vsub.s32 1, %v457
      %v459 = vrot.slane %v369, %v458
      %v460 = vlaneseq
      %v461 = vshrl.u32 %v460, 7
      %v462 = vsub.s32 5, %v461
      %v463 = vrot.slane %v369, %v462
      %v466 = vlaneseq
      %v467 = vshrl.u32 %v466, 7
      %v468 = vsub.s32 1, %v467
      %v469 = vrot.slane %v459, %v468
      %v470 = vlaneseq
      %v471 = vshrl.u32 %v470, 7
      %v472 = vsub.s32 1, %v471
      %v473 = vrot.slane %v463, %v472
      %v474 = vmul.f32 %v469, %v432
      %v475 = vmul.f32 %v473, %v433
      %v476 = vsub.f32 %v454, %v474
      %v477 = vsub.f32 %v455, %v475
      %v478 = vmul.f32 %v447, %v432
      %v479 = vmul.f32 %v451, %v433
      %v480 = vadd.f32 %v426, %v478
      %v481 = vadd.f32 %v427, %v479
      %v482 = vmul.f32 %v469, %v429
      %v483 = vmul.f32 %v473, %v430
      %v484 = vadd.f32 %v480, %v482
      %v485 = vadd.f32 %v481, %v483
      %s486 = scalar_lea.vmem %s340, 32
      %v487 = vld [vmem:[%s486] sm:$0xff]
      %v488 = vld [vmem:[%s486 + $0x8] sm:$0xff]
      %s489 = scalar_lea.vmem %s346, 32
      %v490 = vld [vmem:[%s489] sm:$0xff]
      %v491 = vld [vmem:[%s489 + $0x8] sm:$0xff]
      %v492 = vlaneseq
      %v493 = vshrl.u32 %v492, 7
      %v494 = vsub.s32 2, %v493
      %v495 = vrot.slane %v368, %v494
      %v496 = vlaneseq
      %v497 = vshrl.u32 %v496, 7
      %v498 = vsub.s32 6, %v497
      %v499 = vrot.slane %v368, %v498
      %v502 = vlaneseq
      %v503 = vshrl.u32 %v502, 7
      %v504 = vsub.s32 2, %v503
      %v505 = vrot.slane %v495, %v504
      %v506 = vlaneseq
      %v507 = vshrl.u32 %v506, 7
      %v508 = vsub.s32 2, %v507
      %v509 = vrot.slane %v499, %v508
      %v510 = vmul.f32 %v505, %v487
      %v511 = vmul.f32 %v509, %v488
      %v512 = vadd.f32 %v476, %v510
      %v513 = vadd.f32 %v477, %v511
      %v514 = vlaneseq
      %v515 = vshrl.u32 %v514, 7
      %v516 = vsub.s32 2, %v515
      %v517 = vrot.slane %v369, %v516
      %v518 = vlaneseq
      %v519 = vshrl.u32 %v518, 7
      %v520 = vsub.s32 6, %v519
      %v521 = vrot.slane %v369, %v520
      %v524 = vlaneseq
      %v525 = vshrl.u32 %v524, 7
      %v526 = vsub.s32 2, %v525
      %v527 = vrot.slane %v517, %v526
      %v528 = vlaneseq
      %v529 = vshrl.u32 %v528, 7
      %v530 = vsub.s32 2, %v529
      %v531 = vrot.slane %v521, %v530
      %v532 = vmul.f32 %v527, %v490
      %v533 = vmul.f32 %v531, %v491
      %v534 = vsub.f32 %v512, %v532
      %v535 = vsub.f32 %v513, %v533
      %v536 = vmul.f32 %v505, %v490
      %v537 = vmul.f32 %v509, %v491
      %v538 = vadd.f32 %v484, %v536
      %v539 = vadd.f32 %v485, %v537
      %v540 = vmul.f32 %v527, %v487
      %v541 = vmul.f32 %v531, %v488
      %v542 = vadd.f32 %v538, %v540
      %v543 = vadd.f32 %v539, %v541
      %s544 = scalar_lea.vmem %s340, 48
      %v545 = vld [vmem:[%s544] sm:$0xff]
      %v546 = vld [vmem:[%s544 + $0x8] sm:$0xff]
      %s547 = scalar_lea.vmem %s346, 48
      %v548 = vld [vmem:[%s547] sm:$0xff]
      %v549 = vld [vmem:[%s547 + $0x8] sm:$0xff]
      %v550 = vlaneseq
      %v551 = vshrl.u32 %v550, 7
      %v552 = vsub.s32 3, %v551
      %v553 = vrot.slane %v368, %v552
      %v554 = vlaneseq
      %v555 = vshrl.u32 %v554, 7
      %v556 = vsub.s32 7, %v555
      %v557 = vrot.slane %v368, %v556
      %v560 = vlaneseq
      %v561 = vshrl.u32 %v560, 7
      %v562 = vsub.s32 3, %v561
      %v563 = vrot.slane %v553, %v562
      %v564 = vlaneseq
      %v565 = vshrl.u32 %v564, 7
      %v566 = vsub.s32 3, %v565
      %v567 = vrot.slane %v557, %v566
      %v568 = vmul.f32 %v563, %v545
      %v569 = vmul.f32 %v567, %v546
      %v570 = vadd.f32 %v534, %v568
      %v571 = vadd.f32 %v535, %v569
      %v572 = vlaneseq
      %v573 = vshrl.u32 %v572, 7
      %v574 = vsub.s32 3, %v573
      %v575 = vrot.slane %v369, %v574
      %v576 = vlaneseq
      %v577 = vshrl.u32 %v576, 7
      %v578 = vsub.s32 7, %v577
      %v579 = vrot.slane %v369, %v578
      %v582 = vlaneseq
      %v583 = vshrl.u32 %v582, 7
      %v584 = vsub.s32 3, %v583
      %v585 = vrot.slane %v575, %v584
      %v586 = vlaneseq
      %v587 = vshrl.u32 %v586, 7
      %v588 = vsub.s32 3, %v587
      %v589 = vrot.slane %v579, %v588
      %v590 = vmul.f32 %v585, %v548
      %v591 = vmul.f32 %v589, %v549
      %v592 = vsub.f32 %v570, %v590
      %v593 = vsub.f32 %v571, %v591
      %v594 = vmul.f32 %v563, %v548
      %v595 = vmul.f32 %v567, %v549
      %v596 = vadd.f32 %v542, %v594
      %v597 = vadd.f32 %v543, %v595
      %v598 = vmul.f32 %v585, %v545
      %v599 = vmul.f32 %v589, %v546
      %v600 = vadd.f32 %v596, %v598
      %v601 = vadd.f32 %v597, %v599
      %602 = vst [vmem:[%s356] sm:$0xff] %v592
      %vm603 = vcmask 523264
      %604 = vst.msk [vmem:[%s356 + $0x8] sm:$0xff] %vm603, %v593
      %605 = vst [vmem:[%s366] sm:$0xff] %v600
      %606 = vst.msk [vmem:[%s366 + $0x8] sm:$0xff] %vm603, %v601
      %s607 = smul.u32 2, %s21
      %p608 = scmp.lt.s32.totalorder %s22, 1
      %s609 = scalar_select %p608, %s22, 1
      %p610 = scmp.lt.s32.totalorder %s607, 1
      %s611 = scalar_select %p610, %s607, 1
      %s612 = smul.addr %s609, 2
      %s613 = sadd.s32 %s611, %s612
      %s614 = smul.addr %s613, 8
      %s615 = scalar_lea.vmem %s4, %s614
      %s616 = smul.u32 2, %s21
      %p617 = scmp.lt.s32.totalorder %s22, 1
      %s618 = scalar_select %p617, %s22, 1
      %p619 = scmp.lt.s32.totalorder %s616, 1
      %s620 = scalar_select %p619, %s616, 1
      %s621 = smul.addr %s618, 2
      %s622 = sadd.s32 %s620, %s621
      %s623 = smul.addr %s622, 8
      %s624 = scalar_lea.vmem %s5, %s623
      // Predicated region
      $region37: #{plane_pred_head_forward.5} parent=35 // pred_check
        %p625 = pneg %p157
      $region38: #{plane_pred_head_forward.5} parent=35 // pred_check_branch
        %627 = sbr.rel (%p625) target = $region40
      $region39: #{plane_pred_head_forward.5} parent=35 // pred_region
        %s628 = smul.u32 2, %s21
      $region40: #{plane_pred_head_forward.5} parent=35 // pred_fallthru
        _
      // Predicated region
      $region41: #{plane_pred_head_forward.5} parent=35 // pred_check
        %p629 = pneg %p185
      $region42: #{plane_pred_head_forward.5} parent=35 // pred_check_branch
        %631 = sbr.rel (%p629) target = $region44
      $region43: #{plane_pred_head_forward.5} parent=35 // pred_region
        %s632 = smul.u32 2, %s21
      $region44: #{plane_pred_head_forward.5} parent=35 // pred_fallthru
        _
    $region36: #{plane_pred_head_forward.5} parent=5 // pred_fallthru
      _
    %p633 = scmp.le.s32.totalorder 2, %s12
    // Predicated region
    $region45: #{plane_pred_head_forward.5} parent=5 // pred_check
      %p634 = pneg %p633
    $region46: #{plane_pred_head_forward.5} parent=5 // pred_check_branch
      %636 = sbr.rel (%p634) target = $region48
    $region47: #{plane_pred_head_forward.5} parent=5 // pred_region
      %s637 = ssub.s32 %s12, 2
      // Predicated region
      $region49: #{plane_pred_head_forward.5} parent=47 // pred_check
        %p638 = pneg %p163
      $region50: #{plane_pred_head_forward.5} parent=47 // pred_check_branch
        %640 = sbr.rel (%p638) target = $region52
      $region51: #{plane_pred_head_forward.5} parent=47 // pred_region
        %s641 = smul.u32 2, %s23
        %p642 = scmp.lt.s32.totalorder %s24, 1
        %s643 = scalar_select %p642, %s24, 1
        %p644 = scmp.lt.s32.totalorder %s641, 1
        %s645 = scalar_select %p644, %s641, 1
        %s646 = smul.addr %s643, 2
        %s647 = sadd.s32 %s645, %s646
        %s648 = smul.addr %s647, 8
        %s649 = scalar_lea.vmem %s4, %s648
      $region52: #{plane_pred_head_forward.5} parent=47 // pred_fallthru
        _
      // Predicated region
      $region53: #{plane_pred_head_forward.5} parent=47 // pred_check
        %p650 = pneg %p191
      $region54: #{plane_pred_head_forward.5} parent=47 // pred_check_branch
        %652 = sbr.rel (%p650) target = $region56
      $region55: #{plane_pred_head_forward.5} parent=47 // pred_region
        %s653 = smul.u32 2, %s23
        %p654 = scmp.lt.s32.totalorder %s24, 1
        %s655 = scalar_select %p654, %s24, 1
        %p656 = scmp.lt.s32.totalorder %s653, 1
        %s657 = scalar_select %p656, %s653, 1
        %s658 = smul.addr %s655, 2
        %s659 = sadd.s32 %s657, %s658
        %s660 = smul.addr %s659, 8
        %s661 = scalar_lea.vmem %s5, %s660
      $region56: #{plane_pred_head_forward.5} parent=47 // pred_fallthru
        _
    $region48: #{plane_pred_head_forward.5} parent=5 // pred_fallthru
      _
  $region6: #{plane_pred_head_forward.5} parent=0 // loop_footer
    %s16 = sadd.s32 1, %s12
  $region7: #{plane_pred_head_forward.5} parent=0 // loop_footer_branch
    %11 = sbr.rel target = $region3
  $region8: #{plane_pred_head_forward.5} parent=0 // loop_exit
    _

// kernel: reverse.4
$region0: #{reverse.4}
  #allocation0 [shape = 's32[1]{0}', space=sflag, size = 0x4, scoped, tag = 'scoped memory for reverse.4']
  %s0 = inlined_call_operand.vmem [shape: f32[2,8,8,8,3], index: 0, kind: input, shape index: {}]
  %s1 = inlined_call_operand.vmem [shape: f32[2,8,8,8,3], index: 1, kind: output, shape index: {}]
  %s2 = scalar_lea.vmem %s0, 16
  %v3 = vld [vmem:[%s2] sm:$0xff]
  %4 = vst [vmem:[%s1] sm:$0xff] %v3
  %s5 = scalar_lea.vmem %s0, 208
  %v6 = vld [vmem:[%s5] sm:$0xff]
  %s7 = scalar_lea.vmem %s1, 192
  %8 = vst [vmem:[%s7] sm:$0xff] %v6
  %s9 = scalar_lea.vmem %s0, 40
  %v10 = vld [vmem:[%s9] sm:$0xff]
  %s11 = scalar_lea.vmem %s1, 24
  %12 = vst [vmem:[%s11] sm:$0xff] %v10
  %s13 = scalar_lea.vmem %s0, 232
  %v14 = vld [vmem:[%s13] sm:$0xff]
  %s15 = scalar_lea.vmem %s1, 216
  %16 = vst [vmem:[%s15] sm:$0xff] %v14
  %s17 = scalar_lea.vmem %s0, 64
  %v18 = vld [vmem:[%s17] sm:$0xff]
  %s19 = scalar_lea.vmem %s1, 48
  %20 = vst [vmem:[%s19] sm:$0xff] %v18
  %s21 = scalar_lea.vmem %s0, 256
  %v22 = vld [vmem:[%s21] sm:$0xff]
  %s23 = scalar_lea.vmem %s1, 240
  %24 = vst [vmem:[%s23] sm:$0xff] %v22
  %s25 = scalar_lea.vmem %s0, 88
  %v26 = vld [vmem:[%s25] sm:$0xff]
  %s27 = scalar_lea.vmem %s1, 72
  %28 = vst [vmem:[%s27] sm:$0xff] %v26
  %s29 = scalar_lea.vmem %s0, 280
  %v30 = vld [vmem:[%s29] sm:$0xff]
  %s31 = scalar_lea.vmem %s1, 264
  %32 = vst [vmem:[%s31] sm:$0xff] %v30
  %s33 = scalar_lea.vmem %s0, 112
  %v34 = vld [vmem:[%s33] sm:$0xff]
  %s35 = scalar_lea.vmem %s1, 96
  %36 = vst [vmem:[%s35] sm:$0xff] %v34
  %s37 = scalar_lea.vmem %s0, 304
  %v38 = vld [vmem:[%s37] sm:$0xff]
  %s39 = scalar_lea.vmem %s1, 288
  %40 = vst [vmem:[%s39] sm:$0xff] %v38
  %s41 = scalar_lea.vmem %s0, 136
  %v42 = vld [vmem:[%s41] sm:$0xff]
  %s43 = scalar_lea.vmem %s1, 120
  %44 = vst [vmem:[%s43] sm:$0xff] %v42
  %s45 = scalar_lea.vmem %s0, 328
  %v46 = vld [vmem:[%s45] sm:$0xff]
  %s47 = scalar_lea.vmem %s1, 312
  %48 = vst [vmem:[%s47] sm:$0xff] %v46
  %s49 = scalar_lea.vmem %s0, 160
  %v50 = vld [vmem:[%s49] sm:$0xff]
  %s51 = scalar_lea.vmem %s1, 144
  %52 = vst [vmem:[%s51] sm:$0xff] %v50
  %s53 = scalar_lea.vmem %s0, 352
  %v54 = vld [vmem:[%s53] sm:$0xff]
  %s55 = scalar_lea.vmem %s1, 336
  %56 = vst [vmem:[%s55] sm:$0xff] %v54
  %s57 = scalar_lea.vmem %s0, 184
  %v58 = vld [vmem:[%s57] sm:$0xff]
  %s59 = scalar_lea.vmem %s1, 168
  %60 = vst [vmem:[%s59] sm:$0xff] %v58
  %s61 = scalar_lea.vmem %s0, 376
  %v62 = vld [vmem:[%s61] sm:$0xff]
  %s63 = scalar_lea.vmem %s1, 360
  %64 = vst [vmem:[%s63] sm:$0xff] %v62
  %s65 = scalar_lea.vmem %s0, 8
  %v66 = vld [vmem:[%s65] sm:$0xff]
  %s67 = scalar_lea.vmem %s1, 8
  %68 = vst [vmem:[%s67] sm:$0xff] %v66
  %s69 = scalar_lea.vmem %s0, 200
  %v70 = vld [vmem:[%s69] sm:$0xff]
  %s71 = scalar_lea.vmem %s1, 200
  %72 = vst [vmem:[%s71] sm:$0xff] %v70
  %s73 = scalar_lea.vmem %s0, 32
  %v74 = vld [vmem:[%s73] sm:$0xff]
  %s75 = scalar_lea.vmem %s1, 32
  %76 = vst [vmem:[%s75] sm:$0xff] %v74
  %s77 = scalar_lea.vmem %s0, 224
  %v78 = vld [vmem:[%s77] sm:$0xff]
  %s79 = scalar_lea.vmem %s1, 224
  %80 = vst [vmem:[%s79] sm:$0xff] %v78
  %s81 = scalar_lea.vmem %s0, 56
  %v82 = vld [vmem:[%s81] sm:$0xff]
  %s83 = scalar_lea.vmem %s1, 56
  %84 = vst [vmem:[%s83] sm:$0xff] %v82
  %s85 = scalar_lea.vmem %s0, 248
  %v86 = vld [vmem:[%s85] sm:$0xff]
  %s87 = scalar_lea.vmem %s1, 248
  %88 = vst [vmem:[%s87] sm:$0xff] %v86
  %s89 = scalar_lea.vmem %s0, 80
  %v90 = vld [vmem:[%s89] sm:$0xff]
  %s91 = scalar_lea.vmem %s1, 80
  %92 = vst [vmem:[%s91] sm:$0xff] %v90
  %s93 = scalar_lea.vmem %s0, 272
  %v94 = vld [vmem:[%s93] sm:$0xff]
  %s95 = scalar_lea.vmem %s1, 272
  %96 = vst [vmem:[%s95] sm:$0xff] %v94
  %s97 = scalar_lea.vmem %s0, 104
  %v98 = vld [vmem:[%s97] sm:$0xff]
  %s99 = scalar_lea.vmem %s1, 104
  %100 = vst [vmem:[%s99] sm:$0xff] %v98
  %s101 = scalar_lea.vmem %s0, 296
  %v102 = vld [vmem:[%s101] sm:$0xff]
  %s103 = scalar_lea.vmem %s1, 296
  %104 = vst [vmem:[%s103] sm:$0xff] %v102
  %s105 = scalar_lea.vmem %s0, 128
  %v106 = vld [vmem:[%s105] sm:$0xff]
  %s107 = scalar_lea.vmem %s1, 128
  %108 = vst [vmem:[%s107] sm:$0xff] %v106
  %s109 = scalar_lea.vmem %s0, 320
  %v110 = vld [vmem:[%s109] sm:$0xff]
  %s111 = scalar_lea.vmem %s1, 320
  %112 = vst [vmem:[%s111] sm:$0xff] %v110
  %s113 = scalar_lea.vmem %s0, 152
  %v114 = vld [vmem:[%s113] sm:$0xff]
  %s115 = scalar_lea.vmem %s1, 152
  %116 = vst [vmem:[%s115] sm:$0xff] %v114
  %s117 = scalar_lea.vmem %s0, 344
  %v118 = vld [vmem:[%s117] sm:$0xff]
  %s119 = scalar_lea.vmem %s1, 344
  %120 = vst [vmem:[%s119] sm:$0xff] %v118
  %s121 = scalar_lea.vmem %s0, 176
  %v122 = vld [vmem:[%s121] sm:$0xff]
  %s123 = scalar_lea.vmem %s1, 176
  %124 = vst [vmem:[%s123] sm:$0xff] %v122
  %s125 = scalar_lea.vmem %s0, 368
  %v126 = vld [vmem:[%s125] sm:$0xff]
  %s127 = scalar_lea.vmem %s1, 368
  %128 = vst [vmem:[%s127] sm:$0xff] %v126
  %v129 = vld [vmem:[%s0] sm:$0xff]
  %s130 = scalar_lea.vmem %s1, 16
  %131 = vst [vmem:[%s130] sm:$0xff] %v129
  %s132 = scalar_lea.vmem %s0, 192
  %v133 = vld [vmem:[%s132] sm:$0xff]
  %s134 = scalar_lea.vmem %s1, 208
  %135 = vst [vmem:[%s134] sm:$0xff] %v133
  %s136 = scalar_lea.vmem %s0, 24
  %v137 = vld [vmem:[%s136] sm:$0xff]
  %s138 = scalar_lea.vmem %s1, 40
  %139 = vst [vmem:[%s138] sm:$0xff] %v137
  %s140 = scalar_lea.vmem %s0, 216
  %v141 = vld [vmem:[%s140] sm:$0xff]
  %s142 = scalar_lea.vmem %s1, 232
  %143 = vst [vmem:[%s142] sm:$0xff] %v141
  %s144 = scalar_lea.vmem %s0, 48
  %v145 = vld [vmem:[%s144] sm:$0xff]
  %s146 = scalar_lea.vmem %s1, 64
  %147 = vst [vmem:[%s146] sm:$0xff] %v145
  %s148 = scalar_lea.vmem %s0, 240
  %v149 = vld [vmem:[%s148] sm:$0xff]
  %s150 = scalar_lea.vmem %s1, 256
  %151 = vst [vmem:[%s150] sm:$0xff] %v149
  %s152 = scalar_lea.vmem %s0, 72
  %v153 = vld [vmem:[%s152] sm:$0xff]
  %s154 = scalar_lea.vmem %s1, 88
  %155 = vst [vmem:[%s154] sm:$0xff] %v153
  %s156 = scalar_lea.vmem %s0, 264
  %v157 = vld [vmem:[%s156] sm:$0xff]
  %s158 = scalar_lea.vmem %s1, 280
  %159 = vst [vmem:[%s158] sm:$0xff] %v157
  %s160 = scalar_lea.vmem %s0, 96
  %v161 = vld [vmem:[%s160] sm:$0xff]
  %s162 = scalar_lea.vmem %s1, 112
  %163 = vst [vmem:[%s162] sm:$0xff] %v161
  %s164 = scalar_lea.vmem %s0, 288
  %v165 = vld [vmem:[%s164] sm:$0xff]
  %s166 = scalar_lea.vmem %s1, 304
  %167 = vst [vmem:[%s166] sm:$0xff] %v165
  %s168 = scalar_lea.vmem %s0, 120
  %v169 = vld [vmem:[%s168] sm:$0xff]
  %s170 = scalar_lea.vmem %s1, 136
  %171 = vst [vmem:[%s170] sm:$0xff] %v169
  %s172 = scalar_lea.vmem %s0, 312
  %v173 = vld [vmem:[%s172] sm:$0xff]
  %s174 = scalar_lea.vmem %s1, 328
  %175 = vst [vmem:[%s174] sm:$0xff] %v173
  %s176 = scalar_lea.vmem %s0, 144
  %v177 = vld [vmem:[%s176] sm:$0xff]
  %s178 = scalar_lea.vmem %s1, 160
  %179 = vst [vmem:[%s178] sm:$0xff] %v177
  %s180 = scalar_lea.vmem %s0, 336
  %v181 = vld [vmem:[%s180] sm:$0xff]
  %s182 = scalar_lea.vmem %s1, 352
  %183 = vst [vmem:[%s182] sm:$0xff] %v181
  %s184 = scalar_lea.vmem %s0, 168
  %v185 = vld [vmem:[%s184] sm:$0xff]
  %s186 = scalar_lea.vmem %s1, 184
  %187 = vst [vmem:[%s186] sm:$0xff] %v185
  %s188 = scalar_lea.vmem %s0, 360
  %v189 = vld [vmem:[%s188] sm:$0xff]
  %s190 = scalar_lea.vmem %s1, 376
  %191 = vst [vmem:[%s190] sm:$0xff] %v189

// kernel: plane_pred_head_forward.6
$region0: #{plane_pred_head_forward.6}
  #allocation0 [shape = 'u32[]', space=smem, size = 0x4, offset = 0x4, fixed_abs, tag = 'smem constant byte address 0x4 - core index']
  #allocation1 [shape = 'u32[144,128]{1,0:T(1,128)}', space=vmem, size = 0x12000, scoped, tag = 'internal scratch']
  %s0 = inlined_call_operand.vmem [shape: f32[2,8,512], index: 0, kind: input, shape index: {}]
  %s1 = inlined_call_operand.vmem [shape: f32[2,4,512], index: 1, kind: input, shape index: {}]
  %s2 = inlined_call_operand.vmem [shape: f32[8,4], index: 2, kind: input, shape index: {}]
  %s3 = inlined_call_operand.vmem [shape: f32[8,1], index: 3, kind: input, shape index: {}]
  %s4 = inlined_call_operand.vmem [shape: f32[2,8,512], index: 4, kind: output, shape index: {}]
  %s5 = sld [smem:[#allocation0]]
  $region49: #{plane_pred_head_forward.6} parent=0
    _
  %s7 = ssub.s32 1, %s5
  %s8 = scalar_select 0, %s7, %s5
  loop: start=0, step=1, limit=4
  $region2: #{plane_pred_head_forward.6} parent=0 // loop_pre_header
    _
  $region3: #{plane_pred_head_forward.6} parent=0 // loop_header
    %s10 = sphi 0, %s14
    %p11 = scmp.ge.s32.totalorder %s10, 4
    %s17 = sphi 0, %s29
    %s18 = sphi 0, %s25
    %s19 = sphi 0, %s17
    %s20 = sphi 0, %s18
    %s21 = sphi 0, %s19
    %s22 = sphi 0, %s20
    %s34 = sphi 0, %s36
    %s37 = sphi 0, %s34
    %s38 = sphi 0, %s37
    %s54 = sphi 0, %s38
    %s62 = sphi 0, %s64
    %s65 = sphi 0, %s62
    %s66 = sphi 0, %s65
    %s82 = sphi 0, %s66
    %s86 = sphi 0, %s86
    %s88 = sphi 0, %s86
    %s89 = sphi 0, %s88
    %s103 = sphi 0, %s89
    %s107 = sphi 0, %s107
    %s109 = sphi 0, %s107
    %s110 = sphi 0, %s109
    %s124 = sphi 0, %s110
    %s132 = sphi 0, %s134
    %s135 = sphi 0, %s132
    %s136 = sphi 0, %s135
    %s152 = sphi 0, %s136
  $region4: #{plane_pred_head_forward.6} parent=0 // loop_header_branch
    %13 = sbr.rel (%p11) target = $region8
  $region5: #{plane_pred_head_forward.6} parent=0 // loop_body
    %s15 = ssub.s32 %s10, 1
    %s16 = ssub.s32 %s10, 2
    %s23 = sadd.s32 1, %s18
    %p24 = scmp.ge.s32.totalorder %s23, 1
    %s25 = scalar_select %p24, 0, %s23
    %s26 = sadd.s32 1, %s17
    %s27 = scalar_select %p24, %s26, %s17
    %p28 = scmp.ge.s32.totalorder %s27, 2
    %s29 = scalar_select %p28, 0, %s27
    %s30 = ssub.s32 %s17, %s29
    %s31 = ssub.s32 %s18, %s25
    %s32 = sor.u32 %s30, %s31
    %p33 = scmp.eq.s32.totalorder %s32, 0
    %s35 = sadd.s32 %s34, 1
    %s36 = scalar_select %p33, %s34, %s35
    %p39 = pneg %p33
    %p40 = scmp.eq.s32.totalorder %s10, 1
    %p41 = por %p39, %p40
    %p42 = scmp.ne.s32.totalorder %s34, %s37
    %p43 = scmp.eq.s32.totalorder %s10, 0
    %p44 = por %p42, %p43
    %p45 = scmp.ne.s32.totalorder %s34, %s37
    %p46 = scmp.eq.s32.totalorder %s15, 1
    %p47 = por %p45, %p46
    %p48 = scmp.ne.s32.totalorder %s37, %s38
    %p49 = scmp.eq.s32.totalorder %s15, 0
    %p50 = por %p48, %p49
    %p51 = scmp.ne.s32.totalorder %s37, %s38
    %p52 = scmp.eq.s32.totalorder %s16, 1
    %p53 = por %p51, %p52
    %p55 = scmp.ne.s32.totalorder %s38, %s54
    %p56 = scmp.eq.s32.totalorder %s16, 0
    %p57 = por %p55, %p56
    %s58 = ssub.s32 %s17, %s29
    %s59 = ssub.s32 %s18, %s25
    %s60 = sor.u32 %s58, %s59
    %p61 = scmp.eq.s32.totalorder %s60, 0
    %s63 = sadd.s32 %s62, 1
    %s64 = scalar_select %p61, %s62, %s63
    %p67 = pneg %p61
    %p68 = scmp.eq.s32.totalorder %s10, 1
    %p69 = por %p67, %p68
    %p70 = scmp.ne.s32.totalorder %s62, %s65
    %p71 = scmp.eq.s32.totalorder %s10, 0
    %p72 = por %p70, %p71
    %p73 = scmp.ne.s32.totalorder %s62, %s65
    %p74 = scmp.eq.s32.totalorder %s15, 1
    %p75 = por %p73, %p74
    %p76 = scmp.ne.s32.totalorder %s65, %s66
    %p77 = scmp.eq.s32.totalorder %s15, 0
    %p78 = por %p76, %p77
    %p79 = scmp.ne.s32.totalorder %s65, %s66
    %p80 = scmp.eq.s32.totalorder %s16, 1
    %p81 = por %p79, %p80
    %p83 = scmp.ne.s32.totalorder %s66, %s82
    %p84 = scmp.eq.s32.totalorder %s16, 0
    %p85 = por %p83, %p84
    %s87 = sadd.s32 %s86, 1
    %p90 = scmp.eq.s32.totalorder %s10, 1
    %p91 = scmp.ne.s32.totalorder %s86, %s88
    %p92 = scmp.eq.s32.totalorder %s10, 0
    %p93 = por %p91, %p92
    %p94 = scmp.ne.s32.totalorder %s86, %s88
    %p95 = scmp.eq.s32.totalorder %s15, 1
    %p96 = por %p94, %p95
    %p97 = scmp.ne.s32.totalorder %s88, %s89
    %p98 = scmp.eq.s32.totalorder %s15, 0
    %p99 = por %p97, %p98
    %p100 = scmp.ne.s32.totalorder %s88, %s89
    %p101 = scmp.eq.s32.totalorder %s16, 1
    %p102 = por %p100, %p101
    %p104 = scmp.ne.s32.totalorder %s89, %s103
    %p105 = scmp.eq.s32.totalorder %s16, 0
    %p106 = por %p104, %p105
    %s108 = sadd.s32 %s107, 1
    %p111 = scmp.eq.s32.totalorder %s10, 1
    %p112 = scmp.ne.s32.totalorder %s107, %s109
    %p113 = scmp.eq.s32.totalorder %s10, 0
    %p114 = por %p112, %p113
    %p115 = scmp.ne.s32.totalorder %s107, %s109
    %p116 = scmp.eq.s32.totalorder %s15, 1
    %p117 = por %p115, %p116
    %p118 = scmp.ne.s32.totalorder %s109, %s110
    %p119 = scmp.eq.s32.totalorder %s15, 0
    %p120 = por %p118, %p119
    %p121 = scmp.ne.s32.totalorder %s109, %s110
    %p122 = scmp.eq.s32.totalorder %s16, 1
    %p123 = por %p121, %p122
    %p125 = scmp.ne.s32.totalorder %s110, %s124
    %p126 = scmp.eq.s32.totalorder %s16, 0
    %p127 = por %p125, %p126
    %s128 = ssub.s32 %s17, %s29
    %s129 = ssub.s32 %s18, %s25
    %s130 = sor.u32 %s128, %s129
    %p131 = scmp.eq.s32.totalorder %s130, 0
    %s133 = sadd.s32 %s132, 1
    %s134 = scalar_select %p131, %s132, %s133
    %p137 = pneg %p131
    %p138 = scmp.eq.s32.totalorder %s10, 1
    %p139 = por %p137, %p138
    %p140 = scmp.ne.s32.totalorder %s132, %s135
    %p141 = scmp.eq.s32.totalorder %s10, 0
    %p142 = por %p140, %p141
    %p143 = scmp.ne.s32.totalorder %s132, %s135
    %p144 = scmp.eq.s32.totalorder %s15, 1
    %p145 = por %p143, %p144
    %p146 = scmp.ne.s32.totalorder %s135, %s136
    %p147 = scmp.eq.s32.totalorder %s15, 0
    %p148 = por %p146, %p147
    %p149 = scmp.ne.s32.totalorder %s135, %s136
    %p150 = scmp.eq.s32.totalorder %s16, 1
    %p151 = por %p149, %p150
    %p153 = scmp.ne.s32.totalorder %s136, %s152
    %p154 = scmp.eq.s32.totalorder %s16, 0
    %p155 = por %p153, %p154
    %p156 = scmp.le.s32.totalorder 1, %s10
    %p157 = scmp.lt.s32.totalorder %s10, 3
    %p158 = pnand %p156, %p157
    %p159 = pneg %p158
    // Predicated region
    $region9: #{plane_pred_head_forward.6} parent=5 // pred_check
      _
    $region10: #{plane_pred_head_forward.6} parent=5 // pred_check_branch
      %161 = sbr.rel (%p158) target = $region12
    $region11: #{plane_pred_head_forward.6} parent=5 // pred_region
      %s162 = ssub.s32 %s10, 1
      // Predicated region
      $region13: #{plane_pred_head_forward.6} parent=11 // pred_check
        %p163 = pneg %p99
      $region14: #{plane_pred_head_forward.6} parent=11 // pred_check_branch
        %165 = sbr.rel (%p163) target = $region16
      $region15: #{plane_pred_head_forward.6} parent=11 // pred_region
        _
      $region16: #{plane_pred_head_forward.6} parent=11 // pred_fallthru
        _
      // Predicated region
      $region17: #{plane_pred_head_forward.6} parent=11 // pred_check
        %p166 = pneg %p120
      $region18: #{plane_pred_head_forward.6} parent=11 // pred_check_branch
        %168 = sbr.rel (%p166) target = $region20
      $region19: #{plane_pred_head_forward.6} parent=11 // pred_region
        _
      $region20: #{plane_pred_head_forward.6} parent=11 // pred_fallthru
        _
    $region12: #{plane_pred_head_forward.6} parent=5 // pred_fallthru
      _
    %p169 = scmp.lt.s32.totalorder %s10, 2
    // Predicated region
    $region21: #{plane_pred_head_forward.6} parent=5 // pred_check
      %p170 = pneg %p169
    $region22: #{plane_pred_head_forward.6} parent=5 // pred_check_branch
      %172 = sbr.rel (%p170) target = $region24
    $region23: #{plane_pred_head_forward.6} parent=5 // pred_region
      // Predicated region
      $region25: #{plane_pred_head_forward.6} parent=23 // pred_check
        %p173 = pneg %p44
      $region26: #{plane_pred_head_forward.6} parent=23 // pred_check_branch
        %175 = sbr.rel (%p173) target = $region28
      $region27: #{plane_pred_head_forward.6} parent=23 // pred_region
        %s176 = smul.u32 4, %s18
        %p177 = scmp.lt.s32.totalorder %s17, 1
        %s178 = scalar_select %p177, %s17, 1
        %p179 = scmp.lt.s32.totalorder %s176, 3
        %s180 = scalar_select %p179, %s176, 3
        %s181 = smul.addr %s178, 4
        %s182 = sadd.s32 %s180, %s181
        %s183 = smul.addr %s182, 8
        %s184 = scalar_lea.vmem %s0, %s183
        %s185 = smul.u32 4, %s18
      $region28: #{plane_pred_head_forward.6} parent=23 // pred_fallthru
        _
      // Predicated region
      $region29: #{plane_pred_head_forward.6} parent=23 // pred_check
        %p186 = pneg %p72
      $region30: #{plane_pred_head_forward.6} parent=23 // pred_check_branch
        %188 = sbr.rel (%p186) target = $region32
      $region31: #{plane_pred_head_forward.6} parent=23 // pred_region
        %s189 = smul.u32 4, %s18
        %p190 = scmp.lt.s32.totalorder %s17, 1
        %s191 = scalar_select %p190, %s17, 1
        %p192 = scmp.lt.s32.totalorder %s189, 3
        %s193 = scalar_select %p192, %s189, 3
        %s194 = smul.addr %s191, 4
        %s195 = sadd.s32 %s193, %s194
        %s196 = smul.addr %s195, 4
        %s197 = scalar_lea.vmem %s1, %s196
        %s198 = smul.u32 4, %s18
      $region32: #{plane_pred_head_forward.6} parent=23 // pred_fallthru
        _
    $region24: #{plane_pred_head_forward.6} parent=5 // pred_fallthru
      _
    %p199 = scmp.le.s32.totalorder 1, %s10
    %p200 = scmp.lt.s32.totalorder %s10, 3
    %p201 = pnand %p199, %p200
    %p202 = pneg %p201
    // Predicated region
    $region33: #{plane_pred_head_forward.6} parent=5 // pred_check
      _
    $region34: #{plane_pred_head_forward.6} parent=5 // pred_check_branch
      %204 = sbr.rel (%p201) target = $region36
    $region35: #{plane_pred_head_forward.6} parent=5 // pred_region
      %s205 = ssub.s32 %s10, 1
      %s206 = smul.u32 4, %s20
      %p207 = scmp.lt.s32.totalorder %s19, 1
      %s208 = scalar_select %p207, %s19, 1
      %p209 = scmp.lt.s32.totalorder %s206, 3
      %s210 = scalar_select %p209, %s206, 3
      %s211 = smul.addr %s208, 4
      %s212 = sadd.s32 %s210, %s211
      %s213 = smul.addr %s212, 8
      %s214 = scalar_lea.vmem %s0, %s213
      %p215 = pneg %p50
      %p216 = pneg %p47
      %s217 = smul.u32 4, %s20
      %p218 = scmp.lt.s32.totalorder %s19, 1
      %s219 = scalar_select %p218, %s19, 1
      %p220 = scmp.lt.s32.totalorder %s217, 3
      %s221 = scalar_select %p220, %s217, 3
      %s222 = smul.addr %s219, 4
      %s223 = sadd.s32 %s221, %s222
      %s224 = smul.addr %s223, 4
      %s225 = scalar_lea.vmem %s1, %s224
      %p226 = pneg %p78
      %p227 = pneg %p75
      %p228 = pneg %p99
      %p229 = pneg %p96
      %p230 = pneg %p120
      %p231 = pneg %p117
      %p232 = pneg %p148
      %p233 = pneg %p145
      %s234 = smul.u32 4, %s20
      %p235 = scmp.lt.s32.totalorder %s19, 1
      %s236 = scalar_select %p235, %s19, 1
      %p237 = scmp.lt.s32.totalorder %s234, 3
      %s238 = scalar_select %p237, %s234, 3
      %s239 = smul.addr %s236, 4
      %s240 = sadd.s32 %s238, %s239
      %s241 = smul.addr %s240, 8
      %s242 = scalar_lea.vmem %s4, %s241
      %s243 = smul.u32 4, %s20
      %p244 = scmp.lt.s32.totalorder %s19, 1
      %s245 = scalar_select %p244, %s19, 1
      %p246 = scmp.lt.s32.totalorder %s243, 3
      %s247 = scalar_select %p246, %s243, 3
      %s248 = smul.addr %s245, 4
      %s249 = sadd.s32 %s247, %s248
      %s250 = smul.addr %s249, 8
      %s251 = scalar_lea.vmem %s0, %s250
      %s252 = smul.u32 4, %s20
      %s253 = smul.u32 4, %s20
      %p254 = scmp.lt.s32.totalorder %s19, 1
      %s255 = scalar_select %p254, %s19, 1
      %p256 = scmp.lt.s32.totalorder %s253, 3
      %s257 = scalar_select %p256, %s253, 3
      %s258 = smul.addr %s255, 4
      %s259 = sadd.s32 %s257, %s258
      %s260 = smul.addr %s259, 4
      %s261 = scalar_lea.vmem %s1, %s260
      %s262 = smul.u32 4, %s20
      %s263 = smul.u32 4, %s20
      %p264 = scmp.lt.s32.totalorder %s19, 1
      %s265 = scalar_select %p264, %s19, 1
      %p266 = scmp.lt.s32.totalorder %s263, 3
      %s267 = scalar_select %p266, %s263, 3
      %s268 = smul.addr %s265, 4
      %s269 = sadd.s32 %s267, %s268
      %s270 = smul.addr %s269, 8
      %s271 = scalar_lea.vmem %s4, %s270
      %s272 = smul.u32 4, %s20
      %v273 = vld [vmem:[%s251] sm:$0xff]
      %v274 = vld [vmem:[%s251 + $0x8] sm:$0xff]
      %v275 = vld [vmem:[%s251 + $0x10] sm:$0xff]
      %v276 = vld [vmem:[%s251 + $0x18] sm:$0xff]
      %v277 = vld [vmem:[%s2] sm:$0xff]
      %v278 = vld [vmem:[%s261] sm:$0xff]
      %v279 = vld [vmem:[%s261 + $0x8] sm:$0xff]
      %v282 = vcombine.high %v278, %v278
      %v283 = vcombine.high %v279, %v279
      %vm284 = vcmask 31744
      %v286 = vsel %vm284, %v277, 0
      %vm288 = vcmask 1043456
      %v289 = vsel %vm288, %v278, 0
      %v291 = vsel %vm288, %v282, 0
      %v293 = vsel %vm288, %v279, 0
      %v295 = vsel %vm288, %v283, 0
      %297 = vmatprep.subr.mxu0 0.0
      %298 = vmatpush1.msra.mxu0 0.0
      %299 = vmatprep.subr.mxu0 0.0
      %300 = vmatpush1.msra.mxu0 0.0
      %301 = vmatprep.subr.mxu0 0.0
      %302 = vmatpush1.msra.mxu0 0.0
      %303 = vmatprep.subr.mxu0 0.0
      %304 = vmatpush1.msra.mxu0 0.0
      %305 = vmatprep.subr.mxu0 0.0
      %306 = vmatpush1.msra.mxu0 0.0
      %307 = vmatprep.subr.mxu0 0.0
      %308 = vmatpush1.msra.mxu0 0.0
      %309 = vmatprep.subr.mxu0 0.0
      %310 = vmatpush1.msra.mxu0 0.0
      %311 = vmatprep.subr.mxu0 0.0
      %312 = vmatpush1.msra.mxu0 0.0
      %313 = vmatprep.subr.mxu0 0.0
      %314 = vmatpush1.msra.mxu0 0.0
      %315 = vmatprep.subr.mxu0 0.0
      %316 = vmatpush1.msra.mxu0 0.0
      %317 = vmatprep.subr.mxu0 0.0
      %318 = vmatpush1.msra.mxu0 0.0
      %319 = vmatprep.subr.mxu0 0.0
      %320 = vmatpush1.msra.mxu0 0.0
      %321 = vmatprep.subr.mxu0 0.0
      %322 = vmatpush1.msra.mxu0 0.0
      %323 = vmatprep.subr.mxu0 0.0
      %324 = vmatpush1.msra.mxu0 0.0
      %325 = vmatprep.subr.mxu0 0.0
      %326 = vmatpush1.msra.mxu0 0.0
      %327 = vmatprep.subr.mxu0 %v291
      %328 = vmatpush1.msra.mxu0 %v289
      %329 = vmatprep.subr.mxu0 0.0
      %330 = vmatpush2.msra.mxu0 0.0
      %331 = vmatprep.subr.mxu0 0.0
      %332 = vmatpush2.msra.mxu0 0.0
      %333 = vmatprep.subr.mxu0 0.0
      %334 = vmatpush2.msra.mxu0 0.0
      %335 = vmatprep.subr.mxu0 0.0
      %336 = vmatpush2.msra.mxu0 0.0
      %337 = vmatprep.subr.mxu0 0.0
      %338 = vmatpush2.msra.mxu0 0.0
      %339 = vmatprep.subr.mxu0 0.0
      %340 = vmatpush2.msra.mxu0 0.0
      %341 = vmatprep.subr.mxu0 0.0
      %342 = vmatpush2.msra.mxu0 0.0
      %343 = vmatprep.subr.mxu0 0.0
      %344 = vmatpush2.msra.mxu0 0.0
      %345 = vmatprep.subr.mxu0 0.0
      %346 = vmatpush2.msra.mxu0 0.0
      %347 = vmatprep.subr.mxu0 0.0
      %348 = vmatpush2.msra.mxu0 0.0
      %349 = vmatprep.subr.mxu0 0.0
      %350 = vmatpush2.msra.mxu0 0.0
      %351 = vmatprep.subr.mxu0 0.0
      %352 = vmatpush2.msra.mxu0 0.0
      %353 = vmatprep.subr.mxu0 0.0
      %354 = vmatpush2.msra.mxu0 0.0
      %355 = vmatprep.subr.mxu0 0.0
      %356 = vmatpush2.msra.mxu0 0.0
      %357 = vmatprep.subr.mxu0 0.0
      %358 = vmatpush2.msra.mxu0 0.0
      %359 = vmatprep.subr.mxu0 0.0
      %360 = vmatpush2.msra.mxu0 0.0
      %361 = vmatprep.mubr.f32.mxu0 0.0
      %362 = vmatmul.mubr.f32.gmra.mxu0 %v286
      %v363 = vpop.f32.mrf.mxu0
      %v364 = vadd.f32 0.0, %v363
      %v365 = vpop.f32.mrf.mxu0
      %v366 = vadd.f32 0.0, %v365
      %367 = vdwg.mxu0
      %368 = vmatprep.subr.mxu0 0.0
      %369 = vmatpush1.msra.mxu0 0.0
      %370 = vmatprep.subr.mxu0 0.0
      %371 = vmatpush1.msra.mxu0 0.0
      %372 = vmatprep.subr.mxu0 0.0
      %373 = vmatpush1.msra.mxu0 0.0
      %374 = vmatprep.subr.mxu0 0.0
      %375 = vmatpush1.msra.mxu0 0.0
      %376 = vmatprep.subr.mxu0 0.0
      %377 = vmatpush1.msra.mxu0 0.0
      %378 = vmatprep.subr.mxu0 0.0
      %379 = vmatpush1.msra.mxu0 0.0
      %380 = vmatprep.subr.mxu0 0.0
      %381 = vmatpush1.msra.mxu0 0.0
      %382 = vmatprep.subr.mxu0 0.0
      %383 = vmatpush1.msra.mxu0 0.0
      %384 = vmatprep.subr.mxu0 0.0
      %385 = vmatpush1.msra.mxu0 0.0
      %386 = vmatprep.subr.mxu0 0.0
      %387 = vmatpush1.msra.mxu0 0.0
      %388 = vmatprep.subr.mxu0 0.0
      %389 = vmatpush1.msra.mxu0 0.0
      %390 = vmatprep.subr.mxu0 0.0
      %391 = vmatpush1.msra.mxu0 0.0
      %392 = vmatprep.subr.mxu0 0.0
      %393 = vmatpush1.msra.mxu0 0.0
      %394 = vmatprep.subr.mxu0 0.0
      %395 = vmatpush1.msra.mxu0 0.0
      %396 = vmatprep.subr.mxu0 0.0
      %397 = vmatpush1.msra.mxu0 0.0
      %398 = vmatprep.subr.mxu0 %v295
      %399 = vmatpush1.msra.mxu0 %v293
      %400 = vmatprep.subr.mxu0 0.0
      %401 = vmatpush2.msra.mxu0 0.0
      %402 = vmatprep.subr.mxu0 0.0
      %403 = vmatpush2.msra.mxu0 0.0
      %404 = vmatprep.subr.mxu0 0.0
      %405 = vmatpush2.msra.mxu0 0.0
      %406 = vmatprep.subr.mxu0 0.0
      %407 = vmatpush2.msra.mxu0 0.0
      %408 = vmatprep.subr.mxu0 0.0
      %409 = vmatpush2.msra.mxu0 0.0
      %410 = vmatprep.subr.mxu0 0.0
      %411 = vmatpush2.msra.mxu0 0.0
      %412 = vmatprep.subr.mxu0 0.0
      %413 = vmatpush2.msra.mxu0 0.0
      %414 = vmatprep.subr.mxu0 0.0
      %415 = vmatpush2.msra.mxu0 0.0
      %416 = vmatprep.subr.mxu0 0.0
      %417 = vmatpush2.msra.mxu0 0.0
      %418 = vmatprep.subr.mxu0 0.0
      %419 = vmatpush2.msra.mxu0 0.0
      %420 = vmatprep.subr.mxu0 0.0
      %421 = vmatpush2.msra.mxu0 0.0
      %422 = vmatprep.subr.mxu0 0.0
      %423 = vmatpush2.msra.mxu0 0.0
      %424 = vmatprep.subr.mxu0 0.0
      %425 = vmatpush2.msra.mxu0 0.0
      %426 = vmatprep.subr.mxu0 0.0
      %427 = vmatpush2.msra.mxu0 0.0
      %428 = vmatprep.subr.mxu0 0.0
      %429 = vmatpush2.msra.mxu0 0.0
      %430 = vmatprep.subr.mxu0 0.0
      %431 = vmatpush2.msra.mxu0 0.0
      %432 = vmatprep.mubr.f32.mxu0 0.0
      %433 = vmatmul.mubr.f32.gmra.mxu0 %v286
      %v434 = vpop.f32.mrf.mxu0
      %v435 = vadd.f32 0.0, %v434
      %v436 = vpop.f32.mrf.mxu0
      %v437 = vadd.f32 0.0, %v436
      %438 = vdwg.mxu0
      %v439 = vadd.f32 %v273, %v364
      %v440 = vadd.f32 %v274, %v366
      %v441 = vadd.f32 %v275, %v435
      %v442 = vadd.f32 %v276, %v437
      %v443 = vld [vmem:[%s3] sm:$0xff]
      %445 = vset.pattern.permute.xlu0 0
      %446 = vperm.xlu0 %445, %v443
      %v447 = vpop.permute.xlu0 %446
      %v449 = vadd.f32 %v439, %v447
      %v450 = vadd.f32 %v440, %v447
      %v451 = vadd.f32 %v441, %v447
      %v452 = vadd.f32 %v442, %v447
      %v453 = vmax.f32 %v449, 0.0
      %v454 = vmax.f32 %v450, 0.0
      %v455 = vmax.f32 %v451, 0.0
      %v456 = vmax.f32 %v452, 0.0
      %457 = vst [vmem:[%s271] sm:$0xff] %v453
      %458 = vst [vmem:[%s271 + $0x8] sm:$0xff] %v454
      %459 = vst [vmem:[%s271 + $0x10] sm:$0xff] %v455
      %460 = vst [vmem:[%s271 + $0x18] sm:$0xff] %v456
      %s461 = smul.u32 4, %s20
      %p462 = scmp.lt.s32.totalorder %s19, 1
      %s463 = scalar_select %p462, %s19, 1
      %p464 = scmp.lt.s32.totalorder %s461, 3
      %s465 = scalar_select %p464, %s461, 3
      %s466 = smul.addr %s463, 4
      %s467 = sadd.s32 %s465, %s466
      %s468 = smul.addr %s467, 8
      %s469 = scalar_lea.vmem %s4, %s468
      // Predicated region
      $region37: #{plane_pred_head_forward.6} parent=35 // pred_check
        %p470 = pneg %p145
      $region38: #{plane_pred_head_forward.6} parent=35 // pred_check_branch
        %472 = sbr.rel (%p470) target = $region40
      $region39: #{plane_pred_head_forward.6} parent=35 // pred_region
        %s473 = smul.u32 4, %s20
      $region40: #{plane_pred_head_forward.6} parent=35 // pred_fallthru
        _
    $region36: #{plane_pred_head_forward.6} parent=5 // pred_fallthru
      _
    %p474 = scmp.le.s32.totalorder 2, %s10
    // Predicated region
    $region41: #{plane_pred_head_forward.6} parent=5 // pred_check
      %p475 = pneg %p474
    $region42: #{plane_pred_head_forward.6} parent=5 // pred_check_branch
      %477 = sbr.rel (%p475) target = $region44
    $region43: #{plane_pred_head_forward.6} parent=5 // pred_region
      %s478 = ssub.s32 %s10, 2
      // Predicated region
      $region45: #{plane_pred_head_forward.6} parent=43 // pred_check
        %p479 = pneg %p151
      $region46: #{plane_pred_head_forward.6} parent=43 // pred_check_branch
        %481 = sbr.rel (%p479) target = $region48
      $region47: #{plane_pred_head_forward.6} parent=43 // pred_region
        %s482 = smul.u32 4, %s22
        %p483 = scmp.lt.s32.totalorder %s21, 1
        %s484 = scalar_select %p483, %s21, 1
        %p485 = scmp.lt.s32.totalorder %s482, 3
        %s486 = scalar_select %p485, %s482, 3
        %s487 = smul.addr %s484, 4
        %s488 = sadd.s32 %s486, %s487
        %s489 = smul.addr %s488, 8
        %s490 = scalar_lea.vmem %s4, %s489
      $region48: #{plane_pred_head_forward.6} parent=43 // pred_fallthru
        _
    $region44: #{plane_pred_head_forward.6} parent=5 // pred_fallthru
      _
  $region6: #{plane_pred_head_forward.6} parent=0 // loop_footer
    %s14 = sadd.s32 1, %s10
  $region7: #{plane_pred_head_forward.6} parent=0 // loop_footer_branch
    %9 = sbr.rel target = $region3
  $region8: #{plane_pred_head_forward.6} parent=0 // loop_exit
    _

// kernel: plane_pred_head_forward.7
$region0: #{plane_pred_head_forward.7}
  #allocation0 [shape = 'u32[]', space=smem, size = 0x4, offset = 0x4, fixed_abs, tag = 'smem constant byte address 0x4 - core index']
  #allocation1 [shape = 'u32[144,128]{1,0:T(1,128)}', space=vmem, size = 0x12000, scoped, tag = 'internal scratch']
  %s0 = inlined_call_operand.vmem [shape: f32[2,8,192], index: 0, kind: input, shape index: {}]
  %s1 = inlined_call_operand.vmem [shape: f32[2,8,192], index: 1, kind: input, shape index: {}]
  %s2 = inlined_call_operand.vmem [shape: f32[8,8,192], index: 2, kind: input, shape index: {}]
  %s3 = inlined_call_operand.vmem [shape: f32[8,8,192], index: 3, kind: input, shape index: {}]
  %s4 = inlined_call_operand.vmem [shape: f32[2,8,192], index: 4, kind: output, shape index: {0}]
  %s5 = inlined_call_operand.vmem [shape: f32[2,8,192], index: 5, kind: output, shape index: {1}]
  %6 = xla_tuple %s4, %s5
  %s7 = sld [smem:[#allocation0]]
  $region57: #{plane_pred_head_forward.7} parent=0
    _
  %s9 = ssub.s32 1, %s7
  %s10 = scalar_select 0, %s9, %s7
  loop: start=0, step=1, limit=4
  $region2: #{plane_pred_head_forward.7} parent=0 // loop_pre_header
    _
  $region3: #{plane_pred_head_forward.7} parent=0 // loop_header
    %s12 = sphi 0, %s16
    %p13 = scmp.ge.s32.totalorder %s12, 4
    %s19 = sphi 0, %s31
    %s20 = sphi 0, %s27
    %s21 = sphi 0, %s19
    %s22 = sphi 0, %s20
    %s23 = sphi 0, %s21
    %s24 = sphi 0, %s22
    %s36 = sphi 0, %s38
    %s39 = sphi 0, %s36
    %s40 = sphi 0, %s39
    %s56 = sphi 0, %s40
    %s64 = sphi 0, %s66
    %s67 = sphi 0, %s64
    %s68 = sphi 0, %s67
    %s84 = sphi 0, %s68
    %s90 = sphi 0, %s92
    %s93 = sphi 0, %s90
    %s94 = sphi 0, %s93
    %s110 = sphi 0, %s94
    %s116 = sphi 0, %s118
    %s119 = sphi 0, %s116
    %s120 = sphi 0, %s119
    %s136 = sphi 0, %s120
    %s144 = sphi 0, %s146
    %s147 = sphi 0, %s144
    %s148 = sphi 0, %s147
    %s164 = sphi 0, %s148
    %s172 = sphi 0, %s174
    %s175 = sphi 0, %s172
    %s176 = sphi 0, %s175
    %s192 = sphi 0, %s176
  $region4: #{plane_pred_head_forward.7} parent=0 // loop_header_branch
    %15 = sbr.rel (%p13) target = $region8
  $region5: #{plane_pred_head_forward.7} parent=0 // loop_body
    %s17 = ssub.s32 %s12, 1
    %s18 = ssub.s32 %s12, 2
    %s25 = sadd.s32 1, %s20
    %p26 = scmp.ge.s32.totalorder %s25, 2
    %s27 = scalar_select %p26, 0, %s25
    %s28 = sadd.s32 1, %s19
    %s29 = scalar_select %p26, %s28, %s19
    %p30 = scmp.ge.s32.totalorder %s29, 1
    %s31 = scalar_select %p30, 0, %s29
    %s32 = ssub.s32 %s20, %s27
    %s33 = ssub.s32 %s19, %s31
    %s34 = sor.u32 %s32, %s33
    %p35 = scmp.eq.s32.totalorder %s34, 0
    %s37 = sadd.s32 %s36, 1
    %s38 = scalar_select %p35, %s36, %s37
    %p41 = pneg %p35
    %p42 = scmp.eq.s32.totalorder %s12, 1
    %p43 = por %p41, %p42
    %p44 = scmp.ne.s32.totalorder %s36, %s39
    %p45 = scmp.eq.s32.totalorder %s12, 0
    %p46 = por %p44, %p45
    %p47 = scmp.ne.s32.totalorder %s36, %s39
    %p48 = scmp.eq.s32.totalorder %s17, 1
    %p49 = por %p47, %p48
    %p50 = scmp.ne.s32.totalorder %s39, %s40
    %p51 = scmp.eq.s32.totalorder %s17, 0
    %p52 = por %p50, %p51
    %p53 = scmp.ne.s32.totalorder %s39, %s40
    %p54 = scmp.eq.s32.totalorder %s18, 1
    %p55 = por %p53, %p54
    %p57 = scmp.ne.s32.totalorder %s40, %s56
    %p58 = scmp.eq.s32.totalorder %s18, 0
    %p59 = por %p57, %p58
    %s60 = ssub.s32 %s20, %s27
    %s61 = ssub.s32 %s19, %s31
    %s62 = sor.u32 %s60, %s61
    %p63 = scmp.eq.s32.totalorder %s62, 0
    %s65 = sadd.s32 %s64, 1
    %s66 = scalar_select %p63, %s64, %s65
    %p69 = pneg %p63
    %p70 = scmp.eq.s32.totalorder %s12, 1
    %p71 = por %p69, %p70
    %p72 = scmp.ne.s32.totalorder %s64, %s67
    %p73 = scmp.eq.s32.totalorder %s12, 0
    %p74 = por %p72, %p73
    %p75 = scmp.ne.s32.totalorder %s64, %s67
    %p76 = scmp.eq.s32.totalorder %s17, 1
    %p77 = por %p75, %p76
    %p78 = scmp.ne.s32.totalorder %s67, %s68
    %p79 = scmp.eq.s32.totalorder %s17, 0
    %p80 = por %p78, %p79
    %p81 = scmp.ne.s32.totalorder %s67, %s68
    %p82 = scmp.eq.s32.totalorder %s18, 1
    %p83 = por %p81, %p82
    %p85 = scmp.ne.s32.totalorder %s68, %s84
    %p86 = scmp.eq.s32.totalorder %s18, 0
    %p87 = por %p85, %p86
    %s88 = ssub.s32 %s19, %s31
    %p89 = scmp.eq.s32.totalorder %s88, 0
    %s91 = sadd.s32 %s90, 1
    %s92 = scalar_select %p89, %s90, %s91
    %p95 = pneg %p89
    %p96 = scmp.eq.s32.totalorder %s12, 1
    %p97 = por %p95, %p96
    %p98 = scmp.ne.s32.totalorder %s90, %s93
    %p99 = scmp.eq.s32.totalorder %s12, 0
    %p100 = por %p98, %p99
    %p101 = scmp.ne.s32.totalorder %s90, %s93
    %p102 = scmp.eq.s32.totalorder %s17, 1
    %p103 = por %p101, %p102
    %p104 = scmp.ne.s32.totalorder %s93, %s94
    %p105 = scmp.eq.s32.totalorder %s17, 0
    %p106 = por %p104, %p105
    %p107 = scmp.ne.s32.totalorder %s93, %s94
    %p108 = scmp.eq.s32.totalorder %s18, 1
    %p109 = por %p107, %p108
    %p111 = scmp.ne.s32.totalorder %s94, %s110
    %p112 = scmp.eq.s32.totalorder %s18, 0
    %p113 = por %p111, %p112
    %s114 = ssub.s32 %s19, %s31
    %p115 = scmp.eq.s32.totalorder %s114, 0
    %s117 = sadd.s32 %s116, 1
    %s118 = scalar_select %p115, %s116, %s117
    %p121 = pneg %p115
    %p122 = scmp.eq.s32.totalorder %s12, 1
    %p123 = por %p121, %p122
    %p124 = scmp.ne.s32.totalorder %s116, %s119
    %p125 = scmp.eq.s32.totalorder %s12, 0
    %p126 = por %p124, %p125
    %p127 = scmp.ne.s32.totalorder %s116, %s119
    %p128 = scmp.eq.s32.totalorder %s17, 1
    %p129 = por %p127, %p128
    %p130 = scmp.ne.s32.totalorder %s119, %s120
    %p131 = scmp.eq.s32.totalorder %s17, 0
    %p132 = por %p130, %p131
    %p133 = scmp.ne.s32.totalorder %s119, %s120
    %p134 = scmp.eq.s32.totalorder %s18, 1
    %p135 = por %p133, %p134
    %p137 = scmp.ne.s32.totalorder %s120, %s136
    %p138 = scmp.eq.s32.totalorder %s18, 0
    %p139 = por %p137, %p138
    %s140 = ssub.s32 %s20, %s27
    %s141 = ssub.s32 %s19, %s31
    %s142 = sor.u32 %s140, %s141
    %p143 = scmp.eq.s32.totalorder %s142, 0
    %s145 = sadd.s32 %s144, 1
    %s146 = scalar_select %p143, %s144, %s145
    %p149 = pneg %p143
    %p150 = scmp.eq.s32.totalorder %s12, 1
    %p151 = por %p149, %p150
    %p152 = scmp.ne.s32.totalorder %s144, %s147
    %p153 = scmp.eq.s32.totalorder %s12, 0
    %p154 = por %p152, %p153
    %p155 = scmp.ne.s32.totalorder %s144, %s147
    %p156 = scmp.eq.s32.totalorder %s17, 1
    %p157 = por %p155, %p156
    %p158 = scmp.ne.s32.totalorder %s147, %s148
    %p159 = scmp.eq.s32.totalorder %s17, 0
    %p160 = por %p158, %p159
    %p161 = scmp.ne.s32.totalorder %s147, %s148
    %p162 = scmp.eq.s32.totalorder %s18, 1
    %p163 = por %p161, %p162
    %p165 = scmp.ne.s32.totalorder %s148, %s164
    %p166 = scmp.eq.s32.totalorder %s18, 0
    %p167 = por %p165, %p166
    %s168 = ssub.s32 %s20, %s27
    %s169 = ssub.s32 %s19, %s31
    %s170 = sor.u32 %s168, %s169
    %p171 = scmp.eq.s32.totalorder %s170, 0
    %s173 = sadd.s32 %s172, 1
    %s174 = scalar_select %p171, %s172, %s173
    %p177 = pneg %p171
    %p178 = scmp.eq.s32.totalorder %s12, 1
    %p179 = por %p177, %p178
    %p180 = scmp.ne.s32.totalorder %s172, %s175
    %p181 = scmp.eq.s32.totalorder %s12, 0
    %p182 = por %p180, %p181
    %p183 = scmp.ne.s32.totalorder %s172, %s175
    %p184 = scmp.eq.s32.totalorder %s17, 1
    %p185 = por %p183, %p184
    %p186 = scmp.ne.s32.totalorder %s175, %s176
    %p187 = scmp.eq.s32.totalorder %s17, 0
    %p188 = por %p186, %p187
    %p189 = scmp.ne.s32.totalorder %s175, %s176
    %p190 = scmp.eq.s32.totalorder %s18, 1
    %p191 = por %p189, %p190
    %p193 = scmp.ne.s32.totalorder %s176, %s192
    %p194 = scmp.eq.s32.totalorder %s18, 0
    %p195 = por %p193, %p194
    %p196 = scmp.le.s32.totalorder 1, %s12
    %p197 = scmp.lt.s32.totalorder %s12, 3
    %p198 = pnand %p196, %p197
    %p199 = pneg %p198
    // Predicated region
    $region9: #{plane_pred_head_forward.7} parent=5 // pred_check
      _
    $region10: #{plane_pred_head_forward.7} parent=5 // pred_check_branch
      %201 = sbr.rel (%p198) target = $region12
    $region11: #{plane_pred_head_forward.7} parent=5 // pred_region
      %s202 = ssub.s32 %s12, 1
      // Predicated region
      $region13: #{plane_pred_head_forward.7} parent=11 // pred_check
        %p203 = pneg %p106
      $region14: #{plane_pred_head_forward.7} parent=11 // pred_check_branch
        %205 = sbr.rel (%p203) target = $region16
      $region15: #{plane_pred_head_forward.7} parent=11 // pred_region
        %s206 = smul.u32 2, %s21
        %p207 = scmp.lt.s32.totalorder %s206, 1
        %s208 = scalar_select %p207, %s206, 1
        %s209 = smul.addr %s208, 8
        %s210 = scalar_lea.vmem %s2, %s209
        %s211 = smul.u32 2, %s21
      $region16: #{plane_pred_head_forward.7} parent=11 // pred_fallthru
        _
      // Predicated region
      $region17: #{plane_pred_head_forward.7} parent=11 // pred_check
        %p212 = pneg %p132
      $region18: #{plane_pred_head_forward.7} parent=11 // pred_check_branch
        %214 = sbr.rel (%p212) target = $region20
      $region19: #{plane_pred_head_forward.7} parent=11 // pred_region
        %s215 = smul.u32 2, %s21
        %p216 = scmp.lt.s32.totalorder %s215, 1
        %s217 = scalar_select %p216, %s215, 1
        %s218 = smul.addr %s217, 8
        %s219 = scalar_lea.vmem %s3, %s218
        %s220 = smul.u32 2, %s21
      $region20: #{plane_pred_head_forward.7} parent=11 // pred_fallthru
        _
    $region12: #{plane_pred_head_forward.7} parent=5 // pred_fallthru
      _
    %p221 = scmp.lt.s32.totalorder %s12, 2
    // Predicated region
    $region21: #{plane_pred_head_forward.7} parent=5 // pred_check
      %p222 = pneg %p221
    $region22: #{plane_pred_head_forward.7} parent=5 // pred_check_branch
      %224 = sbr.rel (%p222) target = $region24
    $region23: #{plane_pred_head_forward.7} parent=5 // pred_region
      // Predicated region
      $region25: #{plane_pred_head_forward.7} parent=23 // pred_check
        %p225 = pneg %p46
      $region26: #{plane_pred_head_forward.7} parent=23 // pred_check_branch
        %227 = sbr.rel (%p225) target = $region28
      $region27: #{plane_pred_head_forward.7} parent=23 // pred_region
        %s228 = smul.u32 2, %s19
        %p229 = scmp.lt.s32.totalorder %s20, 1
        %s230 = scalar_select %p229, %s20, 1
        %p231 = scmp.lt.s32.totalorder %s228, 1
        %s232 = scalar_select %p231, %s228, 1
        %s233 = smul.addr %s230, 2
        %s234 = sadd.s32 %s232, %s233
        %s235 = smul.addr %s234, 8
        %s236 = scalar_lea.vmem %s0, %s235
        %s237 = smul.u32 2, %s19
      $region28: #{plane_pred_head_forward.7} parent=23 // pred_fallthru
        _
      // Predicated region
      $region29: #{plane_pred_head_forward.7} parent=23 // pred_check
        %p238 = pneg %p74
      $region30: #{plane_pred_head_forward.7} parent=23 // pred_check_branch
        %240 = sbr.rel (%p238) target = $region32
      $region31: #{plane_pred_head_forward.7} parent=23 // pred_region
        %s241 = smul.u32 2, %s19
        %p242 = scmp.lt.s32.totalorder %s20, 1
        %s243 = scalar_select %p242, %s20, 1
        %p244 = scmp.lt.s32.totalorder %s241, 1
        %s245 = scalar_select %p244, %s241, 1
        %s246 = smul.addr %s243, 2
        %s247 = sadd.s32 %s245, %s246
        %s248 = smul.addr %s247, 8
        %s249 = scalar_lea.vmem %s1, %s248
        %s250 = smul.u32 2, %s19
      $region32: #{plane_pred_head_forward.7} parent=23 // pred_fallthru
        _
    $region24: #{plane_pred_head_forward.7} parent=5 // pred_fallthru
      _
    %p251 = scmp.le.s32.totalorder 1, %s12
    %p252 = scmp.lt.s32.totalorder %s12, 3
    %p253 = pnand %p251, %p252
    %p254 = pneg %p253
    // Predicated region
    $region33: #{plane_pred_head_forward.7} parent=5 // pred_check
      _
    $region34: #{plane_pred_head_forward.7} parent=5 // pred_check_branch
      %256 = sbr.rel (%p253) target = $region36
    $region35: #{plane_pred_head_forward.7} parent=5 // pred_region
      %s257 = ssub.s32 %s12, 1
      %s258 = smul.u32 2, %s21
      %p259 = scmp.lt.s32.totalorder %s22, 1
      %s260 = scalar_select %p259, %s22, 1
      %p261 = scmp.lt.s32.totalorder %s258, 1
      %s262 = scalar_select %p261, %s258, 1
      %s263 = smul.addr %s260, 2
      %s264 = sadd.s32 %s262, %s263
      %s265 = smul.addr %s264, 8
      %s266 = scalar_lea.vmem %s0, %s265
      %p267 = pneg %p52
      %p268 = pneg %p49
      %s269 = smul.u32 2, %s21
      %p270 = scmp.lt.s32.totalorder %s22, 1
      %s271 = scalar_select %p270, %s22, 1
      %p272 = scmp.lt.s32.totalorder %s269, 1
      %s273 = scalar_select %p272, %s269, 1
      %s274 = smul.addr %s271, 2
      %s275 = sadd.s32 %s273, %s274
      %s276 = smul.addr %s275, 8
      %s277 = scalar_lea.vmem %s1, %s276
      %p278 = pneg %p80
      %p279 = pneg %p77
      %s280 = smul.u32 2, %s21
      %p281 = scmp.lt.s32.totalorder %s280, 1
      %s282 = scalar_select %p281, %s280, 1
      %s283 = smul.addr %s282, 8
      %s284 = scalar_lea.vmem %s2, %s283
      %p285 = pneg %p106
      %p286 = pneg %p103
      %s287 = smul.u32 2, %s21
      %p288 = scmp.lt.s32.totalorder %s287, 1
      %s289 = scalar_select %p288, %s287, 1
      %s290 = smul.addr %s289, 8
      %s291 = scalar_lea.vmem %s3, %s290
      %p292 = pneg %p132
      %p293 = pneg %p129
      %p294 = pneg %p160
      %p295 = pneg %p157
      %s296 = smul.u32 2, %s21
      %p297 = scmp.lt.s32.totalorder %s22, 1
      %s298 = scalar_select %p297, %s22, 1
      %p299 = scmp.lt.s32.totalorder %s296, 1
      %s300 = scalar_select %p299, %s296, 1
      %s301 = smul.addr %s298, 2
      %s302 = sadd.s32 %s300, %s301
      %s303 = smul.addr %s302, 8
      %s304 = scalar_lea.vmem %s4, %s303
      %p305 = pneg %p188
      %p306 = pneg %p185
      %s307 = smul.u32 2, %s21
      %p308 = scmp.lt.s32.totalorder %s22, 1
      %s309 = scalar_select %p308, %s22, 1
      %p310 = scmp.lt.s32.totalorder %s307, 1
      %s311 = scalar_select %p310, %s307, 1
      %s312 = smul.addr %s309, 2
      %s313 = sadd.s32 %s311, %s312
      %s314 = smul.addr %s313, 8
      %s315 = scalar_lea.vmem %s5, %s314
      %s316 = smul.u32 2, %s21
      %p317 = scmp.lt.s32.totalorder %s22, 1
      %s318 = scalar_select %p317, %s22, 1
      %p319 = scmp.lt.s32.totalorder %s316, 1
      %s320 = scalar_select %p319, %s316, 1
      %s321 = smul.addr %s318, 2
      %s322 = sadd.s32 %s320, %s321
      %s323 = smul.addr %s322, 8
      %s324 = scalar_lea.vmem %s0, %s323
      %s325 = smul.u32 2, %s21
      %s326 = smul.u32 2, %s21
      %p327 = scmp.lt.s32.totalorder %s22, 1
      %s328 = scalar_select %p327, %s22, 1
      %p329 = scmp.lt.s32.totalorder %s326, 1
      %s330 = scalar_select %p329, %s326, 1
      %s331 = smul.addr %s328, 2
      %s332 = sadd.s32 %s330, %s331
      %s333 = smul.addr %s332, 8
      %s334 = scalar_lea.vmem %s1, %s333
      %s335 = smul.u32 2, %s21
      %s336 = smul.u32 2, %s21
      %p337 = scmp.lt.s32.totalorder %s336, 1
      %s338 = scalar_select %p337, %s336, 1
      %s339 = smul.addr %s338, 8
      %s340 = scalar_lea.vmem %s2, %s339
      %s341 = smul.u32 2, %s21
      %s342 = smul.u32 2, %s21
      %p343 = scmp.lt.s32.totalorder %s342, 1
      %s344 = scalar_select %p343, %s342, 1
      %s345 = smul.addr %s344, 8
      %s346 = scalar_lea.vmem %s3, %s345
      %s347 = smul.u32 2, %s21
      %s348 = smul.u32 2, %s21
      %p349 = scmp.lt.s32.totalorder %s22, 1
      %s350 = scalar_select %p349, %s22, 1
      %p351 = scmp.lt.s32.totalorder %s348, 1
      %s352 = scalar_select %p351, %s348, 1
      %s353 = smul.addr %s350, 2
      %s354 = sadd.s32 %s352, %s353
      %s355 = smul.addr %s354, 8
      %s356 = scalar_lea.vmem %s4, %s355
      %s357 = smul.u32 2, %s21
      %s358 = smul.u32 2, %s21
      %p359 = scmp.lt.s32.totalorder %s22, 1
      %s360 = scalar_select %p359, %s22, 1
      %p361 = scmp.lt.s32.totalorder %s358, 1
      %s362 = scalar_select %p361, %s358, 1
      %s363 = smul.addr %s360, 2
      %s364 = sadd.s32 %s362, %s363
      %s365 = smul.addr %s364, 8
      %s366 = scalar_lea.vmem %s5, %s365
      %s367 = smul.u32 2, %s21
      %v368 = vld [vmem:[%s324] sm:$0xff]
      %v369 = vld [vmem:[%s324 + $0x8] sm:$0xff]
      %v370 = vld [vmem:[%s334] sm:$0xff]
      %v371 = vld [vmem:[%s334 + $0x8] sm:$0xff]
      %v372 = vld [vmem:[%s340] sm:$0xff]
      %v373 = vld [vmem:[%s340 + $0x8] sm:$0xff]
      %v374 = vld [vmem:[%s346] sm:$0xff]
      %v375 = vld [vmem:[%s346 + $0x8] sm:$0xff]
      %v376 = vlaneseq
      %v377 = vshrl.u32 %v376, 7
      %v378 = vsub.s32 0, %v377
      %v379 = vrot.slane %v368, %v378
      %v380 = vlaneseq
      %v381 = vshrl.u32 %v380, 7
      %v382 = vsub.s32 0, %v381
      %v383 = vrot.slane %v369, %v382
      %v384 = vmul.f32 %v379, %v372
      %v385 = vmul.f32 %v383, %v373
      %v386 = vadd.f32 %v384, 0.0
      %v387 = vadd.f32 %v385, 0.0
      %v388 = vlaneseq
      %v389 = vshrl.u32 %v388, 7
      %v390 = vsub.s32 0, %v389
      %v391 = vrot.slane %v370, %v390
      %v392 = vlaneseq
      %v393 = vshrl.u32 %v392, 7
      %v394 = vsub.s32 0, %v393
      %v395 = vrot.slane %v371, %v394
      %v396 = vmul.f32 %v391, %v374
      %v397 = vmul.f32 %v395, %v375
      %v398 = vsub.f32 %v386, %v396
      %v399 = vsub.f32 %v387, %v397
      %v400 = vmul.f32 %v379, %v374
      %v401 = vmul.f32 %v383, %v375
      %v402 = vadd.f32 %v400, 0.0
      %v403 = vadd.f32 %v401, 0.0
      %v404 = vmul.f32 %v391, %v372
      %v405 = vmul.f32 %v395, %v373
      %v406 = vadd.f32 %v402, %v404
      %v407 = vadd.f32 %v403, %v405
      %s408 = scalar_lea.vmem %s340, 16
      %v409 = vld [vmem:[%s408] sm:$0xff]
      %v410 = vld [vmem:[%s408 + $0x8] sm:$0xff]
      %s411 = scalar_lea.vmem %s346, 16
      %v412 = vld [vmem:[%s411] sm:$0xff]
      %v413 = vld [vmem:[%s411 + $0x8] sm:$0xff]
      %v414 = vlaneseq
      %v415 = vshrl.u32 %v414, 7
      %v416 = vsub.s32 1, %v415
      %v417 = vrot.slane %v368, %v416
      %v418 = vlaneseq
      %v419 = vshrl.u32 %v418, 7
      %v420 = vsub.s32 1, %v419
      %v421 = vrot.slane %v369, %v420
      %v422 = vmul.f32 %v417, %v409
      %v423 = vmul.f32 %v421, %v410
      %v424 = vadd.f32 %v398, %v422
      %v425 = vadd.f32 %v399, %v423
      %v426 = vlaneseq
      %v427 = vshrl.u32 %v426, 7
      %v428 = vsub.s32 1, %v427
      %v429 = vrot.slane %v370, %v428
      %v430 = vlaneseq
      %v431 = vshrl.u32 %v430, 7
      %v432 = vsub.s32 1, %v431
      %v433 = vrot.slane %v371, %v432
      %v434 = vmul.f32 %v429, %v412
      %v435 = vmul.f32 %v433, %v413
      %v436 = vsub.f32 %v424, %v434
      %v437 = vsub.f32 %v425, %v435
      %v438 = vmul.f32 %v417, %v412
      %v439 = vmul.f32 %v421, %v413
      %v440 = vadd.f32 %v406, %v438
      %v441 = vadd.f32 %v407, %v439
      %v442 = vmul.f32 %v429, %v409
      %v443 = vmul.f32 %v433, %v410
      %v444 = vadd.f32 %v440, %v442
      %v445 = vadd.f32 %v441, %v443
      %s446 = scalar_lea.vmem %s340, 32
      %v447 = vld [vmem:[%s446] sm:$0xff]
      %v448 = vld [vmem:[%s446 + $0x8] sm:$0xff]
      %s449 = scalar_lea.vmem %s346, 32
      %v450 = vld [vmem:[%s449] sm:$0xff]
      %v451 = vld [vmem:[%s449 + $0x8] sm:$0xff]
      %v452 = vlaneseq
      %v453 = vshrl.u32 %v452, 7
      %v454 = vsub.s32 2, %v453
      %v455 = vrot.slane %v368, %v454
      %v456 = vlaneseq
      %v457 = vshrl.u32 %v456, 7
      %v458 = vsub.s32 2, %v457
      %v459 = vrot.slane %v369, %v458
      %v460 = vmul.f32 %v455, %v447
      %v461 = vmul.f32 %v459, %v448
      %v462 = vadd.f32 %v436, %v460
      %v463 = vadd.f32 %v437, %v461
      %v464 = vlaneseq
      %v465 = vshrl.u32 %v464, 7
      %v466 = vsub.s32 2, %v465
      %v467 = vrot.slane %v370, %v466
      %v468 = vlaneseq
      %v469 = vshrl.u32 %v468, 7
      %v470 = vsub.s32 2, %v469
      %v471 = vrot.slane %v371, %v470
      %v472 = vmul.f32 %v467, %v450
      %v473 = vmul.f32 %v471, %v451
      %v474 = vsub.f32 %v462, %v472
      %v475 = vsub.f32 %v463, %v473
      %v476 = vmul.f32 %v455, %v450
      %v477 = vmul.f32 %v459, %v451
      %v478 = vadd.f32 %v444, %v476
      %v479 = vadd.f32 %v445, %v477
      %v480 = vmul.f32 %v467, %v447
      %v481 = vmul.f32 %v471, %v448
      %v482 = vadd.f32 %v478, %v480
      %v483 = vadd.f32 %v479, %v481
      %s484 = scalar_lea.vmem %s340, 48
      %v485 = vld [vmem:[%s484] sm:$0xff]
      %v486 = vld [vmem:[%s484 + $0x8] sm:$0xff]
      %s487 = scalar_lea.vmem %s346, 48
      %v488 = vld [vmem:[%s487] sm:$0xff]
      %v489 = vld [vmem:[%s487 + $0x8] sm:$0xff]
      %v490 = vlaneseq
      %v491 = vshrl.u32 %v490, 7
      %v492 = vsub.s32 3, %v491
      %v493 = vrot.slane %v368, %v492
      %v494 = vlaneseq
      %v495 = vshrl.u32 %v494, 7
      %v496 = vsub.s32 3, %v495
      %v497 = vrot.slane %v369, %v496
      %v498 = vmul.f32 %v493, %v485
      %v499 = vmul.f32 %v497, %v486
      %v500 = vadd.f32 %v474, %v498
      %v501 = vadd.f32 %v475, %v499
      %v502 = vlaneseq
      %v503 = vshrl.u32 %v502, 7
      %v504 = vsub.s32 3, %v503
      %v505 = vrot.slane %v370, %v504
      %v506 = vlaneseq
      %v507 = vshrl.u32 %v506, 7
      %v508 = vsub.s32 3, %v507
      %v509 = vrot.slane %v371, %v508
      %v510 = vmul.f32 %v505, %v488
      %v511 = vmul.f32 %v509, %v489
      %v512 = vsub.f32 %v500, %v510
      %v513 = vsub.f32 %v501, %v511
      %v514 = vmul.f32 %v493, %v488
      %v515 = vmul.f32 %v497, %v489
      %v516 = vadd.f32 %v482, %v514
      %v517 = vadd.f32 %v483, %v515
      %v518 = vmul.f32 %v505, %v485
      %v519 = vmul.f32 %v509, %v486
      %v520 = vadd.f32 %v516, %v518
      %v521 = vadd.f32 %v517, %v519
      %s522 = scalar_lea.vmem %s340, 64
      %v523 = vld [vmem:[%s522] sm:$0xff]
      %v524 = vld [vmem:[%s522 + $0x8] sm:$0xff]
      %s525 = scalar_lea.vmem %s346, 64
      %v526 = vld [vmem:[%s525] sm:$0xff]
      %v527 = vld [vmem:[%s525 + $0x8] sm:$0xff]
      %v528 = vlaneseq
      %v529 = vshrl.u32 %v528, 7
      %v530 = vsub.s32 4, %v529
      %v531 = vrot.slane %v368, %v530
      %v532 = vlaneseq
      %v533 = vshrl.u32 %v532, 7
      %v534 = vsub.s32 4, %v533
      %v535 = vrot.slane %v369, %v534
      %v536 = vmul.f32 %v531, %v523
      %v537 = vmul.f32 %v535, %v524
      %v538 = vadd.f32 %v512, %v536
      %v539 = vadd.f32 %v513, %v537
      %v540 = vlaneseq
      %v541 = vshrl.u32 %v540, 7
      %v542 = vsub.s32 4, %v541
      %v543 = vrot.slane %v370, %v542
      %v544 = vlaneseq
      %v545 = vshrl.u32 %v544, 7
      %v546 = vsub.s32 4, %v545
      %v547 = vrot.slane %v371, %v546
      %v548 = vmul.f32 %v543, %v526
      %v549 = vmul.f32 %v547, %v527
      %v550 = vsub.f32 %v538, %v548
      %v551 = vsub.f32 %v539, %v549
      %v552 = vmul.f32 %v531, %v526
      %v553 = vmul.f32 %v535, %v527
      %v554 = vadd.f32 %v520, %v552
      %v555 = vadd.f32 %v521, %v553
      %v556 = vmul.f32 %v543, %v523
      %v557 = vmul.f32 %v547, %v524
      %v558 = vadd.f32 %v554, %v556
      %v559 = vadd.f32 %v555, %v557
      %s560 = scalar_lea.vmem %s340, 80
      %v561 = vld [vmem:[%s560] sm:$0xff]
      %v562 = vld [vmem:[%s560 + $0x8] sm:$0xff]
      %s563 = scalar_lea.vmem %s346, 80
      %v564 = vld [vmem:[%s563] sm:$0xff]
      %v565 = vld [vmem:[%s563 + $0x8] sm:$0xff]
      %v566 = vlaneseq
      %v567 = vshrl.u32 %v566, 7
      %v568 = vsub.s32 5, %v567
      %v569 = vrot.slane %v368, %v568
      %v570 = vlaneseq
      %v571 = vshrl.u32 %v570, 7
      %v572 = vsub.s32 5, %v571
      %v573 = vrot.slane %v369, %v572
      %v574 = vmul.f32 %v569, %v561
      %v575 = vmul.f32 %v573, %v562
      %v576 = vadd.f32 %v550, %v574
      %v577 = vadd.f32 %v551, %v575
      %v578 = vlaneseq
      %v579 = vshrl.u32 %v578, 7
      %v580 = vsub.s32 5, %v579
      %v581 = vrot.slane %v370, %v580
      %v582 = vlaneseq
      %v583 = vshrl.u32 %v582, 7
      %v584 = vsub.s32 5, %v583
      %v585 = vrot.slane %v371, %v584
      %v586 = vmul.f32 %v581, %v564
      %v587 = vmul.f32 %v585, %v565
      %v588 = vsub.f32 %v576, %v586
      %v589 = vsub.f32 %v577, %v587
      %v590 = vmul.f32 %v569, %v564
      %v591 = vmul.f32 %v573, %v565
      %v592 = vadd.f32 %v558, %v590
      %v593 = vadd.f32 %v559, %v591
      %v594 = vmul.f32 %v581, %v561
      %v595 = vmul.f32 %v585, %v562
      %v596 = vadd.f32 %v592, %v594
      %v597 = vadd.f32 %v593, %v595
      %s598 = scalar_lea.vmem %s340, 96
      %v599 = vld [vmem:[%s598] sm:$0xff]
      %v600 = vld [vmem:[%s598 + $0x8] sm:$0xff]
      %s601 = scalar_lea.vmem %s346, 96
      %v602 = vld [vmem:[%s601] sm:$0xff]
      %v603 = vld [vmem:[%s601 + $0x8] sm:$0xff]
      %v604 = vlaneseq
      %v605 = vshrl.u32 %v604, 7
      %v606 = vsub.s32 6, %v605
      %v607 = vrot.slane %v368, %v606
      %v608 = vlaneseq
      %v609 = vshrl.u32 %v608, 7
      %v610 = vsub.s32 6, %v609
      %v611 = vrot.slane %v369, %v610
      %v612 = vmul.f32 %v607, %v599
      %v613 = vmul.f32 %v611, %v600
      %v614 = vadd.f32 %v588, %v612
      %v615 = vadd.f32 %v589, %v613
      %v616 = vlaneseq
      %v617 = vshrl.u32 %v616, 7
      %v618 = vsub.s32 6, %v617
      %v619 = vrot.slane %v370, %v618
      %v620 = vlaneseq
      %v621 = vshrl.u32 %v620, 7
      %v622 = vsub.s32 6, %v621
      %v623 = vrot.slane %v371, %v622
      %v624 = vmul.f32 %v619, %v602
      %v625 = vmul.f32 %v623, %v603
      %v626 = vsub.f32 %v614, %v624
      %v627 = vsub.f32 %v615, %v625
      %v628 = vmul.f32 %v607, %v602
      %v629 = vmul.f32 %v611, %v603
      %v630 = vadd.f32 %v596, %v628
      %v631 = vadd.f32 %v597, %v629
      %v632 = vmul.f32 %v619, %v599
      %v633 = vmul.f32 %v623, %v600
      %v634 = vadd.f32 %v630, %v632
      %v635 = vadd.f32 %v631, %v633
      %s636 = scalar_lea.vmem %s340, 112
      %v637 = vld [vmem:[%s636] sm:$0xff]
      %v638 = vld [vmem:[%s636 + $0x8] sm:$0xff]
      %s639 = scalar_lea.vmem %s346, 112
      %v640 = vld [vmem:[%s639] sm:$0xff]
      %v641 = vld [vmem:[%s639 + $0x8] sm:$0xff]
      %v642 = vlaneseq
      %v643 = vshrl.u32 %v642, 7
      %v644 = vsub.s32 7, %v643
      %v645 = vrot.slane %v368, %v644
      %v646 = vlaneseq
      %v647 = vshrl.u32 %v646, 7
      %v648 = vsub.s32 7, %v647
      %v649 = vrot.slane %v369, %v648
      %v650 = vmul.f32 %v645, %v637
      %v651 = vmul.f32 %v649, %v638
      %v652 = vadd.f32 %v626, %v650
      %v653 = vadd.f32 %v627, %v651
      %v654 = vlaneseq
      %v655 = vshrl.u32 %v654, 7
      %v656 = vsub.s32 7, %v655
      %v657 = vrot.slane %v370, %v656
      %v658 = vlaneseq
      %v659 = vshrl.u32 %v658, 7
      %v660 = vsub.s32 7, %v659
      %v661 = vrot.slane %v371, %v660
      %v662 = vmul.f32 %v657, %v640
      %v663 = vmul.f32 %v661, %v641
      %v664 = vsub.f32 %v652, %v662
      %v665 = vsub.f32 %v653, %v663
      %v666 = vmul.f32 %v645, %v640
      %v667 = vmul.f32 %v649, %v641
      %v668 = vadd.f32 %v634, %v666
      %v669 = vadd.f32 %v635, %v667
      %v670 = vmul.f32 %v657, %v637
      %v671 = vmul.f32 %v661, %v638
      %v672 = vadd.f32 %v668, %v670
      %v673 = vadd.f32 %v669, %v671
      %674 = vst [vmem:[%s356] sm:$0xff] %v664
      %vm675 = vcmask 523264
      %676 = vst.msk [vmem:[%s356 + $0x8] sm:$0xff] %vm675, %v665
      %677 = vst [vmem:[%s366] sm:$0xff] %v672
      %678 = vst.msk [vmem:[%s366 + $0x8] sm:$0xff] %vm675, %v673
      %s679 = smul.u32 2, %s21
      %p680 = scmp.lt.s32.totalorder %s22, 1
      %s681 = scalar_select %p680, %s22, 1
      %p682 = scmp.lt.s32.totalorder %s679, 1
      %s683 = scalar_select %p682, %s679, 1
      %s684 = smul.addr %s681, 2
      %s685 = sadd.s32 %s683, %s684
      %s686 = smul.addr %s685, 8
      %s687 = scalar_lea.vmem %s4, %s686
      %s688 = smul.u32 2, %s21
      %p689 = scmp.lt.s32.totalorder %s22, 1
      %s690 = scalar_select %p689, %s22, 1
      %p691 = scmp.lt.s32.totalorder %s688, 1
      %s692 = scalar_select %p691, %s688, 1
      %s693 = smul.addr %s690, 2
      %s694 = sadd.s32 %s692, %s693
      %s695 = smul.addr %s694, 8
      %s696 = scalar_lea.vmem %s5, %s695
      // Predicated region
      $region37: #{plane_pred_head_forward.7} parent=35 // pred_check
        %p697 = pneg %p157
      $region38: #{plane_pred_head_forward.7} parent=35 // pred_check_branch
        %699 = sbr.rel (%p697) target = $region40
      $region39: #{plane_pred_head_forward.7} parent=35 // pred_region
        %s700 = smul.u32 2, %s21
      $region40: #{plane_pred_head_forward.7} parent=35 // pred_fallthru
        _
      // Predicated region
      $region41: #{plane_pred_head_forward.7} parent=35 // pred_check
        %p701 = pneg %p185
      $region42: #{plane_pred_head_forward.7} parent=35 // pred_check_branch
        %703 = sbr.rel (%p701) target = $region44
      $region43: #{plane_pred_head_forward.7} parent=35 // pred_region
        %s704 = smul.u32 2, %s21
      $region44: #{plane_pred_head_forward.7} parent=35 // pred_fallthru
        _
    $region36: #{plane_pred_head_forward.7} parent=5 // pred_fallthru
      _
    %p705 = scmp.le.s32.totalorder 2, %s12
    // Predicated region
    $region45: #{plane_pred_head_forward.7} parent=5 // pred_check
      %p706 = pneg %p705
    $region46: #{plane_pred_head_forward.7} parent=5 // pred_check_branch
      %708 = sbr.rel (%p706) target = $region48
    $region47: #{plane_pred_head_forward.7} parent=5 // pred_region
      %s709 = ssub.s32 %s12, 2
      // Predicated region
      $region49: #{plane_pred_head_forward.7} parent=47 // pred_check
        %p710 = pneg %p163
      $region50: #{plane_pred_head_forward.7} parent=47 // pred_check_branch
        %712 = sbr.rel (%p710) target = $region52
      $region51: #{plane_pred_head_forward.7} parent=47 // pred_region
        %s713 = smul.u32 2, %s23
        %p714 = scmp.lt.s32.totalorder %s24, 1
        %s715 = scalar_select %p714, %s24, 1
        %p716 = scmp.lt.s32.totalorder %s713, 1
        %s717 = scalar_select %p716, %s713, 1
        %s718 = smul.addr %s715, 2
        %s719 = sadd.s32 %s717, %s718
        %s720 = smul.addr %s719, 8
        %s721 = scalar_lea.vmem %s4, %s720
      $region52: #{plane_pred_head_forward.7} parent=47 // pred_fallthru
        _
      // Predicated region
      $region53: #{plane_pred_head_forward.7} parent=47 // pred_check
        %p722 = pneg %p191
      $region54: #{plane_pred_head_forward.7} parent=47 // pred_check_branch
        %724 = sbr.rel (%p722) target = $region56
      $region55: #{plane_pred_head_forward.7} parent=47 // pred_region
        %s725 = smul.u32 2, %s23
        %p726 = scmp.lt.s32.totalorder %s24, 1
        %s727 = scalar_select %p726, %s24, 1
        %p728 = scmp.lt.s32.totalorder %s725, 1
        %s729 = scalar_select %p728, %s725, 1
        %s730 = smul.addr %s727, 2
        %s731 = sadd.s32 %s729, %s730
        %s732 = smul.addr %s731, 8
        %s733 = scalar_lea.vmem %s5, %s732
      $region56: #{plane_pred_head_forward.7} parent=47 // pred_fallthru
        _
    $region48: #{plane_pred_head_forward.7} parent=5 // pred_fallthru
      _
  $region6: #{plane_pred_head_forward.7} parent=0 // loop_footer
    %s16 = sadd.s32 1, %s12
  $region7: #{plane_pred_head_forward.7} parent=0 // loop_footer_branch
    %11 = sbr.rel target = $region3
  $region8: #{plane_pred_head_forward.7} parent=0 // loop_exit
    _

// kernel: plane_pred_head_forward.8
$region0: #{plane_pred_head_forward.8}
  #allocation0 [shape = 'u32[]', space=smem, size = 0x4, offset = 0x4, fixed_abs, tag = 'smem constant byte address 0x4 - core index']
  #allocation1 [shape = 'u32[144,128]{1,0:T(1,128)}', space=vmem, size = 0x12000, scoped, tag = 'internal scratch']
  %s0 = inlined_call_operand.vmem [shape: f32[2,8,512], index: 0, kind: input, shape index: {}]
  %s1 = inlined_call_operand.vmem [shape: f32[2,8,512], index: 1, kind: input, shape index: {}]
  %s2 = inlined_call_operand.vmem [shape: f32[8,8], index: 2, kind: input, shape index: {}]
  %s3 = inlined_call_operand.vmem [shape: f32[8,1], index: 3, kind: input, shape index: {}]
  %s4 = inlined_call_operand.vmem [shape: f32[2,8,512], index: 4, kind: output, shape index: {}]
  %s5 = sld [smem:[#allocation0]]
  $region49: #{plane_pred_head_forward.8} parent=0
    _
  %s7 = ssub.s32 1, %s5
  %s8 = scalar_select 0, %s7, %s5
  loop: start=0, step=1, limit=4
  $region2: #{plane_pred_head_forward.8} parent=0 // loop_pre_header
    _
  $region3: #{plane_pred_head_forward.8} parent=0 // loop_header
    %s10 = sphi 0, %s14
    %p11 = scmp.ge.s32.totalorder %s10, 4
    %s17 = sphi 0, %s29
    %s18 = sphi 0, %s25
    %s19 = sphi 0, %s17
    %s20 = sphi 0, %s18
    %s21 = sphi 0, %s19
    %s22 = sphi 0, %s20
    %s34 = sphi 0, %s36
    %s37 = sphi 0, %s34
    %s38 = sphi 0, %s37
    %s54 = sphi 0, %s38
    %s62 = sphi 0, %s64
    %s65 = sphi 0, %s62
    %s66 = sphi 0, %s65
    %s82 = sphi 0, %s66
    %s86 = sphi 0, %s86
    %s88 = sphi 0, %s86
    %s89 = sphi 0, %s88
    %s103 = sphi 0, %s89
    %s107 = sphi 0, %s107
    %s109 = sphi 0, %s107
    %s110 = sphi 0, %s109
    %s124 = sphi 0, %s110
    %s132 = sphi 0, %s134
    %s135 = sphi 0, %s132
    %s136 = sphi 0, %s135
    %s152 = sphi 0, %s136
  $region4: #{plane_pred_head_forward.8} parent=0 // loop_header_branch
    %13 = sbr.rel (%p11) target = $region8
  $region5: #{plane_pred_head_forward.8} parent=0 // loop_body
    %s15 = ssub.s32 %s10, 1
    %s16 = ssub.s32 %s10, 2
    %s23 = sadd.s32 1, %s18
    %p24 = scmp.ge.s32.totalorder %s23, 1
    %s25 = scalar_select %p24, 0, %s23
    %s26 = sadd.s32 1, %s17
    %s27 = scalar_select %p24, %s26, %s17
    %p28 = scmp.ge.s32.totalorder %s27, 2
    %s29 = scalar_select %p28, 0, %s27
    %s30 = ssub.s32 %s17, %s29
    %s31 = ssub.s32 %s18, %s25
    %s32 = sor.u32 %s30, %s31
    %p33 = scmp.eq.s32.totalorder %s32, 0
    %s35 = sadd.s32 %s34, 1
    %s36 = scalar_select %p33, %s34, %s35
    %p39 = pneg %p33
    %p40 = scmp.eq.s32.totalorder %s10, 1
    %p41 = por %p39, %p40
    %p42 = scmp.ne.s32.totalorder %s34, %s37
    %p43 = scmp.eq.s32.totalorder %s10, 0
    %p44 = por %p42, %p43
    %p45 = scmp.ne.s32.totalorder %s34, %s37
    %p46 = scmp.eq.s32.totalorder %s15, 1
    %p47 = por %p45, %p46
    %p48 = scmp.ne.s32.totalorder %s37, %s38
    %p49 = scmp.eq.s32.totalorder %s15, 0
    %p50 = por %p48, %p49
    %p51 = scmp.ne.s32.totalorder %s37, %s38
    %p52 = scmp.eq.s32.totalorder %s16, 1
    %p53 = por %p51, %p52
    %p55 = scmp.ne.s32.totalorder %s38, %s54
    %p56 = scmp.eq.s32.totalorder %s16, 0
    %p57 = por %p55, %p56
    %s58 = ssub.s32 %s17, %s29
    %s59 = ssub.s32 %s18, %s25
    %s60 = sor.u32 %s58, %s59
    %p61 = scmp.eq.s32.totalorder %s60, 0
    %s63 = sadd.s32 %s62, 1
    %s64 = scalar_select %p61, %s62, %s63
    %p67 = pneg %p61
    %p68 = scmp.eq.s32.totalorder %s10, 1
    %p69 = por %p67, %p68
    %p70 = scmp.ne.s32.totalorder %s62, %s65
    %p71 = scmp.eq.s32.totalorder %s10, 0
    %p72 = por %p70, %p71
    %p73 = scmp.ne.s32.totalorder %s62, %s65
    %p74 = scmp.eq.s32.totalorder %s15, 1
    %p75 = por %p73, %p74
    %p76 = scmp.ne.s32.totalorder %s65, %s66
    %p77 = scmp.eq.s32.totalorder %s15, 0
    %p78 = por %p76, %p77
    %p79 = scmp.ne.s32.totalorder %s65, %s66
    %p80 = scmp.eq.s32.totalorder %s16, 1
    %p81 = por %p79, %p80
    %p83 = scmp.ne.s32.totalorder %s66, %s82
    %p84 = scmp.eq.s32.totalorder %s16, 0
    %p85 = por %p83, %p84
    %s87 = sadd.s32 %s86, 1
    %p90 = scmp.eq.s32.totalorder %s10, 1
    %p91 = scmp.ne.s32.totalorder %s86, %s88
    %p92 = scmp.eq.s32.totalorder %s10, 0
    %p93 = por %p91, %p92
    %p94 = scmp.ne.s32.totalorder %s86, %s88
    %p95 = scmp.eq.s32.totalorder %s15, 1
    %p96 = por %p94, %p95
    %p97 = scmp.ne.s32.totalorder %s88, %s89
    %p98 = scmp.eq.s32.totalorder %s15, 0
    %p99 = por %p97, %p98
    %p100 = scmp.ne.s32.totalorder %s88, %s89
    %p101 = scmp.eq.s32.totalorder %s16, 1
    %p102 = por %p100, %p101
    %p104 = scmp.ne.s32.totalorder %s89, %s103
    %p105 = scmp.eq.s32.totalorder %s16, 0
    %p106 = por %p104, %p105
    %s108 = sadd.s32 %s107, 1
    %p111 = scmp.eq.s32.totalorder %s10, 1
    %p112 = scmp.ne.s32.totalorder %s107, %s109
    %p113 = scmp.eq.s32.totalorder %s10, 0
    %p114 = por %p112, %p113
    %p115 = scmp.ne.s32.totalorder %s107, %s109
    %p116 = scmp.eq.s32.totalorder %s15, 1
    %p117 = por %p115, %p116
    %p118 = scmp.ne.s32.totalorder %s109, %s110
    %p119 = scmp.eq.s32.totalorder %s15, 0
    %p120 = por %p118, %p119
    %p121 = scmp.ne.s32.totalorder %s109, %s110
    %p122 = scmp.eq.s32.totalorder %s16, 1
    %p123 = por %p121, %p122
    %p125 = scmp.ne.s32.totalorder %s110, %s124
    %p126 = scmp.eq.s32.totalorder %s16, 0
    %p127 = por %p125, %p126
    %s128 = ssub.s32 %s17, %s29
    %s129 = ssub.s32 %s18, %s25
    %s130 = sor.u32 %s128, %s129
    %p131 = scmp.eq.s32.totalorder %s130, 0
    %s133 = sadd.s32 %s132, 1
    %s134 = scalar_select %p131, %s132, %s133
    %p137 = pneg %p131
    %p138 = scmp.eq.s32.totalorder %s10, 1
    %p139 = por %p137, %p138
    %p140 = scmp.ne.s32.totalorder %s132, %s135
    %p141 = scmp.eq.s32.totalorder %s10, 0
    %p142 = por %p140, %p141
    %p143 = scmp.ne.s32.totalorder %s132, %s135
    %p144 = scmp.eq.s32.totalorder %s15, 1
    %p145 = por %p143, %p144
    %p146 = scmp.ne.s32.totalorder %s135, %s136
    %p147 = scmp.eq.s32.totalorder %s15, 0
    %p148 = por %p146, %p147
    %p149 = scmp.ne.s32.totalorder %s135, %s136
    %p150 = scmp.eq.s32.totalorder %s16, 1
    %p151 = por %p149, %p150
    %p153 = scmp.ne.s32.totalorder %s136, %s152
    %p154 = scmp.eq.s32.totalorder %s16, 0
    %p155 = por %p153, %p154
    %p156 = scmp.le.s32.totalorder 1, %s10
    %p157 = scmp.lt.s32.totalorder %s10, 3
    %p158 = pnand %p156, %p157
    %p159 = pneg %p158
    // Predicated region
    $region9: #{plane_pred_head_forward.8} parent=5 // pred_check
      _
    $region10: #{plane_pred_head_forward.8} parent=5 // pred_check_branch
      %161 = sbr.rel (%p158) target = $region12
    $region11: #{plane_pred_head_forward.8} parent=5 // pred_region
      %s162 = ssub.s32 %s10, 1
      // Predicated region
      $region13: #{plane_pred_head_forward.8} parent=11 // pred_check
        %p163 = pneg %p99
      $region14: #{plane_pred_head_forward.8} parent=11 // pred_check_branch
        %165 = sbr.rel (%p163) target = $region16
      $region15: #{plane_pred_head_forward.8} parent=11 // pred_region
        _
      $region16: #{plane_pred_head_forward.8} parent=11 // pred_fallthru
        _
      // Predicated region
      $region17: #{plane_pred_head_forward.8} parent=11 // pred_check
        %p166 = pneg %p120
      $region18: #{plane_pred_head_forward.8} parent=11 // pred_check_branch
        %168 = sbr.rel (%p166) target = $region20
      $region19: #{plane_pred_head_forward.8} parent=11 // pred_region
        _
      $region20: #{plane_pred_head_forward.8} parent=11 // pred_fallthru
        _
    $region12: #{plane_pred_head_forward.8} parent=5 // pred_fallthru
      _
    %p169 = scmp.lt.s32.totalorder %s10, 2
    // Predicated region
    $region21: #{plane_pred_head_forward.8} parent=5 // pred_check
      %p170 = pneg %p169
    $region22: #{plane_pred_head_forward.8} parent=5 // pred_check_branch
      %172 = sbr.rel (%p170) target = $region24
    $region23: #{plane_pred_head_forward.8} parent=5 // pred_region
      // Predicated region
      $region25: #{plane_pred_head_forward.8} parent=23 // pred_check
        %p173 = pneg %p44
      $region26: #{plane_pred_head_forward.8} parent=23 // pred_check_branch
        %175 = sbr.rel (%p173) target = $region28
      $region27: #{plane_pred_head_forward.8} parent=23 // pred_region
        %s176 = smul.u32 4, %s18
        %p177 = scmp.lt.s32.totalorder %s17, 1
        %s178 = scalar_select %p177, %s17, 1
        %p179 = scmp.lt.s32.totalorder %s176, 3
        %s180 = scalar_select %p179, %s176, 3
        %s181 = smul.addr %s178, 4
        %s182 = sadd.s32 %s180, %s181
        %s183 = smul.addr %s182, 8
        %s184 = scalar_lea.vmem %s0, %s183
        %s185 = smul.u32 4, %s18
      $region28: #{plane_pred_head_forward.8} parent=23 // pred_fallthru
        _
      // Predicated region
      $region29: #{plane_pred_head_forward.8} parent=23 // pred_check
        %p186 = pneg %p72
      $region30: #{plane_pred_head_forward.8} parent=23 // pred_check_branch
        %188 = sbr.rel (%p186) target = $region32
      $region31: #{plane_pred_head_forward.8} parent=23 // pred_region
        %s189 = smul.u32 4, %s18
        %p190 = scmp.lt.s32.totalorder %s17, 1
        %s191 = scalar_select %p190, %s17, 1
        %p192 = scmp.lt.s32.totalorder %s189, 3
        %s193 = scalar_select %p192, %s189, 3
        %s194 = smul.addr %s191, 4
        %s195 = sadd.s32 %s193, %s194
        %s196 = smul.addr %s195, 8
        %s197 = scalar_lea.vmem %s1, %s196
        %s198 = smul.u32 4, %s18
      $region32: #{plane_pred_head_forward.8} parent=23 // pred_fallthru
        _
    $region24: #{plane_pred_head_forward.8} parent=5 // pred_fallthru
      _
    %p199 = scmp.le.s32.totalorder 1, %s10
    %p200 = scmp.lt.s32.totalorder %s10, 3
    %p201 = pnand %p199, %p200
    %p202 = pneg %p201
    // Predicated region
    $region33: #{plane_pred_head_forward.8} parent=5 // pred_check
      _
    $region34: #{plane_pred_head_forward.8} parent=5 // pred_check_branch
      %204 = sbr.rel (%p201) target = $region36
    $region35: #{plane_pred_head_forward.8} parent=5 // pred_region
      %s205 = ssub.s32 %s10, 1
      %s206 = smul.u32 4, %s20
      %p207 = scmp.lt.s32.totalorder %s19, 1
      %s208 = scalar_select %p207, %s19, 1
      %p209 = scmp.lt.s32.totalorder %s206, 3
      %s210 = scalar_select %p209, %s206, 3
      %s211 = smul.addr %s208, 4
      %s212 = sadd.s32 %s210, %s211
      %s213 = smul.addr %s212, 8
      %s214 = scalar_lea.vmem %s0, %s213
      %p215 = pneg %p50
      %p216 = pneg %p47
      %s217 = smul.u32 4, %s20
      %p218 = scmp.lt.s32.totalorder %s19, 1
      %s219 = scalar_select %p218, %s19, 1
      %p220 = scmp.lt.s32.totalorder %s217, 3
      %s221 = scalar_select %p220, %s217, 3
      %s222 = smul.addr %s219, 4
      %s223 = sadd.s32 %s221, %s222
      %s224 = smul.addr %s223, 8
      %s225 = scalar_lea.vmem %s1, %s224
      %p226 = pneg %p78
      %p227 = pneg %p75
      %p228 = pneg %p99
      %p229 = pneg %p96
      %p230 = pneg %p120
      %p231 = pneg %p117
      %p232 = pneg %p148
      %p233 = pneg %p145
      %s234 = smul.u32 4, %s20
      %p235 = scmp.lt.s32.totalorder %s19, 1
      %s236 = scalar_select %p235, %s19, 1
      %p237 = scmp.lt.s32.totalorder %s234, 3
      %s238 = scalar_select %p237, %s234, 3
      %s239 = smul.addr %s236, 4
      %s240 = sadd.s32 %s238, %s239
      %s241 = smul.addr %s240, 8
      %s242 = scalar_lea.vmem %s4, %s241
      %s243 = smul.u32 4, %s20
      %p244 = scmp.lt.s32.totalorder %s19, 1
      %s245 = scalar_select %p244, %s19, 1
      %p246 = scmp.lt.s32.totalorder %s243, 3
      %s247 = scalar_select %p246, %s243, 3
      %s248 = smul.addr %s245, 4
      %s249 = sadd.s32 %s247, %s248
      %s250 = smul.addr %s249, 8
      %s251 = scalar_lea.vmem %s0, %s250
      %s252 = smul.u32 4, %s20
      %s253 = smul.u32 4, %s20
      %p254 = scmp.lt.s32.totalorder %s19, 1
      %s255 = scalar_select %p254, %s19, 1
      %p256 = scmp.lt.s32.totalorder %s253, 3
      %s257 = scalar_select %p256, %s253, 3
      %s258 = smul.addr %s255, 4
      %s259 = sadd.s32 %s257, %s258
      %s260 = smul.addr %s259, 8
      %s261 = scalar_lea.vmem %s1, %s260
      %s262 = smul.u32 4, %s20
      %s263 = smul.u32 4, %s20
      %p264 = scmp.lt.s32.totalorder %s19, 1
      %s265 = scalar_select %p264, %s19, 1
      %p266 = scmp.lt.s32.totalorder %s263, 3
      %s267 = scalar_select %p266, %s263, 3
      %s268 = smul.addr %s265, 4
      %s269 = sadd.s32 %s267, %s268
      %s270 = smul.addr %s269, 8
      %s271 = scalar_lea.vmem %s4, %s270
      %s272 = smul.u32 4, %s20
      %v273 = vld [vmem:[%s251] sm:$0xff]
      %v274 = vld [vmem:[%s251 + $0x8] sm:$0xff]
      %v275 = vld [vmem:[%s251 + $0x10] sm:$0xff]
      %v276 = vld [vmem:[%s251 + $0x18] sm:$0xff]
      %v277 = vld [vmem:[%s2] sm:$0xff]
      %v278 = vld [vmem:[%s261] sm:$0xff]
      %v279 = vld [vmem:[%s261 + $0x8] sm:$0xff]
      %v280 = vld [vmem:[%s261 + $0x10] sm:$0xff]
      %v281 = vld [vmem:[%s261 + $0x18] sm:$0xff]
      %vm282 = vcmask 64512
      %v284 = vsel %vm282, %v277, 0
      %286 = vmatprep.subr.mxu0 0.0
      %287 = vmatpush1.msra.mxu0 0.0
      %288 = vmatprep.subr.mxu0 0.0
      %289 = vmatpush1.msra.mxu0 0.0
      %290 = vmatprep.subr.mxu0 0.0
      %291 = vmatpush1.msra.mxu0 0.0
      %292 = vmatprep.subr.mxu0 0.0
      %293 = vmatpush1.msra.mxu0 0.0
      %294 = vmatprep.subr.mxu0 0.0
      %295 = vmatpush1.msra.mxu0 0.0
      %296 = vmatprep.subr.mxu0 0.0
      %297 = vmatpush1.msra.mxu0 0.0
      %298 = vmatprep.subr.mxu0 0.0
      %299 = vmatpush1.msra.mxu0 0.0
      %300 = vmatprep.subr.mxu0 0.0
      %301 = vmatpush1.msra.mxu0 0.0
      %302 = vmatprep.subr.mxu0 0.0
      %303 = vmatpush1.msra.mxu0 0.0
      %304 = vmatprep.subr.mxu0 0.0
      %305 = vmatpush1.msra.mxu0 0.0
      %306 = vmatprep.subr.mxu0 0.0
      %307 = vmatpush1.msra.mxu0 0.0
      %308 = vmatprep.subr.mxu0 0.0
      %309 = vmatpush1.msra.mxu0 0.0
      %310 = vmatprep.subr.mxu0 0.0
      %311 = vmatpush1.msra.mxu0 0.0
      %312 = vmatprep.subr.mxu0 0.0
      %313 = vmatpush1.msra.mxu0 0.0
      %314 = vmatprep.subr.mxu0 0.0
      %315 = vmatpush1.msra.mxu0 0.0
      %316 = vmatprep.subr.mxu0 %v279
      %317 = vmatpush1.msra.mxu0 %v278
      %318 = vmatprep.subr.mxu0 0.0
      %319 = vmatpush2.msra.mxu0 0.0
      %320 = vmatprep.subr.mxu0 0.0
      %321 = vmatpush2.msra.mxu0 0.0
      %322 = vmatprep.subr.mxu0 0.0
      %323 = vmatpush2.msra.mxu0 0.0
      %324 = vmatprep.subr.mxu0 0.0
      %325 = vmatpush2.msra.mxu0 0.0
      %326 = vmatprep.subr.mxu0 0.0
      %327 = vmatpush2.msra.mxu0 0.0
      %328 = vmatprep.subr.mxu0 0.0
      %329 = vmatpush2.msra.mxu0 0.0
      %330 = vmatprep.subr.mxu0 0.0
      %331 = vmatpush2.msra.mxu0 0.0
      %332 = vmatprep.subr.mxu0 0.0
      %333 = vmatpush2.msra.mxu0 0.0
      %334 = vmatprep.subr.mxu0 0.0
      %335 = vmatpush2.msra.mxu0 0.0
      %336 = vmatprep.subr.mxu0 0.0
      %337 = vmatpush2.msra.mxu0 0.0
      %338 = vmatprep.subr.mxu0 0.0
      %339 = vmatpush2.msra.mxu0 0.0
      %340 = vmatprep.subr.mxu0 0.0
      %341 = vmatpush2.msra.mxu0 0.0
      %342 = vmatprep.subr.mxu0 0.0
      %343 = vmatpush2.msra.mxu0 0.0
      %344 = vmatprep.subr.mxu0 0.0
      %345 = vmatpush2.msra.mxu0 0.0
      %346 = vmatprep.subr.mxu0 0.0
      %347 = vmatpush2.msra.mxu0 0.0
      %348 = vmatprep.subr.mxu0 0.0
      %349 = vmatpush2.msra.mxu0 0.0
      %350 = vmatprep.mubr.f32.mxu0 0.0
      %351 = vmatmul.mubr.f32.gmra.mxu0 %v284
      %v352 = vpop.f32.mrf.mxu0
      %v353 = vadd.f32 0.0, %v352
      %v354 = vpop.f32.mrf.mxu0
      %v355 = vadd.f32 0.0, %v354
      %356 = vdwg.mxu0
      %357 = vmatprep.subr.mxu0 0.0
      %358 = vmatpush1.msra.mxu0 0.0
      %359 = vmatprep.subr.mxu0 0.0
      %360 = vmatpush1.msra.mxu0 0.0
      %361 = vmatprep.subr.mxu0 0.0
      %362 = vmatpush1.msra.mxu0 0.0
      %363 = vmatprep.subr.mxu0 0.0
      %364 = vmatpush1.msra.mxu0 0.0
      %365 = vmatprep.subr.mxu0 0.0
      %366 = vmatpush1.msra.mxu0 0.0
      %367 = vmatprep.subr.mxu0 0.0
      %368 = vmatpush1.msra.mxu0 0.0
      %369 = vmatprep.subr.mxu0 0.0
      %370 = vmatpush1.msra.mxu0 0.0
      %371 = vmatprep.subr.mxu0 0.0
      %372 = vmatpush1.msra.mxu0 0.0
      %373 = vmatprep.subr.mxu0 0.0
      %374 = vmatpush1.msra.mxu0 0.0
      %375 = vmatprep.subr.mxu0 0.0
      %376 = vmatpush1.msra.mxu0 0.0
      %377 = vmatprep.subr.mxu0 0.0
      %378 = vmatpush1.msra.mxu0 0.0
      %379 = vmatprep.subr.mxu0 0.0
      %380 = vmatpush1.msra.mxu0 0.0
      %381 = vmatprep.subr.mxu0 0.0
      %382 = vmatpush1.msra.mxu0 0.0
      %383 = vmatprep.subr.mxu0 0.0
      %384 = vmatpush1.msra.mxu0 0.0
      %385 = vmatprep.subr.mxu0 0.0
      %386 = vmatpush1.msra.mxu0 0.0
      %387 = vmatprep.subr.mxu0 %v281
      %388 = vmatpush1.msra.mxu0 %v280
      %389 = vmatprep.subr.mxu0 0.0
      %390 = vmatpush2.msra.mxu0 0.0
      %391 = vmatprep.subr.mxu0 0.0
      %392 = vmatpush2.msra.mxu0 0.0
      %393 = vmatprep.subr.mxu0 0.0
      %394 = vmatpush2.msra.mxu0 0.0
      %395 = vmatprep.subr.mxu0 0.0
      %396 = vmatpush2.msra.mxu0 0.0
      %397 = vmatprep.subr.mxu0 0.0
      %398 = vmatpush2.msra.mxu0 0.0
      %399 = vmatprep.subr.mxu0 0.0
      %400 = vmatpush2.msra.mxu0 0.0
      %401 = vmatprep.subr.mxu0 0.0
      %402 = vmatpush2.msra.mxu0 0.0
      %403 = vmatprep.subr.mxu0 0.0
      %404 = vmatpush2.msra.mxu0 0.0
      %405 = vmatprep.subr.mxu0 0.0
      %406 = vmatpush2.msra.mxu0 0.0
      %407 = vmatprep.subr.mxu0 0.0
      %408 = vmatpush2.msra.mxu0 0.0
      %409 = vmatprep.subr.mxu0 0.0
      %410 = vmatpush2.msra.mxu0 0.0
      %411 = vmatprep.subr.mxu0 0.0
      %412 = vmatpush2.msra.mxu0 0.0
      %413 = vmatprep.subr.mxu0 0.0
      %414 = vmatpush2.msra.mxu0 0.0
      %415 = vmatprep.subr.mxu0 0.0
      %416 = vmatpush2.msra.mxu0 0.0
      %417 = vmatprep.subr.mxu0 0.0
      %418 = vmatpush2.msra.mxu0 0.0
      %419 = vmatprep.subr.mxu0 0.0
      %420 = vmatpush2.msra.mxu0 0.0
      %421 = vmatprep.mubr.f32.mxu0 0.0
      %422 = vmatmul.mubr.f32.gmra.mxu0 %v284
      %v423 = vpop.f32.mrf.mxu0
      %v424 = vadd.f32 0.0, %v423
      %v425 = vpop.f32.mrf.mxu0
      %v426 = vadd.f32 0.0, %v425
      %427 = vdwg.mxu0
      %v428 = vadd.f32 %v273, %v353
      %v429 = vadd.f32 %v274, %v355
      %v430 = vadd.f32 %v275, %v424
      %v431 = vadd.f32 %v276, %v426
      %v432 = vld [vmem:[%s3] sm:$0xff]
      %434 = vset.pattern.permute.xlu0 0
      %435 = vperm.xlu0 %434, %v432
      %v436 = vpop.permute.xlu0 %435
      %v438 = vadd.f32 %v428, %v436
      %v439 = vadd.f32 %v429, %v436
      %v440 = vadd.f32 %v430, %v436
      %v441 = vadd.f32 %v431, %v436
      %442 = vst [vmem:[%s271] sm:$0xff] %v438
      %443 = vst [vmem:[%s271 + $0x8] sm:$0xff] %v439
      %444 = vst [vmem:[%s271 + $0x10] sm:$0xff] %v440
      %445 = vst [vmem:[%s271 + $0x18] sm:$0xff] %v441
      %s446 = smul.u32 4, %s20
      %p447 = scmp.lt.s32.totalorder %s19, 1
      %s448 = scalar_select %p447, %s19, 1
      %p449 = scmp.lt.s32.totalorder %s446, 3
      %s450 = scalar_select %p449, %s446, 3
      %s451 = smul.addr %s448, 4
      %s452 = sadd.s32 %s450, %s451
      %s453 = smul.addr %s452, 8
      %s454 = scalar_lea.vmem %s4, %s453
      // Predicated region
      $region37: #{plane_pred_head_forward.8} parent=35 // pred_check
        %p455 = pneg %p145
      $region38: #{plane_pred_head_forward.8} parent=35 // pred_check_branch
        %457 = sbr.rel (%p455) target = $region40
      $region39: #{plane_pred_head_forward.8} parent=35 // pred_region
        %s458 = smul.u32 4, %s20
      $region40: #{plane_pred_head_forward.8} parent=35 // pred_fallthru
        _
    $region36: #{plane_pred_head_forward.8} parent=5 // pred_fallthru
      _
    %p459 = scmp.le.s32.totalorder 2, %s10
    // Predicated region
    $region41: #{plane_pred_head_forward.8} parent=5 // pred_check
      %p460 = pneg %p459
    $region42: #{plane_pred_head_forward.8} parent=5 // pred_check_branch
      %462 = sbr.rel (%p460) target = $region44
    $region43: #{plane_pred_head_forward.8} parent=5 // pred_region
      %s463 = ssub.s32 %s10, 2
      // Predicated region
      $region45: #{plane_pred_head_forward.8} parent=43 // pred_check
        %p464 = pneg %p151
      $region46: #{plane_pred_head_forward.8} parent=43 // pred_check_branch
        %466 = sbr.rel (%p464) target = $region48
      $region47: #{plane_pred_head_forward.8} parent=43 // pred_region
        %s467 = smul.u32 4, %s22
        %p468 = scmp.lt.s32.totalorder %s21, 1
        %s469 = scalar_select %p468, %s21, 1
        %p470 = scmp.lt.s32.totalorder %s467, 3
        %s471 = scalar_select %p470, %s467, 3
        %s472 = smul.addr %s469, 4
        %s473 = sadd.s32 %s471, %s472
        %s474 = smul.addr %s473, 8
        %s475 = scalar_lea.vmem %s4, %s474
      $region48: #{plane_pred_head_forward.8} parent=43 // pred_fallthru
        _
    $region44: #{plane_pred_head_forward.8} parent=5 // pred_fallthru
      _
  $region6: #{plane_pred_head_forward.8} parent=0 // loop_footer
    %s14 = sadd.s32 1, %s10
  $region7: #{plane_pred_head_forward.8} parent=0 // loop_footer_branch
    %9 = sbr.rel target = $region3
  $region8: #{plane_pred_head_forward.8} parent=0 // loop_exit
    _

// kernel: plane_pred_head_forward.9
$region0: #{plane_pred_head_forward.9}
  #allocation0 [shape = 'u32[]', space=smem, size = 0x4, offset = 0x4, fixed_abs, tag = 'smem constant byte address 0x4 - core index']
  #allocation1 [shape = 'u32[144,128]{1,0:T(1,128)}', space=vmem, size = 0x12000, scoped, tag = 'internal scratch']
  %s0 = inlined_call_operand.vmem [shape: f32[8,768], index: 0, kind: input, shape index: {}]
  %s1 = inlined_call_operand.vmem [shape: f32[32,8], index: 1, kind: input, shape index: {}]
  %s2 = inlined_call_operand.vmem [shape: f32[32,1], index: 2, kind: input, shape index: {}]
  %s3 = inlined_call_operand.vmem [shape: f32[3,32], index: 3, kind: input, shape index: {}]
  %s4 = inlined_call_operand.vmem [shape: f32[3,1], index: 4, kind: input, shape index: {}]
  %s5 = inlined_call_operand.vmem [shape: f32[3,768], index: 5, kind: output, shape index: {}]
  %s6 = sld [smem:[#allocation0]]
  $region53: #{plane_pred_head_forward.9} parent=0
    _
  %s8 = ssub.s32 1, %s6
  %s9 = scalar_select 0, %s8, %s6
  loop: start=0, step=1, limit=4
  $region2: #{plane_pred_head_forward.9} parent=0 // loop_pre_header
    _
  $region3: #{plane_pred_head_forward.9} parent=0 // loop_header
    %s11 = sphi 0, %s15
    %p12 = scmp.ge.s32.totalorder %s11, 4
    %s21 = sphi 0, %s23
    %s24 = sphi 0, %s21
    %s25 = sphi 0, %s24
    %s41 = sphi 0, %s25
    %s45 = sphi 0, %s45
    %s47 = sphi 0, %s45
    %s48 = sphi 0, %s47
    %s62 = sphi 0, %s48
    %s66 = sphi 0, %s66
    %s68 = sphi 0, %s66
    %s69 = sphi 0, %s68
    %s83 = sphi 0, %s69
    %s87 = sphi 0, %s87
    %s89 = sphi 0, %s87
    %s90 = sphi 0, %s89
    %s104 = sphi 0, %s90
    %s108 = sphi 0, %s108
    %s110 = sphi 0, %s108
    %s111 = sphi 0, %s110
    %s125 = sphi 0, %s111
    %s131 = sphi 0, %s133
    %s134 = sphi 0, %s131
    %s135 = sphi 0, %s134
    %s151 = sphi 0, %s135
  $region4: #{plane_pred_head_forward.9} parent=0 // loop_header_branch
    %14 = sbr.rel (%p12) target = $region8
  $region5: #{plane_pred_head_forward.9} parent=0 // loop_body
    %s16 = ssub.s32 %s11, 1
    %s17 = ssub.s32 %s11, 2
    %s18 = sadd.s32 %s11, 1
    %s19 = ssub.s32 %s11, %s18
    %p20 = scmp.eq.s32.totalorder %s19, 0
    %s22 = sadd.s32 %s21, 1
    %s23 = scalar_select %p20, %s21, %s22
    %p26 = pneg %p20
    %p27 = scmp.eq.s32.totalorder %s11, 1
    %p28 = por %p26, %p27
    %p29 = scmp.ne.s32.totalorder %s21, %s24
    %p30 = scmp.eq.s32.totalorder %s11, 0
    %p31 = por %p29, %p30
    %p32 = scmp.ne.s32.totalorder %s21, %s24
    %p33 = scmp.eq.s32.totalorder %s16, 1
    %p34 = por %p32, %p33
    %p35 = scmp.ne.s32.totalorder %s24, %s25
    %p36 = scmp.eq.s32.totalorder %s16, 0
    %p37 = por %p35, %p36
    %p38 = scmp.ne.s32.totalorder %s24, %s25
    %p39 = scmp.eq.s32.totalorder %s17, 1
    %p40 = por %p38, %p39
    %p42 = scmp.ne.s32.totalorder %s25, %s41
    %p43 = scmp.eq.s32.totalorder %s17, 0
    %p44 = por %p42, %p43
    %s46 = sadd.s32 %s45, 1
    %p49 = scmp.eq.s32.totalorder %s11, 1
    %p50 = scmp.ne.s32.totalorder %s45, %s47
    %p51 = scmp.eq.s32.totalorder %s11, 0
    %p52 = por %p50, %p51
    %p53 = scmp.ne.s32.totalorder %s45, %s47
    %p54 = scmp.eq.s32.totalorder %s16, 1
    %p55 = por %p53, %p54
    %p56 = scmp.ne.s32.totalorder %s47, %s48
    %p57 = scmp.eq.s32.totalorder %s16, 0
    %p58 = por %p56, %p57
    %p59 = scmp.ne.s32.totalorder %s47, %s48
    %p60 = scmp.eq.s32.totalorder %s17, 1
    %p61 = por %p59, %p60
    %p63 = scmp.ne.s32.totalorder %s48, %s62
    %p64 = scmp.eq.s32.totalorder %s17, 0
    %p65 = por %p63, %p64
    %s67 = sadd.s32 %s66, 1
    %p70 = scmp.eq.s32.totalorder %s11, 1
    %p71 = scmp.ne.s32.totalorder %s66, %s68
    %p72 = scmp.eq.s32.totalorder %s11, 0
    %p73 = por %p71, %p72
    %p74 = scmp.ne.s32.totalorder %s66, %s68
    %p75 = scmp.eq.s32.totalorder %s16, 1
    %p76 = por %p74, %p75
    %p77 = scmp.ne.s32.totalorder %s68, %s69
    %p78 = scmp.eq.s32.totalorder %s16, 0
    %p79 = por %p77, %p78
    %p80 = scmp.ne.s32.totalorder %s68, %s69
    %p81 = scmp.eq.s32.totalorder %s17, 1
    %p82 = por %p80, %p81
    %p84 = scmp.ne.s32.totalorder %s69, %s83
    %p85 = scmp.eq.s32.totalorder %s17, 0
    %p86 = por %p84, %p85
    %s88 = sadd.s32 %s87, 1
    %p91 = scmp.eq.s32.totalorder %s11, 1
    %p92 = scmp.ne.s32.totalorder %s87, %s89
    %p93 = scmp.eq.s32.totalorder %s11, 0
    %p94 = por %p92, %p93
    %p95 = scmp.ne.s32.totalorder %s87, %s89
    %p96 = scmp.eq.s32.totalorder %s16, 1
    %p97 = por %p95, %p96
    %p98 = scmp.ne.s32.totalorder %s89, %s90
    %p99 = scmp.eq.s32.totalorder %s16, 0
    %p100 = por %p98, %p99
    %p101 = scmp.ne.s32.totalorder %s89, %s90
    %p102 = scmp.eq.s32.totalorder %s17, 1
    %p103 = por %p101, %p102
    %p105 = scmp.ne.s32.totalorder %s90, %s104
    %p106 = scmp.eq.s32.totalorder %s17, 0
    %p107 = por %p105, %p106
    %s109 = sadd.s32 %s108, 1
    %p112 = scmp.eq.s32.totalorder %s11, 1
    %p113 = scmp.ne.s32.totalorder %s108, %s110
    %p114 = scmp.eq.s32.totalorder %s11, 0
    %p115 = por %p113, %p114
    %p116 = scmp.ne.s32.totalorder %s108, %s110
    %p117 = scmp.eq.s32.totalorder %s16, 1
    %p118 = por %p116, %p117
    %p119 = scmp.ne.s32.totalorder %s110, %s111
    %p120 = scmp.eq.s32.totalorder %s16, 0
    %p121 = por %p119, %p120
    %p122 = scmp.ne.s32.totalorder %s110, %s111
    %p123 = scmp.eq.s32.totalorder %s17, 1
    %p124 = por %p122, %p123
    %p126 = scmp.ne.s32.totalorder %s111, %s125
    %p127 = scmp.eq.s32.totalorder %s17, 0
    %p128 = por %p126, %p127
    %s129 = ssub.s32 %s11, %s18
    %p130 = scmp.eq.s32.totalorder %s129, 0
    %s132 = sadd.s32 %s131, 1
    %s133 = scalar_select %p130, %s131, %s132
    %p136 = pneg %p130
    %p137 = scmp.eq.s32.totalorder %s11, 1
    %p138 = por %p136, %p137
    %p139 = scmp.ne.s32.totalorder %s131, %s134
    %p140 = scmp.eq.s32.totalorder %s11, 0
    %p141 = por %p139, %p140
    %p142 = scmp.ne.s32.totalorder %s131, %s134
    %p143 = scmp.eq.s32.totalorder %s16, 1
    %p144 = por %p142, %p143
    %p145 = scmp.ne.s32.totalorder %s134, %s135
    %p146 = scmp.eq.s32.totalorder %s16, 0
    %p147 = por %p145, %p146
    %p148 = scmp.ne.s32.totalorder %s134, %s135
    %p149 = scmp.eq.s32.totalorder %s17, 1
    %p150 = por %p148, %p149
    %p152 = scmp.ne.s32.totalorder %s135, %s151
    %p153 = scmp.eq.s32.totalorder %s17, 0
    %p154 = por %p152, %p153
    %p155 = scmp.le.s32.totalorder 1, %s11
    %p156 = scmp.lt.s32.totalorder %s11, 3
    %p157 = pnand %p155, %p156
    %p158 = pneg %p157
    // Predicated region
    $region9: #{plane_pred_head_forward.9} parent=5 // pred_check
      _
    $region10: #{plane_pred_head_forward.9} parent=5 // pred_check_branch
      %160 = sbr.rel (%p157) target = $region12
    $region11: #{plane_pred_head_forward.9} parent=5 // pred_region
      %s161 = ssub.s32 %s11, 1
      // Predicated region
      $region13: #{plane_pred_head_forward.9} parent=11 // pred_check
        %p162 = pneg %p58
      $region14: #{plane_pred_head_forward.9} parent=11 // pred_check_branch
        %164 = sbr.rel (%p162) target = $region16
      $region15: #{plane_pred_head_forward.9} parent=11 // pred_region
        _
      $region16: #{plane_pred_head_forward.9} parent=11 // pred_fallthru
        _
      // Predicated region
      $region17: #{plane_pred_head_forward.9} parent=11 // pred_check
        %p165 = pneg %p79
      $region18: #{plane_pred_head_forward.9} parent=11 // pred_check_branch
        %167 = sbr.rel (%p165) target = $region20
      $region19: #{plane_pred_head_forward.9} parent=11 // pred_region
        _
      $region20: #{plane_pred_head_forward.9} parent=11 // pred_fallthru
        _
      // Predicated region
      $region21: #{plane_pred_head_forward.9} parent=11 // pred_check
        %p168 = pneg %p100
      $region22: #{plane_pred_head_forward.9} parent=11 // pred_check_branch
        %170 = sbr.rel (%p168) target = $region24
      $region23: #{plane_pred_head_forward.9} parent=11 // pred_region
        _
      $region24: #{plane_pred_head_forward.9} parent=11 // pred_fallthru
        _
      // Predicated region
      $region25: #{plane_pred_head_forward.9} parent=11 // pred_check
        %p171 = pneg %p121
      $region26: #{plane_pred_head_forward.9} parent=11 // pred_check_branch
        %173 = sbr.rel (%p171) target = $region28
      $region27: #{plane_pred_head_forward.9} parent=11 // pred_region
        _
      $region28: #{plane_pred_head_forward.9} parent=11 // pred_fallthru
        _
    $region12: #{plane_pred_head_forward.9} parent=5 // pred_fallthru
      _
    %p174 = scmp.lt.s32.totalorder %s11, 2
    // Predicated region
    $region29: #{plane_pred_head_forward.9} parent=5 // pred_check
      %p175 = pneg %p174
    $region30: #{plane_pred_head_forward.9} parent=5 // pred_check_branch
      %177 = sbr.rel (%p175) target = $region32
    $region31: #{plane_pred_head_forward.9} parent=5 // pred_region
      // Predicated region
      $region33: #{plane_pred_head_forward.9} parent=31 // pred_check
        %p178 = pneg %p31
      $region34: #{plane_pred_head_forward.9} parent=31 // pred_check_branch
        %180 = sbr.rel (%p178) target = $region36
      $region35: #{plane_pred_head_forward.9} parent=31 // pred_region
        %s181 = smul.u32 3, %s11
        %p182 = scmp.lt.s32.totalorder %s181, 5
        %s183 = scalar_select %p182, %s181, 5
        %s184 = smul.addr %s183, 8
        %s185 = scalar_lea.vmem %s0, %s184
        %s186 = smul.u32 3, %s11
      $region36: #{plane_pred_head_forward.9} parent=31 // pred_fallthru
        _
    $region32: #{plane_pred_head_forward.9} parent=5 // pred_fallthru
      _
    %p187 = scmp.le.s32.totalorder 1, %s11
    %p188 = scmp.lt.s32.totalorder %s11, 3
    %p189 = pnand %p187, %p188
    %p190 = pneg %p189
    // Predicated region
    $region37: #{plane_pred_head_forward.9} parent=5 // pred_check
      _
    $region38: #{plane_pred_head_forward.9} parent=5 // pred_check_branch
      %192 = sbr.rel (%p189) target = $region40
    $region39: #{plane_pred_head_forward.9} parent=5 // pred_region
      %s193 = ssub.s32 %s11, 1
      %s194 = smul.u32 3, %s16
      %p195 = scmp.lt.s32.totalorder %s194, 5
      %s196 = scalar_select %p195, %s194, 5
      %s197 = smul.addr %s196, 8
      %s198 = scalar_lea.vmem %s0, %s197
      %p199 = pneg %p37
      %p200 = pneg %p34
      %p201 = pneg %p58
      %p202 = pneg %p55
      %p203 = pneg %p79
      %p204 = pneg %p76
      %p205 = pneg %p100
      %p206 = pneg %p97
      %p207 = pneg %p121
      %p208 = pneg %p118
      %p209 = pneg %p147
      %p210 = pneg %p144
      %s211 = smul.u32 3, %s16
      %p212 = scmp.lt.s32.totalorder %s211, 5
      %s213 = scalar_select %p212, %s211, 5
      %s214 = smul.addr %s213, 4
      %s215 = scalar_lea.vmem %s5, %s214
      %s216 = smul.u32 3, %s16
      %p217 = scmp.lt.s32.totalorder %s216, 5
      %s218 = scalar_select %p217, %s216, 5
      %s219 = smul.addr %s218, 8
      %s220 = scalar_lea.vmem %s0, %s219
      %s221 = smul.u32 3, %s16
      %s222 = smul.u32 3, %s16
      %p223 = scmp.lt.s32.totalorder %s222, 5
      %s224 = scalar_select %p223, %s222, 5
      %s225 = smul.addr %s224, 4
      %s226 = scalar_lea.vmem %s5, %s225
      %s227 = smul.u32 3, %s16
      %v228 = vld [vmem:[%s1] sm:$0xff]
      %v229 = vld [vmem:[%s1 + $0x8] sm:$0xff]
      %v230 = vld [vmem:[%s1 + $0x10] sm:$0xff]
      %v231 = vld [vmem:[%s1 + $0x18] sm:$0xff]
      %v232 = vld [vmem:[%s220] sm:$0xff]
      %v233 = vld [vmem:[%s220 + $0x8] sm:$0xff]
      %v234 = vld [vmem:[%s220 + $0x10] sm:$0xff]
      %v235 = vld [vmem:[%s2] sm:$0xff]
      %v236 = vld [vmem:[%s2 + $0x8] sm:$0xff]
      %v237 = vld [vmem:[%s2 + $0x10] sm:$0xff]
      %v238 = vld [vmem:[%s2 + $0x18] sm:$0xff]
      %240 = vset.pattern.permute.xlu0 0
      %241 = vperm.xlu0 %240, %v235
      %v242 = vpop.permute.xlu0 %241
      %245 = vset.pattern.permute.xlu0 0
      %246 = vperm.xlu0 %245, %v236
      %v247 = vpop.permute.xlu0 %246
      %250 = vset.pattern.permute.xlu0 0
      %251 = vperm.xlu0 %250, %v237
      %v252 = vpop.permute.xlu0 %251
      %255 = vset.pattern.permute.xlu0 0
      %256 = vperm.xlu0 %255, %v238
      %v257 = vpop.permute.xlu0 %256
      %vm259 = vcmask 64512
      %v261 = vsel %vm259, %v228, 0
      %v264 = vsel %vm259, %v229, 0
      %v267 = vsel %vm259, %v230, 0
      %v270 = vsel %vm259, %v231, 0
      %272 = vmatprep.subr.mxu0 0.0
      %273 = vmatpush1.msra.mxu0 0.0
      %274 = vmatprep.subr.mxu0 0.0
      %275 = vmatpush1.msra.mxu0 0.0
      %276 = vmatprep.subr.mxu0 0.0
      %277 = vmatpush1.msra.mxu0 0.0
      %278 = vmatprep.subr.mxu0 0.0
      %279 = vmatpush1.msra.mxu0 0.0
      %280 = vmatprep.subr.mxu0 0.0
      %281 = vmatpush1.msra.mxu0 0.0
      %282 = vmatprep.subr.mxu0 0.0
      %283 = vmatpush1.msra.mxu0 0.0
      %284 = vmatprep.subr.mxu0 0.0
      %285 = vmatpush1.msra.mxu0 0.0
      %286 = vmatprep.subr.mxu0 0.0
      %287 = vmatpush1.msra.mxu0 0.0
      %288 = vmatprep.subr.mxu0 0.0
      %289 = vmatpush1.msra.mxu0 0.0
      %290 = vmatprep.subr.mxu0 0.0
      %291 = vmatpush1.msra.mxu0 0.0
      %292 = vmatprep.subr.mxu0 0.0
      %293 = vmatpush1.msra.mxu0 0.0
      %294 = vmatprep.subr.mxu0 0.0
      %295 = vmatpush1.msra.mxu0 0.0
      %296 = vmatprep.subr.mxu0 0.0
      %297 = vmatpush1.msra.mxu0 0.0
      %298 = vmatprep.subr.mxu0 0.0
      %299 = vmatpush1.msra.mxu0 0.0
      %300 = vmatprep.subr.mxu0 0.0
      %301 = vmatpush1.msra.mxu0 0.0
      %302 = vmatprep.subr.mxu0 %v233
      %303 = vmatpush1.msra.mxu0 %v232
      %304 = vmatprep.subr.mxu0 0.0
      %305 = vmatpush2.msra.mxu0 0.0
      %306 = vmatprep.subr.mxu0 0.0
      %307 = vmatpush2.msra.mxu0 0.0
      %308 = vmatprep.subr.mxu0 0.0
      %309 = vmatpush2.msra.mxu0 0.0
      %310 = vmatprep.subr.mxu0 0.0
      %311 = vmatpush2.msra.mxu0 0.0
      %312 = vmatprep.subr.mxu0 0.0
      %313 = vmatpush2.msra.mxu0 0.0
      %314 = vmatprep.subr.mxu0 0.0
      %315 = vmatpush2.msra.mxu0 0.0
      %316 = vmatprep.subr.mxu0 0.0
      %317 = vmatpush2.msra.mxu0 0.0
      %318 = vmatprep.subr.mxu0 0.0
      %319 = vmatpush2.msra.mxu0 0.0
      %320 = vmatprep.subr.mxu0 0.0
      %321 = vmatpush2.msra.mxu0 0.0
      %322 = vmatprep.subr.mxu0 0.0
      %323 = vmatpush2.msra.mxu0 0.0
      %324 = vmatprep.subr.mxu0 0.0
      %325 = vmatpush2.msra.mxu0 0.0
      %326 = vmatprep.subr.mxu0 0.0
      %327 = vmatpush2.msra.mxu0 0.0
      %328 = vmatprep.subr.mxu0 0.0
      %329 = vmatpush2.msra.mxu0 0.0
      %330 = vmatprep.subr.mxu0 0.0
      %331 = vmatpush2.msra.mxu0 0.0
      %332 = vmatprep.subr.mxu0 0.0
      %333 = vmatpush2.msra.mxu0 0.0
      %334 = vmatprep.subr.mxu0 0.0
      %335 = vmatpush2.msra.mxu0 0.0
      %336 = vmatprep.mubr.f32.mxu0 0.0
      %337 = vmatmul.mubr.f32.gmra.mxu0 %v261
      %v338 = vpop.f32.mrf.mxu0
      %v339 = vadd.f32 %v242, %v338
      %v340 = vpop.f32.mrf.mxu0
      %v341 = vadd.f32 %v242, %v340
      %342 = vmatprep.mubr.f32.mxu0 0.0
      %343 = vmatmul.mubr.f32.gmra.mxu0 %v264
      %v344 = vpop.f32.mrf.mxu0
      %v345 = vadd.f32 %v247, %v344
      %v346 = vpop.f32.mrf.mxu0
      %v347 = vadd.f32 %v247, %v346
      %348 = vmatprep.mubr.f32.mxu0 0.0
      %349 = vmatmul.mubr.f32.gmra.mxu0 %v267
      %v350 = vpop.f32.mrf.mxu0
      %v351 = vadd.f32 %v252, %v350
      %v352 = vpop.f32.mrf.mxu0
      %v353 = vadd.f32 %v252, %v352
      %354 = vmatprep.mubr.f32.mxu0 0.0
      %355 = vmatmul.mubr.f32.gmra.mxu0 %v270
      %v356 = vpop.f32.mrf.mxu0
      %v357 = vadd.f32 %v257, %v356
      %v358 = vpop.f32.mrf.mxu0
      %v359 = vadd.f32 %v257, %v358
      %360 = vdwg.mxu0
      %361 = vmatprep.subr.mxu0 0.0
      %362 = vmatpush1.msra.mxu0 0.0
      %363 = vmatprep.subr.mxu0 0.0
      %364 = vmatpush1.msra.mxu0 0.0
      %365 = vmatprep.subr.mxu0 0.0
      %366 = vmatpush1.msra.mxu0 0.0
      %367 = vmatprep.subr.mxu0 0.0
      %368 = vmatpush1.msra.mxu0 0.0
      %369 = vmatprep.subr.mxu0 0.0
      %370 = vmatpush1.msra.mxu0 0.0
      %371 = vmatprep.subr.mxu0 0.0
      %372 = vmatpush1.msra.mxu0 0.0
      %373 = vmatprep.subr.mxu0 0.0
      %374 = vmatpush1.msra.mxu0 0.0
      %375 = vmatprep.subr.mxu0 0.0
      %376 = vmatpush1.msra.mxu0 0.0
      %377 = vmatprep.subr.mxu0 0.0
      %378 = vmatpush1.msra.mxu0 0.0
      %379 = vmatprep.subr.mxu0 0.0
      %380 = vmatpush1.msra.mxu0 0.0
      %381 = vmatprep.subr.mxu0 0.0
      %382 = vmatpush1.msra.mxu0 0.0
      %383 = vmatprep.subr.mxu0 0.0
      %384 = vmatpush1.msra.mxu0 0.0
      %385 = vmatprep.subr.mxu0 0.0
      %386 = vmatpush1.msra.mxu0 0.0
      %387 = vmatprep.subr.mxu0 0.0
      %388 = vmatpush1.msra.mxu0 0.0
      %389 = vmatprep.subr.mxu0 0.0
      %390 = vmatpush1.msra.mxu0 0.0
      %391 = vmatprep.subr.mxu0 0.0
      %392 = vmatpush1.msra.mxu0 %v234
      %393 = vmatprep.subr.mxu0 0.0
      %394 = vmatpush2.msra.mxu0 0.0
      %395 = vmatprep.subr.mxu0 0.0
      %396 = vmatpush2.msra.mxu0 0.0
      %397 = vmatprep.subr.mxu0 0.0
      %398 = vmatpush2.msra.mxu0 0.0
      %399 = vmatprep.subr.mxu0 0.0
      %400 = vmatpush2.msra.mxu0 0.0
      %401 = vmatprep.subr.mxu0 0.0
      %402 = vmatpush2.msra.mxu0 0.0
      %403 = vmatprep.subr.mxu0 0.0
      %404 = vmatpush2.msra.mxu0 0.0
      %405 = vmatprep.subr.mxu0 0.0
      %406 = vmatpush2.msra.mxu0 0.0
      %407 = vmatprep.subr.mxu0 0.0
      %408 = vmatpush2.msra.mxu0 0.0
      %409 = vmatprep.subr.mxu0 0.0
      %410 = vmatpush2.msra.mxu0 0.0
      %411 = vmatprep.subr.mxu0 0.0
      %412 = vmatpush2.msra.mxu0 0.0
      %413 = vmatprep.subr.mxu0 0.0
      %414 = vmatpush2.msra.mxu0 0.0
      %415 = vmatprep.subr.mxu0 0.0
      %416 = vmatpush2.msra.mxu0 0.0
      %417 = vmatprep.subr.mxu0 0.0
      %418 = vmatpush2.msra.mxu0 0.0
      %419 = vmatprep.subr.mxu0 0.0
      %420 = vmatpush2.msra.mxu0 0.0
      %421 = vmatprep.subr.mxu0 0.0
      %422 = vmatpush2.msra.mxu0 0.0
      %423 = vmatprep.subr.mxu0 0.0
      %424 = vmatpush2.msra.mxu0 0.0
      %425 = vmatprep.mubr.f32.mxu0 0.0
      %426 = vmatmul.mubr.f32.gmra.mxu0 %v261
      %v427 = vpop.f32.mrf.mxu0
      %v428 = vadd.f32 %v242, %v427
      %v429 = vpop.f32.mrf.mxu0
      %430 = vmatprep.mubr.f32.mxu0 0.0
      %431 = vmatmul.mubr.f32.gmra.mxu0 %v264
      %v432 = vpop.f32.mrf.mxu0
      %v433 = vadd.f32 %v247, %v432
      %v434 = vpop.f32.mrf.mxu0
      %435 = vmatprep.mubr.f32.mxu0 0.0
      %436 = vmatmul.mubr.f32.gmra.mxu0 %v267
      %v437 = vpop.f32.mrf.mxu0
      %v438 = vadd.f32 %v252, %v437
      %v439 = vpop.f32.mrf.mxu0
      %440 = vmatprep.mubr.f32.mxu0 0.0
      %441 = vmatmul.mubr.f32.gmra.mxu0 %v270
      %v442 = vpop.f32.mrf.mxu0
      %v443 = vadd.f32 %v257, %v442
      %v444 = vpop.f32.mrf.mxu0
      %445 = vdwg.mxu0
      %v446 = vmax.f32 %v339, 0.0
      %v447 = vmax.f32 %v341, 0.0
      %v448 = vmax.f32 %v428, 0.0
      %v449 = vmax.f32 %v345, 0.0
      %v450 = vmax.f32 %v347, 0.0
      %v451 = vmax.f32 %v433, 0.0
      %v452 = vmax.f32 %v351, 0.0
      %v453 = vmax.f32 %v353, 0.0
      %v454 = vmax.f32 %v438, 0.0
      %v455 = vmax.f32 %v357, 0.0
      %v456 = vmax.f32 %v359, 0.0
      %v457 = vmax.f32 %v443, 0.0
      %v458 = vld [vmem:[%s3] sm:$0x7]
      %v459 = vld [vmem:[%s4] sm:$0x7]
      %461 = vset.pattern.permute.xlu0 0
      %462 = vperm.xlu0 %461, %v459
      %v463 = vpop.permute.xlu0 %462
      %vm465 = vcmask 261120
      %v467 = vsel %vm465, %v458, 0
      %469 = vmatprep.subr.mxu0 0.0
      %470 = vmatpush1.msra.mxu0 0.0
      %471 = vmatprep.subr.mxu0 0.0
      %472 = vmatpush1.msra.mxu0 0.0
      %473 = vmatprep.subr.mxu0 0.0
      %474 = vmatpush1.msra.mxu0 0.0
      %475 = vmatprep.subr.mxu0 0.0
      %476 = vmatpush1.msra.mxu0 0.0
      %477 = vmatprep.subr.mxu0 0.0
      %478 = vmatpush1.msra.mxu0 0.0
      %479 = vmatprep.subr.mxu0 0.0
      %480 = vmatpush1.msra.mxu0 0.0
      %481 = vmatprep.subr.mxu0 0.0
      %482 = vmatpush1.msra.mxu0 0.0
      %483 = vmatprep.subr.mxu0 0.0
      %484 = vmatpush1.msra.mxu0 0.0
      %485 = vmatprep.subr.mxu0 0.0
      %486 = vmatpush1.msra.mxu0 0.0
      %487 = vmatprep.subr.mxu0 0.0
      %488 = vmatpush1.msra.mxu0 0.0
      %489 = vmatprep.subr.mxu0 0.0
      %490 = vmatpush1.msra.mxu0 0.0
      %491 = vmatprep.subr.mxu0 0.0
      %492 = vmatpush1.msra.mxu0 0.0
      %493 = vmatprep.subr.mxu0 %v456
      %494 = vmatpush1.msra.mxu0 %v455
      %495 = vmatprep.subr.mxu0 %v453
      %496 = vmatpush1.msra.mxu0 %v452
      %497 = vmatprep.subr.mxu0 %v450
      %498 = vmatpush1.msra.mxu0 %v449
      %499 = vmatprep.subr.mxu0 %v447
      %500 = vmatpush1.msra.mxu0 %v446
      %501 = vmatprep.subr.mxu0 0.0
      %502 = vmatpush2.msra.mxu0 0.0
      %503 = vmatprep.subr.mxu0 0.0
      %504 = vmatpush2.msra.mxu0 0.0
      %505 = vmatprep.subr.mxu0 0.0
      %506 = vmatpush2.msra.mxu0 0.0
      %507 = vmatprep.subr.mxu0 0.0
      %508 = vmatpush2.msra.mxu0 0.0
      %509 = vmatprep.subr.mxu0 0.0
      %510 = vmatpush2.msra.mxu0 0.0
      %511 = vmatprep.subr.mxu0 0.0
      %512 = vmatpush2.msra.mxu0 0.0
      %513 = vmatprep.subr.mxu0 0.0
      %514 = vmatpush2.msra.mxu0 0.0
      %515 = vmatprep.subr.mxu0 0.0
      %516 = vmatpush2.msra.mxu0 0.0
      %517 = vmatprep.subr.mxu0 0.0
      %518 = vmatpush2.msra.mxu0 0.0
      %519 = vmatprep.subr.mxu0 0.0
      %520 = vmatpush2.msra.mxu0 0.0
      %521 = vmatprep.subr.mxu0 0.0
      %522 = vmatpush2.msra.mxu0 0.0
      %523 = vmatprep.subr.mxu0 0.0
      %524 = vmatpush2.msra.mxu0 0.0
      %525 = vmatprep.subr.mxu0 0.0
      %526 = vmatpush2.msra.mxu0 0.0
      %527 = vmatprep.subr.mxu0 0.0
      %528 = vmatpush2.msra.mxu0 0.0
      %529 = vmatprep.subr.mxu0 0.0
      %530 = vmatpush2.msra.mxu0 0.0
      %531 = vmatprep.subr.mxu0 0.0
      %532 = vmatpush2.msra.mxu0 0.0
      %533 = vmatprep.mubr.f32.mxu0 0.0
      %534 = vmatmul.mubr.f32.gmra.mxu0 %v467
      %v535 = vpop.f32.mrf.mxu0
      %v536 = vadd.f32 %v463, %v535
      %v537 = vpop.f32.mrf.mxu0
      %v538 = vadd.f32 %v463, %v537
      %539 = vdwg.mxu0
      %540 = vmatprep.subr.mxu0 0.0
      %541 = vmatpush1.msra.mxu0 0.0
      %542 = vmatprep.subr.mxu0 0.0
      %543 = vmatpush1.msra.mxu0 0.0
      %544 = vmatprep.subr.mxu0 0.0
      %545 = vmatpush1.msra.mxu0 0.0
      %546 = vmatprep.subr.mxu0 0.0
      %547 = vmatpush1.msra.mxu0 0.0
      %548 = vmatprep.subr.mxu0 0.0
      %549 = vmatpush1.msra.mxu0 0.0
      %550 = vmatprep.subr.mxu0 0.0
      %551 = vmatpush1.msra.mxu0 0.0
      %552 = vmatprep.subr.mxu0 0.0
      %553 = vmatpush1.msra.mxu0 0.0
      %554 = vmatprep.subr.mxu0 0.0
      %555 = vmatpush1.msra.mxu0 0.0
      %556 = vmatprep.subr.mxu0 0.0
      %557 = vmatpush1.msra.mxu0 0.0
      %558 = vmatprep.subr.mxu0 0.0
      %559 = vmatpush1.msra.mxu0 0.0
      %560 = vmatprep.subr.mxu0 0.0
      %561 = vmatpush1.msra.mxu0 0.0
      %562 = vmatprep.subr.mxu0 0.0
      %563 = vmatpush1.msra.mxu0 0.0
      %564 = vmatprep.subr.mxu0 0.0
      %565 = vmatpush1.msra.mxu0 %v457
      %566 = vmatprep.subr.mxu0 0.0
      %567 = vmatpush1.msra.mxu0 %v454
      %568 = vmatprep.subr.mxu0 0.0
      %569 = vmatpush1.msra.mxu0 %v451
      %570 = vmatprep.subr.mxu0 0.0
      %571 = vmatpush1.msra.mxu0 %v448
      %572 = vmatprep.subr.mxu0 0.0
      %573 = vmatpush2.msra.mxu0 0.0
      %574 = vmatprep.subr.mxu0 0.0
      %575 = vmatpush2.msra.mxu0 0.0
      %576 = vmatprep.subr.mxu0 0.0
      %577 = vmatpush2.msra.mxu0 0.0
      %578 = vmatprep.subr.mxu0 0.0
      %579 = vmatpush2.msra.mxu0 0.0
      %580 = vmatprep.subr.mxu0 0.0
      %581 = vmatpush2.msra.mxu0 0.0
      %582 = vmatprep.subr.mxu0 0.0
      %583 = vmatpush2.msra.mxu0 0.0
      %584 = vmatprep.subr.mxu0 0.0
      %585 = vmatpush2.msra.mxu0 0.0
      %586 = vmatprep.subr.mxu0 0.0
      %587 = vmatpush2.msra.mxu0 0.0
      %588 = vmatprep.subr.mxu0 0.0
      %589 = vmatpush2.msra.mxu0 0.0
      %590 = vmatprep.subr.mxu0 0.0
      %591 = vmatpush2.msra.mxu0 0.0
      %592 = vmatprep.subr.mxu0 0.0
      %593 = vmatpush2.msra.mxu0 0.0
      %594 = vmatprep.subr.mxu0 0.0
      %595 = vmatpush2.msra.mxu0 0.0
      %596 = vmatprep.subr.mxu0 0.0
      %597 = vmatpush2.msra.mxu0 0.0
      %598 = vmatprep.subr.mxu0 0.0
      %599 = vmatpush2.msra.mxu0 0.0
      %600 = vmatprep.subr.mxu0 0.0
      %601 = vmatpush2.msra.mxu0 0.0
      %602 = vmatprep.subr.mxu0 0.0
      %603 = vmatpush2.msra.mxu0 0.0
      %604 = vmatprep.mubr.f32.mxu0 0.0
      %605 = vmatmul.mubr.f32.gmra.mxu0 %v467
      %v606 = vpop.f32.mrf.mxu0
      %v607 = vadd.f32 %v463, %v606
      %v608 = vpop.f32.mrf.mxu0
      %609 = vdwg.mxu0
      %v612 = vcombine.low %v536, %v538
      %614 = vst [vmem:[%s226] sm:$0x77] %v612
      %615 = vst [vmem:[%s226 + $0x8] sm:$0x7] %v607
      %s616 = smul.u32 3, %s16
      %p617 = scmp.lt.s32.totalorder %s616, 5
      %s618 = scalar_select %p617, %s616, 5
      %s619 = smul.addr %s618, 4
      %s620 = scalar_lea.vmem %s5, %s619
      // Predicated region
      $region41: #{plane_pred_head_forward.9} parent=39 // pred_check
        %p621 = pneg %p144
      $region42: #{plane_pred_head_forward.9} parent=39 // pred_check_branch
        %623 = sbr.rel (%p621) target = $region44
      $region43: #{plane_pred_head_forward.9} parent=39 // pred_region
        %s624 = smul.u32 3, %s16
      $region44: #{plane_pred_head_forward.9} parent=39 // pred_fallthru
        _
    $region40: #{plane_pred_head_forward.9} parent=5 // pred_fallthru
      _
    %p625 = scmp.le.s32.totalorder 2, %s11
    // Predicated region
    $region45: #{plane_pred_head_forward.9} parent=5 // pred_check
      %p626 = pneg %p625
    $region46: #{plane_pred_head_forward.9} parent=5 // pred_check_branch
      %628 = sbr.rel (%p626) target = $region48
    $region47: #{plane_pred_head_forward.9} parent=5 // pred_region
      %s629 = ssub.s32 %s11, 2
      // Predicated region
      $region49: #{plane_pred_head_forward.9} parent=47 // pred_check
        %p630 = pneg %p150
      $region50: #{plane_pred_head_forward.9} parent=47 // pred_check_branch
        %632 = sbr.rel (%p630) target = $region52
      $region51: #{plane_pred_head_forward.9} parent=47 // pred_region
        %s633 = smul.u32 3, %s17
        %p634 = scmp.lt.s32.totalorder %s633, 5
        %s635 = scalar_select %p634, %s633, 5
        %s636 = smul.addr %s635, 4
        %s637 = scalar_lea.vmem %s5, %s636
      $region52: #{plane_pred_head_forward.9} parent=47 // pred_fallthru
        _
    $region48: #{plane_pred_head_forward.9} parent=5 // pred_fallthru
      _
  $region6: #{plane_pred_head_forward.9} parent=0 // loop_footer
    %s15 = sadd.s32 1, %s11
  $region7: #{plane_pred_head_forward.9} parent=0 // loop_footer_branch
    %10 = sbr.rel target = $region3
  $region8: #{plane_pred_head_forward.9} parent=0 // loop_exit
    _

</llo_original>
